<compile_context>
chip_gen: v6e
topology: v6e:2x2x1
jax: 0.10.0
libtpu: 0.0.40
codegen_flags: <defaults>
</compile_context>

<pallas_src>
import jax
import jax.numpy as jnp
import numpy as np
from jax import lax
from jax.experimental import pallas as pl
from jax.experimental.pallas import tpu as pltpu

INPUT_DIM = 32 * 3      # 96 (PyTorch: nn.RNN(32*3, 128, 3, relu))
HIDDEN = 128
NUM_LAYERS = 3
NUM_CLASSES = 11
OUT_PAD = 128           # fc output padded to a full lane width (lane-dense store)


def _rnn_kernel(x_ref,        # (T*Bt, 96)   input slab for this batch tile
                wih0_ref,     # (96, 128)    W_ih_l0^T (natural width, no pad)
                b0_ref,       # (1, 128)     b_ih0 + b_hh0
                whh0_ref,     # (128, 128)   W_hh_l0^T
                w1_ref,       # (256, 128)   [W_ih_l1^T ; W_hh_l1^T]
                b1_ref,       # (1, 128)
                w2_ref,       # (256, 128)   [W_ih_l2^T ; W_hh_l2^T]
                b2_ref,       # (1, 128)
                wfc_ref,      # (128, 128)   padded W_fc^T
                bfc_ref,      # (1, 128)     padded b_fc
                out_ref):     # (Bt, 128)
    Bt = out_ref.shape[0]            # batch tile (static, multiple of 8)
    TB = x_ref.shape[0]              # T * Bt (static)
    T = TB // Bt

    def xproj(t):
        # Layer-0 input projection for one timestep chunk (bias folded in).
        row = pl.multiple_of(t * Bt, 8)                 # aligned sublane start
        return (jnp.dot(x_ref[pl.ds(row, Bt), :], wih0_ref[...],
                        preferred_element_type=jnp.float32) + b0_ref[...])

    def step(t, carry):
        h1, h2, h3, x_t = carry
        # Independent MXU work: project the *next* timestep's inputs while the
        # dependent h1 -> h2 -> h3 chain below drains through the MXU.
        # (Clamped on the last step; one redundant matmul is ~1/T waste.)
        x_next = xproj(jnp.minimum(t + 1, T - 1))

        # Weights read from refs per use (not hoisted) to keep vreg pressure
        # low for the unrolled h1/h2/h3 carries.
        h1 = jnp.maximum(
            x_t + jnp.dot(h1, whh0_ref[...], preferred_element_type=jnp.float32),
            0.0)
        # Layers 1/2: fused [input ; hidden] matmul, K = 256 (one full-depth
        # push on v6e/v7x's 256-deep MXU).
        h2 = jnp.maximum(
            jnp.dot(jnp.concatenate([h1, h2], axis=-1), w1_ref[...],
                    preferred_element_type=jnp.float32) + b1_ref[...], 0.0)
        h3 = jnp.maximum(
            jnp.dot(jnp.concatenate([h2, h3], axis=-1), w2_ref[...],
                    preferred_element_type=jnp.float32) + b2_ref[...], 0.0)
        return h1, h2, h3, x_next

    zero = jnp.zeros((Bt, HIDDEN), jnp.float32)
    unroll = True if T <= 16 else 4     # full unroll only for short sequences
    _, _, h3, _ = lax.fori_loop(0, T, step, (zero, zero, zero, xproj(0)),
                                unroll=unroll)

    # fc on the last hidden state of the top layer; lane-dense 128-wide store.
    out_ref[...] = (
        jnp.dot(h3, wfc_ref[...], preferred_element_type=jnp.float32)
        + bfc_ref[...])


def _round_up(n, m):
    return (n + m - 1) // m * m


def pack_params(params):
    """Fuse / pad the (pre-transposed) params into kernel layout.

    Call ONCE outside the jitted forward and reuse -- pure weight plumbing.
    On v6e/v7x the 2-D weights could be cast to bfloat16 here (keep f32
    accumulation in the kernel) for ~2x MXU rate and half the footprint.
    """
    (wih0, whh0, b0, wih1, whh1, b1, wih2, whh2, b2, wfc, bfc) = params
    # Fuse per-layer input/hidden matmuls: [h_below ; h_self] @ [Wih ; Whh].
    w1 = jnp.concatenate([wih1, whh1], axis=0)      # (256, 128)
    w2 = jnp.concatenate([wih2, whh2], axis=0)      # (256, 128)
    # Pad the 11-class fc to a full 128-lane output (extra cols sliced off).
    wfc_p = jnp.zeros((HIDDEN, OUT_PAD), jnp.float32).at[:, :NUM_CLASSES].set(wfc)
    bfc_p = jnp.zeros((1, OUT_PAD), jnp.float32).at[:, :NUM_CLASSES].set(bfc)
    return (wih0, b0, whh0, w1, b1, w2, b2, wfc_p, bfc_p)


@jax.jit
def rnn_net_forward(x, packed):
    """x: (B, T, 96) float32 (PyTorch batch_first layout). Returns (B, 11)."""
    B, T, D = x.shape
    assert D == INPUT_DIM

    # Batch padding / tiling: at least 8 sublanes; tile at 128 for large B so
    # the "parallel" batch-grid axis gets nb >= 2 and can shard across the two
    # TensorCores on v7x.  (v5e/v6e could use 256 to amortize chain latency.)
    if B <= 128:
        B_pad = max(8, _round_up(B, 8))
        batch_tile = B_pad
    else:
        batch_tile = 128
        B_pad = _round_up(B, 128)
    nb = B_pad // batch_tile

    # Layout plumbing (done once in the wrapper): (B,T,96) -> (nb, T*Bt, 96),
    # batch-tile major, timestep t of a tile at rows [t*Bt : (t+1)*Bt].
    # No feature pad: the slab stays 96 lanes wide in HBM.
    x_p = jnp.pad(jnp.transpose(x, (1, 0, 2)),
                  ((0, 0), (0, B_pad - B), (0, 0)))
    x_p = x_p.reshape(T, nb, batch_tile, D)
    x_p = jnp.transpose(x_p, (1, 0, 2, 3)).reshape(nb, T * batch_tile, D)

    full = lambda shape: pl.BlockSpec(shape, lambda b: tuple(0 for _ in shape))

    # Explicit VMEM plan: double-buffered x slab + weights/out + headroom.
    slab_bytes = T * batch_tile * D * 4
    vmem_limit = min(100 * 1024 * 1024,
                     max(32 * 1024 * 1024, 2 * slab_bytes + 8 * 1024 * 1024))
    # TODO(synk): for long T on v7x (64 MiB VMEM), tile T over an "arbitrary"
    # grid axis carrying h1/h2/h3 in VMEM scratch instead of growing the slab.

    out_padded = pl.pallas_call(
        _rnn_kernel,
        out_shape=jax.ShapeDtypeStruct((B_pad, OUT_PAD), jnp.float32),
        grid_spec=pltpu.PrefetchScalarGridSpec(
            num_scalar_prefetch=0,
            grid=(nb,),
            in_specs=[
                # leading size-1 tile dim squeezed out of the kernel ref
                pl.BlockSpec((None, T * batch_tile, D), lambda b: (b, 0, 0)),
                full((INPUT_DIM, HIDDEN)),      # wih0 (natural 96-wide)
                full((1, HIDDEN)),              # b0
                full((HIDDEN, HIDDEN)),         # whh0
                full((2 * HIDDEN, HIDDEN)),     # w1 packed
                full((1, HIDDEN)),              # b1
                full((2 * HIDDEN, HIDDEN)),     # w2 packed
                full((1, HIDDEN)),              # b2
                full((HIDDEN, OUT_PAD)),        # wfc (padded)
                full((1, OUT_PAD)),             # bfc (padded)
            ],
            out_specs=pl.BlockSpec((batch_tile, OUT_PAD), lambda b: (b, 0)),
        ),
        compiler_params=pltpu.CompilerParams(
            dimension_semantics=("parallel",),
            vmem_limit_bytes=vmem_limit),
    )(x_p, *packed)

    return out_padded[:B, :NUM_CLASSES]


def init_params(key):
    """Deterministic init mirroring PyTorch nn.RNN / nn.Linear shapes.
    Weights are pre-transposed so the math is row-major x @ W^T."""
    std = 1.0 / np.sqrt(HIDDEN)
    keys = jax.random.split(key, 16)
    u = lambda k, shape: jax.random.uniform(k, shape, jnp.float32, -std, std)

    W_ih0 = u(keys[0], (HIDDEN, INPUT_DIM))
    W_hh0 = u(keys[1], (HIDDEN, HIDDEN))
    b_ih0 = u(keys[2], (HIDDEN,))
    b_hh0 = u(keys[3], (HIDDEN,))
    W_ih1 = u(keys[4], (HIDDEN, HIDDEN))
    W_hh1 = u(keys[5], (HIDDEN, HIDDEN))
    b_ih1 = u(keys[6], (HIDDEN,))
    b_hh1 = u(keys[7], (HIDDEN,))
    W_ih2 = u(keys[8], (HIDDEN, HIDDEN))
    W_hh2 = u(keys[9], (HIDDEN, HIDDEN))
    b_ih2 = u(keys[10], (HIDDEN,))
    b_hh2 = u(keys[11], (HIDDEN,))
    std_fc = 1.0 / np.sqrt(HIDDEN)
    W_fc = jax.random.uniform(keys[12], (NUM_CLASSES, HIDDEN), jnp.float32,
                              -std_fc, std_fc)
    b_fc = jax.random.uniform(keys[13], (NUM_CLASSES,), jnp.float32,
                              -std_fc, std_fc)

    return (
        W_ih0.T, W_hh0.T, (b_ih0 + b_hh0).reshape(1, HIDDEN),
        W_ih1.T, W_hh1.T, (b_ih1 + b_hh1).reshape(1, HIDDEN),
        W_ih2.T, W_hh2.T, (b_ih2 + b_hh2).reshape(1, HIDDEN),
        W_fc.T, b_fc.reshape(1, NUM_CLASSES),
    )


def reference_forward(x, params):
    """Pure-JAX reference of the PyTorch forward (3-layer ReLU RNN + fc on last step)."""
    (wih0, whh0, b0, wih1, whh1, b1, wih2, whh2, b2, wfc, bfc) = params
    B, T, _ = x.shape
    h1 = jnp.zeros((B, HIDDEN), jnp.float32)
    h2 = jnp.zeros((B, HIDDEN), jnp.float32)
    h3 = jnp.zeros((B, HIDDEN), jnp.float32)
    for t in range(T):
        xt = x[:, t, :]
        h1 = jnp.maximum(xt @ wih0 + h1 @ whh0 + b0, 0.0)
        h2 = jnp.maximum(h1 @ wih1 + h2 @ whh1 + b1, 0.0)
        h3 = jnp.maximum(h2 @ wih2 + h3 @ whh2 + b2, 0.0)
    return h3 @ wfc + bfc


if __name__ == "__main__":
    key = jax.random.PRNGKey(0)
    kx, kp = jax.random.split(key)

    B, T = 2, 8   # small batch / sequence; feature dim fixed at 96 by the module
    x = jax.random.normal(kx, (B, T, INPUT_DIM), dtype=jnp.float32)
    params = init_params(kp)
    packed = pack_params(params)   # packed once, outside the jitted forward

    out = jax.block_until_ready(rnn_net_forward(x, packed))
    ref = reference_forward(x, params)

    # Different MXU accumulation grouping than the step-by-step reference, so
    # bitwise match is not expected; 1e-3 is far below structural-error scale.
    np.testing.assert_allclose(np.asarray(out), np.asarray(ref),
                               rtol=1e-3, atol=1e-3)
    assert out.shape == (B, NUM_CLASSES)

    print("KERNEL_OK")
</pallas_src>

<mosaic_0001>
module attributes {stable_mosaic.version = 11 : i64} {
  func.func @_rnn_kernel(%arg0: i32, %arg1: memref<1x64x96xf32, #tpu.memory_space<vmem>>, %arg2: memref<96x128xf32, #tpu.memory_space<vmem>>, %arg3: memref<1x128xf32, #tpu.memory_space<vmem>>, %arg4: memref<128x128xf32, #tpu.memory_space<vmem>>, %arg5: memref<256x128xf32, #tpu.memory_space<vmem>>, %arg6: memref<1x128xf32, #tpu.memory_space<vmem>>, %arg7: memref<256x128xf32, #tpu.memory_space<vmem>>, %arg8: memref<1x128xf32, #tpu.memory_space<vmem>>, %arg9: memref<128x128xf32, #tpu.memory_space<vmem>>, %arg10: memref<1x128xf32, #tpu.memory_space<vmem>>, %arg11: memref<8x128xf32, #tpu.memory_space<vmem>>) attributes {dimension_semantics = [#tpu.dimension_semantics<parallel>], iteration_bounds = array<i64: 1>, scalar_prefetch = 0 : i64, scratch_operands = 0 : i64, tpu.core_type = #tpu.core_type<tc>, window_params = [{transform_indices = @transform_0, window_bounds = array<i64: 1, 64, 96>}, {pipeline_mode = #tpu.pipeline_mode<synchronous>, transform_indices = @transform_1, window_bounds = array<i64: 96, 128>}, {pipeline_mode = #tpu.pipeline_mode<synchronous>, transform_indices = @transform_2, window_bounds = array<i64: 1, 128>}, {pipeline_mode = #tpu.pipeline_mode<synchronous>, transform_indices = @transform_3, window_bounds = array<i64: 128, 128>}, {pipeline_mode = #tpu.pipeline_mode<synchronous>, transform_indices = @transform_4, window_bounds = array<i64: 256, 128>}, {pipeline_mode = #tpu.pipeline_mode<synchronous>, transform_indices = @transform_5, window_bounds = array<i64: 1, 128>}, {pipeline_mode = #tpu.pipeline_mode<synchronous>, transform_indices = @transform_6, window_bounds = array<i64: 256, 128>}, {pipeline_mode = #tpu.pipeline_mode<synchronous>, transform_indices = @transform_7, window_bounds = array<i64: 1, 128>}, {pipeline_mode = #tpu.pipeline_mode<synchronous>, transform_indices = @transform_8, window_bounds = array<i64: 128, 128>}, {pipeline_mode = #tpu.pipeline_mode<synchronous>, transform_indices = @transform_9, window_bounds = array<i64: 1, 128>}, {transform_indices = @transform_10, window_bounds = array<i64: 8, 128>}]} {
    %cst = arith.constant 0.000000e+00 : f32
    %0 = vector.broadcast %cst : f32 to vector<8x128xf32>
    %c0_i32 = arith.constant 0 : i32
    %1 = tpu.assume_multiple %c0_i32, 8 : i32
    %c0 = arith.constant 0 : index
    %2 = arith.index_cast %1 : i32 to index
    %c0_0 = arith.constant 0 : index
    %3 = vector.load %arg1[%c0, %2, %c0_0] : memref<1x64x96xf32, #tpu.memory_space<vmem>>, vector<1x8x96xf32>
    %4 = vector.shape_cast %3 : vector<1x8x96xf32> to vector<8x96xf32>
    %c0_1 = arith.constant 0 : index
    %c0_2 = arith.constant 0 : index
    %5 = vector.load %arg2[%c0_1, %c0_2] : memref<96x128xf32, #tpu.memory_space<vmem>>, vector<96x128xf32>
    %cst_3 = arith.constant dense<0.000000e+00> : vector<8x128xf32>
    %6 = tpu.matmul %4, %5, %cst_3 {dimension_numbers = #tpu.dot_dimension_numbers<[1], [0], [0], [1], [0, 0, 1, 1], [], []>} : vector<8x96xf32>, vector<96x128xf32>, vector<8x128xf32> -> vector<8x128xf32>
    %c0_4 = arith.constant 0 : index
    %c0_5 = arith.constant 0 : index
    %7 = vector.load %arg3[%c0_4, %c0_5] : memref<1x128xf32, #tpu.memory_space<vmem>>, vector<1x128xf32>
    %8 = vector.broadcast %7 : vector<1x128xf32> to vector<8x128xf32>
    %9 = arith.addf %6, %8 : vector<8x128xf32>
    %c0_i32_6 = arith.constant 0 : i32
    %c1_i32 = arith.constant 1 : i32
    %10 = arith.addi %c0_i32_6, %c1_i32 : i32
    %c7_i32 = arith.constant 7 : i32
    %11 = arith.minsi %10, %c7_i32 : i32
    %c8_i32 = arith.constant 8 : i32
    %12 = arith.muli %11, %c8_i32 : i32
    %13 = tpu.assume_multiple %12, 8 : i32
    %c0_7 = arith.constant 0 : index
    %14 = arith.index_cast %13 : i32 to index
    %c0_8 = arith.constant 0 : index
    %15 = vector.load %arg1[%c0_7, %14, %c0_8] : memref<1x64x96xf32, #tpu.memory_space<vmem>>, vector<1x8x96xf32>
    %16 = vector.shape_cast %15 : vector<1x8x96xf32> to vector<8x96xf32>
    %c0_9 = arith.constant 0 : index
    %c0_10 = arith.constant 0 : index
    %17 = vector.load %arg2[%c0_9, %c0_10] : memref<96x128xf32, #tpu.memory_space<vmem>>, vector<96x128xf32>
    %cst_11 = arith.constant dense<0.000000e+00> : vector<8x128xf32>
    %18 = tpu.matmul %16, %17, %cst_11 {dimension_numbers = #tpu.dot_dimension_numbers<[1], [0], [0], [1], [0, 0, 1, 1], [], []>} : vector<8x96xf32>, vector<96x128xf32>, vector<8x128xf32> -> vector<8x128xf32>
    %c0_12 = arith.constant 0 : index
    %c0_13 = arith.constant 0 : index
    %19 = vector.load %arg3[%c0_12, %c0_13] : memref<1x128xf32, #tpu.memory_space<vmem>>, vector<1x128xf32>
    %20 = vector.broadcast %19 : vector<1x128xf32> to vector<8x128xf32>
    %21 = arith.addf %18, %20 : vector<8x128xf32>
    %c0_14 = arith.constant 0 : index
    %c0_15 = arith.constant 0 : index
    %22 = vector.load %arg4[%c0_14, %c0_15] : memref<128x128xf32, #tpu.memory_space<vmem>>, vector<128x128xf32>
    %cst_16 = arith.constant dense<0.000000e+00> : vector<8x128xf32>
    %23 = tpu.matmul %0, %22, %cst_16 {dimension_numbers = #tpu.dot_dimension_numbers<[1], [0], [0], [1], [0, 0, 1, 1], [], []>} : vector<8x128xf32>, vector<128x128xf32>, vector<8x128xf32> -> vector<8x128xf32>
    %24 = arith.addf %9, %23 : vector<8x128xf32>
    %cst_17 = arith.constant 0.000000e+00 : f32
    %25 = vector.broadcast %cst_17 : f32 to vector<8x128xf32>
    %26 = arith.maximumf %24, %25 : vector<8x128xf32>
    %27 = tpu.concatenate %26, %0 in 1 : vector<8x128xf32>, vector<8x128xf32> -> vector<8x256xf32>
    %c0_18 = arith.constant 0 : index
    %c0_19 = arith.constant 0 : index
    %28 = vector.load %arg5[%c0_18, %c0_19] : memref<256x128xf32, #tpu.memory_space<vmem>>, vector<256x128xf32>
    %cst_20 = arith.constant dense<0.000000e+00> : vector<8x128xf32>
    %29 = tpu.matmul %27, %28, %cst_20 {dimension_numbers = #tpu.dot_dimension_numbers<[1], [0], [0], [1], [0, 0, 1, 1], [], []>} : vector<8x256xf32>, vector<256x128xf32>, vector<8x128xf32> -> vector<8x128xf32>
    %c0_21 = arith.constant 0 : index
    %c0_22 = arith.constant 0 : index
    %30 = vector.load %arg6[%c0_21, %c0_22] : memref<1x128xf32, #tpu.memory_space<vmem>>, vector<1x128xf32>
    %31 = vector.broadcast %30 : vector<1x128xf32> to vector<8x128xf32>
    %32 = arith.addf %29, %31 : vector<8x128xf32>
    %cst_23 = arith.constant 0.000000e+00 : f32
    %33 = vector.broadcast %cst_23 : f32 to vector<8x128xf32>
    %34 = arith.maximumf %32, %33 : vector<8x128xf32>
    %35 = tpu.concatenate %34, %0 in 1 : vector<8x128xf32>, vector<8x128xf32> -> vector<8x256xf32>
    %c0_24 = arith.constant 0 : index
    %c0_25 = arith.constant 0 : index
    %36 = vector.load %arg7[%c0_24, %c0_25] : memref<256x128xf32, #tpu.memory_space<vmem>>, vector<256x128xf32>
    %cst_26 = arith.constant dense<0.000000e+00> : vector<8x128xf32>
    %37 = tpu.matmul %35, %36, %cst_26 {dimension_numbers = #tpu.dot_dimension_numbers<[1], [0], [0], [1], [0, 0, 1, 1], [], []>} : vector<8x256xf32>, vector<256x128xf32>, vector<8x128xf32> -> vector<8x128xf32>
    %c0_27 = arith.constant 0 : index
    %c0_28 = arith.constant 0 : index
    %38 = vector.load %arg8[%c0_27, %c0_28] : memref<1x128xf32, #tpu.memory_space<vmem>>, vector<1x128xf32>
    %39 = vector.broadcast %38 : vector<1x128xf32> to vector<8x128xf32>
    %40 = arith.addf %37, %39 : vector<8x128xf32>
    %cst_29 = arith.constant 0.000000e+00 : f32
    %41 = vector.broadcast %cst_29 : f32 to vector<8x128xf32>
    %42 = arith.maximumf %40, %41 : vector<8x128xf32>
    %c1_i32_30 = arith.constant 1 : i32
    %c1_i32_31 = arith.constant 1 : i32
    %43 = arith.addi %c1_i32_30, %c1_i32_31 : i32
    %c7_i32_32 = arith.constant 7 : i32
    %44 = arith.minsi %43, %c7_i32_32 : i32
    %c8_i32_33 = arith.constant 8 : i32
    %45 = arith.muli %44, %c8_i32_33 : i32
    %46 = tpu.assume_multiple %45, 8 : i32
    %c0_34 = arith.constant 0 : index
    %47 = arith.index_cast %46 : i32 to index
    %c0_35 = arith.constant 0 : index
    %48 = vector.load %arg1[%c0_34, %47, %c0_35] : memref<1x64x96xf32, #tpu.memory_space<vmem>>, vector<1x8x96xf32>
    %49 = vector.shape_cast %48 : vector<1x8x96xf32> to vector<8x96xf32>
    %c0_36 = arith.constant 0 : index
    %c0_37 = arith.constant 0 : index
    %50 = vector.load %arg2[%c0_36, %c0_37] : memref<96x128xf32, #tpu.memory_space<vmem>>, vector<96x128xf32>
    %cst_38 = arith.constant dense<0.000000e+00> : vector<8x128xf32>
    %51 = tpu.matmul %49, %50, %cst_38 {dimension_numbers = #tpu.dot_dimension_numbers<[1], [0], [0], [1], [0, 0, 1, 1], [], []>} : vector<8x96xf32>, vector<96x128xf32>, vector<8x128xf32> -> vector<8x128xf32>
    %c0_39 = arith.constant 0 : index
    %c0_40 = arith.constant 0 : index
    %52 = vector.load %arg3[%c0_39, %c0_40] : memref<1x128xf32, #tpu.memory_space<vmem>>, vector<1x128xf32>
    %53 = vector.broadcast %52 : vector<1x128xf32> to vector<8x128xf32>
    %54 = arith.addf %51, %53 : vector<8x128xf32>
    %c0_41 = arith.constant 0 : index
    %c0_42 = arith.constant 0 : index
    %55 = vector.load %arg4[%c0_41, %c0_42] : memref<128x128xf32, #tpu.memory_space<vmem>>, vector<128x128xf32>
    %cst_43 = arith.constant dense<0.000000e+00> : vector<8x128xf32>
    %56 = tpu.matmul %26, %55, %cst_43 {dimension_numbers = #tpu.dot_dimension_numbers<[1], [0], [0], [1], [0, 0, 1, 1], [], []>} : vector<8x128xf32>, vector<128x128xf32>, vector<8x128xf32> -> vector<8x128xf32>
    %57 = arith.addf %21, %56 : vector<8x128xf32>
    %cst_44 = arith.constant 0.000000e+00 : f32
    %58 = vector.broadcast %cst_44 : f32 to vector<8x128xf32>
    %59 = arith.maximumf %57, %58 : vector<8x128xf32>
    %60 = tpu.concatenate %59, %34 in 1 : vector<8x128xf32>, vector<8x128xf32> -> vector<8x256xf32>
    %c0_45 = arith.constant 0 : index
    %c0_46 = arith.constant 0 : index
    %61 = vector.load %arg5[%c0_45, %c0_46] : memref<256x128xf32, #tpu.memory_space<vmem>>, vector<256x128xf32>
    %cst_47 = arith.constant dense<0.000000e+00> : vector<8x128xf32>
    %62 = tpu.matmul %60, %61, %cst_47 {dimension_numbers = #tpu.dot_dimension_numbers<[1], [0], [0], [1], [0, 0, 1, 1], [], []>} : vector<8x256xf32>, vector<256x128xf32>, vector<8x128xf32> -> vector<8x128xf32>
    %c0_48 = arith.constant 0 : index
    %c0_49 = arith.constant 0 : index
    %63 = vector.load %arg6[%c0_48, %c0_49] : memref<1x128xf32, #tpu.memory_space<vmem>>, vector<1x128xf32>
    %64 = vector.broadcast %63 : vector<1x128xf32> to vector<8x128xf32>
    %65 = arith.addf %62, %64 : vector<8x128xf32>
    %cst_50 = arith.constant 0.000000e+00 : f32
    %66 = vector.broadcast %cst_50 : f32 to vector<8x128xf32>
    %67 = arith.maximumf %65, %66 : vector<8x128xf32>
    %68 = tpu.concatenate %67, %42 in 1 : vector<8x128xf32>, vector<8x128xf32> -> vector<8x256xf32>
    %c0_51 = arith.constant 0 : index
    %c0_52 = arith.constant 0 : index
    %69 = vector.load %arg7[%c0_51, %c0_52] : memref<256x128xf32, #tpu.memory_space<vmem>>, vector<256x128xf32>
    %cst_53 = arith.constant dense<0.000000e+00> : vector<8x128xf32>
    %70 = tpu.matmul %68, %69, %cst_53 {dimension_numbers = #tpu.dot_dimension_numbers<[1], [0], [0], [1], [0, 0, 1, 1], [], []>} : vector<8x256xf32>, vector<256x128xf32>, vector<8x128xf32> -> vector<8x128xf32>
    %c0_54 = arith.constant 0 : index
    %c0_55 = arith.constant 0 : index
    %71 = vector.load %arg8[%c0_54, %c0_55] : memref<1x128xf32, #tpu.memory_space<vmem>>, vector<1x128xf32>
    %72 = vector.broadcast %71 : vector<1x128xf32> to vector<8x128xf32>
    %73 = arith.addf %70, %72 : vector<8x128xf32>
    %cst_56 = arith.constant 0.000000e+00 : f32
    %74 = vector.broadcast %cst_56 : f32 to vector<8x128xf32>
    %75 = arith.maximumf %73, %74 : vector<8x128xf32>
    %c2_i32 = arith.constant 2 : i32
    %c1_i32_57 = arith.constant 1 : i32
    %76 = arith.addi %c2_i32, %c1_i32_57 : i32
    %c7_i32_58 = arith.constant 7 : i32
    %77 = arith.minsi %76, %c7_i32_58 : i32
    %c8_i32_59 = arith.constant 8 : i32
    %78 = arith.muli %77, %c8_i32_59 : i32
    %79 = tpu.assume_multiple %78, 8 : i32
    %c0_60 = arith.constant 0 : index
    %80 = arith.index_cast %79 : i32 to index
    %c0_61 = arith.constant 0 : index
    %81 = vector.load %arg1[%c0_60, %80, %c0_61] : memref<1x64x96xf32, #tpu.memory_space<vmem>>, vector<1x8x96xf32>
    %82 = vector.shape_cast %81 : vector<1x8x96xf32> to vector<8x96xf32>
    %c0_62 = arith.constant 0 : index
    %c0_63 = arith.constant 0 : index
    %83 = vector.load %arg2[%c0_62, %c0_63] : memref<96x128xf32, #tpu.memory_space<vmem>>, vector<96x128xf32>
    %cst_64 = arith.constant dense<0.000000e+00> : vector<8x128xf32>
    %84 = tpu.matmul %82, %83, %cst_64 {dimension_numbers = #tpu.dot_dimension_numbers<[1], [0], [0], [1], [0, 0, 1, 1], [], []>} : vector<8x96xf32>, vector<96x128xf32>, vector<8x128xf32> -> vector<8x128xf32>
    %c0_65 = arith.constant 0 : index
    %c0_66 = arith.constant 0 : index
    %85 = vector.load %arg3[%c0_65, %c0_66] : memref<1x128xf32, #tpu.memory_space<vmem>>, vector<1x128xf32>
    %86 = vector.broadcast %85 : vector<1x128xf32> to vector<8x128xf32>
    %87 = arith.addf %84, %86 : vector<8x128xf32>
    %c0_67 = arith.constant 0 : index
    %c0_68 = arith.constant 0 : index
    %88 = vector.load %arg4[%c0_67, %c0_68] : memref<128x128xf32, #tpu.memory_space<vmem>>, vector<128x128xf32>
    %cst_69 = arith.constant dense<0.000000e+00> : vector<8x128xf32>
    %89 = tpu.matmul %59, %88, %cst_69 {dimension_numbers = #tpu.dot_dimension_numbers<[1], [0], [0], [1], [0, 0, 1, 1], [], []>} : vector<8x128xf32>, vector<128x128xf32>, vector<8x128xf32> -> vector<8x128xf32>
    %90 = arith.addf %54, %89 : vector<8x128xf32>
    %cst_70 = arith.constant 0.000000e+00 : f32
    %91 = vector.broadcast %cst_70 : f32 to vector<8x128xf32>
    %92 = arith.maximumf %90, %91 : vector<8x128xf32>
    %93 = tpu.concatenate %92, %67 in 1 : vector<8x128xf32>, vector<8x128xf32> -> vector<8x256xf32>
    %c0_71 = arith.constant 0 : index
    %c0_72 = arith.constant 0 : index
    %94 = vector.load %arg5[%c0_71, %c0_72] : memref<256x128xf32, #tpu.memory_space<vmem>>, vector<256x128xf32>
    %cst_73 = arith.constant dense<0.000000e+00> : vector<8x128xf32>
    %95 = tpu.matmul %93, %94, %cst_73 {dimension_numbers = #tpu.dot_dimension_numbers<[1], [0], [0], [1], [0, 0, 1, 1], [], []>} : vector<8x256xf32>, vector<256x128xf32>, vector<8x128xf32> -> vector<8x128xf32>
    %c0_74 = arith.constant 0 : index
    %c0_75 = arith.constant 0 : index
    %96 = vector.load %arg6[%c0_74, %c0_75] : memref<1x128xf32, #tpu.memory_space<vmem>>, vector<1x128xf32>
    %97 = vector.broadcast %96 : vector<1x128xf32> to vector<8x128xf32>
    %98 = arith.addf %95, %97 : vector<8x128xf32>
    %cst_76 = arith.constant 0.000000e+00 : f32
    %99 = vector.broadcast %cst_76 : f32 to vector<8x128xf32>
    %100 = arith.maximumf %98, %99 : vector<8x128xf32>
    %101 = tpu.concatenate %100, %75 in 1 : vector<8x128xf32>, vector<8x128xf32> -> vector<8x256xf32>
    %c0_77 = arith.constant 0 : index
    %c0_78 = arith.constant 0 : index
    %102 = vector.load %arg7[%c0_77, %c0_78] : memref<256x128xf32, #tpu.memory_space<vmem>>, vector<256x128xf32>
    %cst_79 = arith.constant dense<0.000000e+00> : vector<8x128xf32>
    %103 = tpu.matmul %101, %102, %cst_79 {dimension_numbers = #tpu.dot_dimension_numbers<[1], [0], [0], [1], [0, 0, 1, 1], [], []>} : vector<8x256xf32>, vector<256x128xf32>, vector<8x128xf32> -> vector<8x128xf32>
    %c0_80 = arith.constant 0 : index
    %c0_81 = arith.constant 0 : index
    %104 = vector.load %arg8[%c0_80, %c0_81] : memref<1x128xf32, #tpu.memory_space<vmem>>, vector<1x128xf32>
    %105 = vector.broadcast %104 : vector<1x128xf32> to vector<8x128xf32>
    %106 = arith.addf %103, %105 : vector<8x128xf32>
    %cst_82 = arith.constant 0.000000e+00 : f32
    %107 = vector.broadcast %cst_82 : f32 to vector<8x128xf32>
    %108 = arith.maximumf %106, %107 : vector<8x128xf32>
    %c3_i32 = arith.constant 3 : i32
    %c1_i32_83 = arith.constant 1 : i32
    %109 = arith.addi %c3_i32, %c1_i32_83 : i32
    %c7_i32_84 = arith.constant 7 : i32
    %110 = arith.minsi %109, %c7_i32_84 : i32
    %c8_i32_85 = arith.constant 8 : i32
    %111 = arith.muli %110, %c8_i32_85 : i32
    %112 = tpu.assume_multiple %111, 8 : i32
    %c0_86 = arith.constant 0 : index
    %113 = arith.index_cast %112 : i32 to index
    %c0_87 = arith.constant 0 : index
    %114 = vector.load %arg1[%c0_86, %113, %c0_87] : memref<1x64x96xf32, #tpu.memory_space<vmem>>, vector<1x8x96xf32>
    %115 = vector.shape_cast %114 : vector<1x8x96xf32> to vector<8x96xf32>
    %c0_88 = arith.constant 0 : index
    %c0_89 = arith.constant 0 : index
    %116 = vector.load %arg2[%c0_88, %c0_89] : memref<96x128xf32, #tpu.memory_space<vmem>>, vector<96x128xf32>
    %cst_90 = arith.constant dense<0.000000e+00> : vector<8x128xf32>
    %117 = tpu.matmul %115, %116, %cst_90 {dimension_numbers = #tpu.dot_dimension_numbers<[1], [0], [0], [1], [0, 0, 1, 1], [], []>} : vector<8x96xf32>, vector<96x128xf32>, vector<8x128xf32> -> vector<8x128xf32>
    %c0_91 = arith.constant 0 : index
    %c0_92 = arith.constant 0 : index
    %118 = vector.load %arg3[%c0_91, %c0_92] : memref<1x128xf32, #tpu.memory_space<vmem>>, vector<1x128xf32>
    %119 = vector.broadcast %118 : vector<1x128xf32> to vector<8x128xf32>
    %120 = arith.addf %117, %119 : vector<8x128xf32>
    %c0_93 = arith.constant 0 : index
    %c0_94 = arith.constant 0 : index
    %121 = vector.load %arg4[%c0_93, %c0_94] : memref<128x128xf32, #tpu.memory_space<vmem>>, vector<128x128xf32>
    %cst_95 = arith.constant dense<0.000000e+00> : vector<8x128xf32>
    %122 = tpu.matmul %92, %121, %cst_95 {dimension_numbers = #tpu.dot_dimension_numbers<[1], [0], [0], [1], [0, 0, 1, 1], [], []>} : vector<8x128xf32>, vector<128x128xf32>, vector<8x128xf32> -> vector<8x128xf32>
    %123 = arith.addf %87, %122 : vector<8x128xf32>
    %cst_96 = arith.constant 0.000000e+00 : f32
    %124 = vector.broadcast %cst_96 : f32 to vector<8x128xf32>
    %125 = arith.maximumf %123, %124 : vector<8x128xf32>
    %126 = tpu.concatenate %125, %100 in 1 : vector<8x128xf32>, vector<8x128xf32> -> vector<8x256xf32>
    %c0_97 = arith.constant 0 : index
    %c0_98 = arith.constant 0 : index
    %127 = vector.load %arg5[%c0_97, %c0_98] : memref<256x128xf32, #tpu.memory_space<vmem>>, vector<256x128xf32>
    %cst_99 = arith.constant dense<0.000000e+00> : vector<8x128xf32>
    %128 = tpu.matmul %126, %127, %cst_99 {dimension_numbers = #tpu.dot_dimension_numbers<[1], [0], [0], [1], [0, 0, 1, 1], [], []>} : vector<8x256xf32>, vector<256x128xf32>, vector<8x128xf32> -> vector<8x128xf32>
    %c0_100 = arith.constant 0 : index
    %c0_101 = arith.constant 0 : index
    %129 = vector.load %arg6[%c0_100, %c0_101] : memref<1x128xf32, #tpu.memory_space<vmem>>, vector<1x128xf32>
    %130 = vector.broadcast %129 : vector<1x128xf32> to vector<8x128xf32>
    %131 = arith.addf %128, %130 : vector<8x128xf32>
    %cst_102 = arith.constant 0.000000e+00 : f32
    %132 = vector.broadcast %cst_102 : f32 to vector<8x128xf32>
    %133 = arith.maximumf %131, %132 : vector<8x128xf32>
    %134 = tpu.concatenate %133, %108 in 1 : vector<8x128xf32>, vector<8x128xf32> -> vector<8x256xf32>
    %c0_103 = arith.constant 0 : index
    %c0_104 = arith.constant 0 : index
    %135 = vector.load %arg7[%c0_103, %c0_104] : memref<256x128xf32, #tpu.memory_space<vmem>>, vector<256x128xf32>
    %cst_105 = arith.constant dense<0.000000e+00> : vector<8x128xf32>
    %136 = tpu.matmul %134, %135, %cst_105 {dimension_numbers = #tpu.dot_dimension_numbers<[1], [0], [0], [1], [0, 0, 1, 1], [], []>} : vector<8x256xf32>, vector<256x128xf32>, vector<8x128xf32> -> vector<8x128xf32>
    %c0_106 = arith.constant 0 : index
    %c0_107 = arith.constant 0 : index
    %137 = vector.load %arg8[%c0_106, %c0_107] : memref<1x128xf32, #tpu.memory_space<vmem>>, vector<1x128xf32>
    %138 = vector.broadcast %137 : vector<1x128xf32> to vector<8x128xf32>
    %139 = arith.addf %136, %138 : vector<8x128xf32>
    %cst_108 = arith.constant 0.000000e+00 : f32
    %140 = vector.broadcast %cst_108 : f32 to vector<8x128xf32>
    %141 = arith.maximumf %139, %140 : vector<8x128xf32>
    %c4_i32 = arith.constant 4 : i32
    %c1_i32_109 = arith.constant 1 : i32
    %142 = arith.addi %c4_i32, %c1_i32_109 : i32
    %c7_i32_110 = arith.constant 7 : i32
    %143 = arith.minsi %142, %c7_i32_110 : i32
    %c8_i32_111 = arith.constant 8 : i32
    %144 = arith.muli %143, %c8_i32_111 : i32
    %145 = tpu.assume_multiple %144, 8 : i32
    %c0_112 = arith.constant 0 : index
    %146 = arith.index_cast %145 : i32 to index
    %c0_113 = arith.constant 0 : index
    %147 = vector.load %arg1[%c0_112, %146, %c0_113] : memref<1x64x96xf32, #tpu.memory_space<vmem>>, vector<1x8x96xf32>
    %148 = vector.shape_cast %147 : vector<1x8x96xf32> to vector<8x96xf32>
    %c0_114 = arith.constant 0 : index
    %c0_115 = arith.constant 0 : index
    %149 = vector.load %arg2[%c0_114, %c0_115] : memref<96x128xf32, #tpu.memory_space<vmem>>, vector<96x128xf32>
    %cst_116 = arith.constant dense<0.000000e+00> : vector<8x128xf32>
    %150 = tpu.matmul %148, %149, %cst_116 {dimension_numbers = #tpu.dot_dimension_numbers<[1], [0], [0], [1], [0, 0, 1, 1], [], []>} : vector<8x96xf32>, vector<96x128xf32>, vector<8x128xf32> -> vector<8x128xf32>
    %c0_117 = arith.constant 0 : index
    %c0_118 = arith.constant 0 : index
    %151 = vector.load %arg3[%c0_117, %c0_118] : memref<1x128xf32, #tpu.memory_space<vmem>>, vector<1x128xf32>
    %152 = vector.broadcast %151 : vector<1x128xf32> to vector<8x128xf32>
    %153 = arith.addf %150, %152 : vector<8x128xf32>
    %c0_119 = arith.constant 0 : index
    %c0_120 = arith.constant 0 : index
    %154 = vector.load %arg4[%c0_119, %c0_120] : memref<128x128xf32, #tpu.memory_space<vmem>>, vector<128x128xf32>
    %cst_121 = arith.constant dense<0.000000e+00> : vector<8x128xf32>
    %155 = tpu.matmul %125, %154, %cst_121 {dimension_numbers = #tpu.dot_dimension_numbers<[1], [0], [0], [1], [0, 0, 1, 1], [], []>} : vector<8x128xf32>, vector<128x128xf32>, vector<8x128xf32> -> vector<8x128xf32>
    %156 = arith.addf %120, %155 : vector<8x128xf32>
    %cst_122 = arith.constant 0.000000e+00 : f32
    %157 = vector.broadcast %cst_122 : f32 to vector<8x128xf32>
    %158 = arith.maximumf %156, %157 : vector<8x128xf32>
    %159 = tpu.concatenate %158, %133 in 1 : vector<8x128xf32>, vector<8x128xf32> -> vector<8x256xf32>
    %c0_123 = arith.constant 0 : index
    %c0_124 = arith.constant 0 : index
    %160 = vector.load %arg5[%c0_123, %c0_124] : memref<256x128xf32, #tpu.memory_space<vmem>>, vector<256x128xf32>
    %cst_125 = arith.constant dense<0.000000e+00> : vector<8x128xf32>
    %161 = tpu.matmul %159, %160, %cst_125 {dimension_numbers = #tpu.dot_dimension_numbers<[1], [0], [0], [1], [0, 0, 1, 1], [], []>} : vector<8x256xf32>, vector<256x128xf32>, vector<8x128xf32> -> vector<8x128xf32>
    %c0_126 = arith.constant 0 : index
    %c0_127 = arith.constant 0 : index
    %162 = vector.load %arg6[%c0_126, %c0_127] : memref<1x128xf32, #tpu.memory_space<vmem>>, vector<1x128xf32>
    %163 = vector.broadcast %162 : vector<1x128xf32> to vector<8x128xf32>
    %164 = arith.addf %161, %163 : vector<8x128xf32>
    %cst_128 = arith.constant 0.000000e+00 : f32
    %165 = vector.broadcast %cst_128 : f32 to vector<8x128xf32>
    %166 = arith.maximumf %164, %165 : vector<8x128xf32>
    %167 = tpu.concatenate %166, %141 in 1 : vector<8x128xf32>, vector<8x128xf32> -> vector<8x256xf32>
    %c0_129 = arith.constant 0 : index
    %c0_130 = arith.constant 0 : index
    %168 = vector.load %arg7[%c0_129, %c0_130] : memref<256x128xf32, #tpu.memory_space<vmem>>, vector<256x128xf32>
    %cst_131 = arith.constant dense<0.000000e+00> : vector<8x128xf32>
    %169 = tpu.matmul %167, %168, %cst_131 {dimension_numbers = #tpu.dot_dimension_numbers<[1], [0], [0], [1], [0, 0, 1, 1], [], []>} : vector<8x256xf32>, vector<256x128xf32>, vector<8x128xf32> -> vector<8x128xf32>
    %c0_132 = arith.constant 0 : index
    %c0_133 = arith.constant 0 : index
    %170 = vector.load %arg8[%c0_132, %c0_133] : memref<1x128xf32, #tpu.memory_space<vmem>>, vector<1x128xf32>
    %171 = vector.broadcast %170 : vector<1x128xf32> to vector<8x128xf32>
    %172 = arith.addf %169, %171 : vector<8x128xf32>
    %cst_134 = arith.constant 0.000000e+00 : f32
    %173 = vector.broadcast %cst_134 : f32 to vector<8x128xf32>
    %174 = arith.maximumf %172, %173 : vector<8x128xf32>
    %c5_i32 = arith.constant 5 : i32
    %c1_i32_135 = arith.constant 1 : i32
    %175 = arith.addi %c5_i32, %c1_i32_135 : i32
    %c7_i32_136 = arith.constant 7 : i32
    %176 = arith.minsi %175, %c7_i32_136 : i32
    %c8_i32_137 = arith.constant 8 : i32
    %177 = arith.muli %176, %c8_i32_137 : i32
    %178 = tpu.assume_multiple %177, 8 : i32
    %c0_138 = arith.constant 0 : index
    %179 = arith.index_cast %178 : i32 to index
    %c0_139 = arith.constant 0 : index
    %180 = vector.load %arg1[%c0_138, %179, %c0_139] : memref<1x64x96xf32, #tpu.memory_space<vmem>>, vector<1x8x96xf32>
    %181 = vector.shape_cast %180 : vector<1x8x96xf32> to vector<8x96xf32>
    %c0_140 = arith.constant 0 : index
    %c0_141 = arith.constant 0 : index
    %182 = vector.load %arg2[%c0_140, %c0_141] : memref<96x128xf32, #tpu.memory_space<vmem>>, vector<96x128xf32>
    %cst_142 = arith.constant dense<0.000000e+00> : vector<8x128xf32>
    %183 = tpu.matmul %181, %182, %cst_142 {dimension_numbers = #tpu.dot_dimension_numbers<[1], [0], [0], [1], [0, 0, 1, 1], [], []>} : vector<8x96xf32>, vector<96x128xf32>, vector<8x128xf32> -> vector<8x128xf32>
    %c0_143 = arith.constant 0 : index
    %c0_144 = arith.constant 0 : index
    %184 = vector.load %arg3[%c0_143, %c0_144] : memref<1x128xf32, #tpu.memory_space<vmem>>, vector<1x128xf32>
    %185 = vector.broadcast %184 : vector<1x128xf32> to vector<8x128xf32>
    %186 = arith.addf %183, %185 : vector<8x128xf32>
    %c0_145 = arith.constant 0 : index
    %c0_146 = arith.constant 0 : index
    %187 = vector.load %arg4[%c0_145, %c0_146] : memref<128x128xf32, #tpu.memory_space<vmem>>, vector<128x128xf32>
    %cst_147 = arith.constant dense<0.000000e+00> : vector<8x128xf32>
    %188 = tpu.matmul %158, %187, %cst_147 {dimension_numbers = #tpu.dot_dimension_numbers<[1], [0], [0], [1], [0, 0, 1, 1], [], []>} : vector<8x128xf32>, vector<128x128xf32>, vector<8x128xf32> -> vector<8x128xf32>
    %189 = arith.addf %153, %188 : vector<8x128xf32>
    %cst_148 = arith.constant 0.000000e+00 : f32
    %190 = vector.broadcast %cst_148 : f32 to vector<8x128xf32>
    %191 = arith.maximumf %189, %190 : vector<8x128xf32>
    %192 = tpu.concatenate %191, %166 in 1 : vector<8x128xf32>, vector<8x128xf32> -> vector<8x256xf32>
    %c0_149 = arith.constant 0 : index
    %c0_150 = arith.constant 0 : index
    %193 = vector.load %arg5[%c0_149, %c0_150] : memref<256x128xf32, #tpu.memory_space<vmem>>, vector<256x128xf32>
    %cst_151 = arith.constant dense<0.000000e+00> : vector<8x128xf32>
    %194 = tpu.matmul %192, %193, %cst_151 {dimension_numbers = #tpu.dot_dimension_numbers<[1], [0], [0], [1], [0, 0, 1, 1], [], []>} : vector<8x256xf32>, vector<256x128xf32>, vector<8x128xf32> -> vector<8x128xf32>
    %c0_152 = arith.constant 0 : index
    %c0_153 = arith.constant 0 : index
    %195 = vector.load %arg6[%c0_152, %c0_153] : memref<1x128xf32, #tpu.memory_space<vmem>>, vector<1x128xf32>
    %196 = vector.broadcast %195 : vector<1x128xf32> to vector<8x128xf32>
    %197 = arith.addf %194, %196 : vector<8x128xf32>
    %cst_154 = arith.constant 0.000000e+00 : f32
    %198 = vector.broadcast %cst_154 : f32 to vector<8x128xf32>
    %199 = arith.maximumf %197, %198 : vector<8x128xf32>
    %200 = tpu.concatenate %199, %174 in 1 : vector<8x128xf32>, vector<8x128xf32> -> vector<8x256xf32>
    %c0_155 = arith.constant 0 : index
    %c0_156 = arith.constant 0 : index
    %201 = vector.load %arg7[%c0_155, %c0_156] : memref<256x128xf32, #tpu.memory_space<vmem>>, vector<256x128xf32>
    %cst_157 = arith.constant dense<0.000000e+00> : vector<8x128xf32>
    %202 = tpu.matmul %200, %201, %cst_157 {dimension_numbers = #tpu.dot_dimension_numbers<[1], [0], [0], [1], [0, 0, 1, 1], [], []>} : vector<8x256xf32>, vector<256x128xf32>, vector<8x128xf32> -> vector<8x128xf32>
    %c0_158 = arith.constant 0 : index
    %c0_159 = arith.constant 0 : index
    %203 = vector.load %arg8[%c0_158, %c0_159] : memref<1x128xf32, #tpu.memory_space<vmem>>, vector<1x128xf32>
    %204 = vector.broadcast %203 : vector<1x128xf32> to vector<8x128xf32>
    %205 = arith.addf %202, %204 : vector<8x128xf32>
    %cst_160 = arith.constant 0.000000e+00 : f32
    %206 = vector.broadcast %cst_160 : f32 to vector<8x128xf32>
    %207 = arith.maximumf %205, %206 : vector<8x128xf32>
    %c6_i32 = arith.constant 6 : i32
    %c1_i32_161 = arith.constant 1 : i32
    %208 = arith.addi %c6_i32, %c1_i32_161 : i32
    %c7_i32_162 = arith.constant 7 : i32
    %209 = arith.minsi %208, %c7_i32_162 : i32
    %c8_i32_163 = arith.constant 8 : i32
    %210 = arith.muli %209, %c8_i32_163 : i32
    %211 = tpu.assume_multiple %210, 8 : i32
    %c0_164 = arith.constant 0 : index
    %212 = arith.index_cast %211 : i32 to index
    %c0_165 = arith.constant 0 : index
    %213 = vector.load %arg1[%c0_164, %212, %c0_165] : memref<1x64x96xf32, #tpu.memory_space<vmem>>, vector<1x8x96xf32>
    %214 = vector.shape_cast %213 : vector<1x8x96xf32> to vector<8x96xf32>
    %c0_166 = arith.constant 0 : index
    %c0_167 = arith.constant 0 : index
    %215 = vector.load %arg2[%c0_166, %c0_167] : memref<96x128xf32, #tpu.memory_space<vmem>>, vector<96x128xf32>
    %cst_168 = arith.constant dense<0.000000e+00> : vector<8x128xf32>
    %216 = tpu.matmul %214, %215, %cst_168 {dimension_numbers = #tpu.dot_dimension_numbers<[1], [0], [0], [1], [0, 0, 1, 1], [], []>} : vector<8x96xf32>, vector<96x128xf32>, vector<8x128xf32> -> vector<8x128xf32>
    %c0_169 = arith.constant 0 : index
    %c0_170 = arith.constant 0 : index
    %217 = vector.load %arg3[%c0_169, %c0_170] : memref<1x128xf32, #tpu.memory_space<vmem>>, vector<1x128xf32>
    %218 = vector.broadcast %217 : vector<1x128xf32> to vector<8x128xf32>
    %219 = arith.addf %216, %218 : vector<8x128xf32>
    %c0_171 = arith.constant 0 : index
    %c0_172 = arith.constant 0 : index
    %220 = vector.load %arg4[%c0_171, %c0_172] : memref<128x128xf32, #tpu.memory_space<vmem>>, vector<128x128xf32>
    %cst_173 = arith.constant dense<0.000000e+00> : vector<8x128xf32>
    %221 = tpu.matmul %191, %220, %cst_173 {dimension_numbers = #tpu.dot_dimension_numbers<[1], [0], [0], [1], [0, 0, 1, 1], [], []>} : vector<8x128xf32>, vector<128x128xf32>, vector<8x128xf32> -> vector<8x128xf32>
    %222 = arith.addf %186, %221 : vector<8x128xf32>
    %cst_174 = arith.constant 0.000000e+00 : f32
    %223 = vector.broadcast %cst_174 : f32 to vector<8x128xf32>
    %224 = arith.maximumf %222, %223 : vector<8x128xf32>
    %225 = tpu.concatenate %224, %199 in 1 : vector<8x128xf32>, vector<8x128xf32> -> vector<8x256xf32>
    %c0_175 = arith.constant 0 : index
    %c0_176 = arith.constant 0 : index
    %226 = vector.load %arg5[%c0_175, %c0_176] : memref<256x128xf32, #tpu.memory_space<vmem>>, vector<256x128xf32>
    %cst_177 = arith.constant dense<0.000000e+00> : vector<8x128xf32>
    %227 = tpu.matmul %225, %226, %cst_177 {dimension_numbers = #tpu.dot_dimension_numbers<[1], [0], [0], [1], [0, 0, 1, 1], [], []>} : vector<8x256xf32>, vector<256x128xf32>, vector<8x128xf32> -> vector<8x128xf32>
    %c0_178 = arith.constant 0 : index
    %c0_179 = arith.constant 0 : index
    %228 = vector.load %arg6[%c0_178, %c0_179] : memref<1x128xf32, #tpu.memory_space<vmem>>, vector<1x128xf32>
    %229 = vector.broadcast %228 : vector<1x128xf32> to vector<8x128xf32>
    %230 = arith.addf %227, %229 : vector<8x128xf32>
    %cst_180 = arith.constant 0.000000e+00 : f32
    %231 = vector.broadcast %cst_180 : f32 to vector<8x128xf32>
    %232 = arith.maximumf %230, %231 : vector<8x128xf32>
    %233 = tpu.concatenate %232, %207 in 1 : vector<8x128xf32>, vector<8x128xf32> -> vector<8x256xf32>
    %c0_181 = arith.constant 0 : index
    %c0_182 = arith.constant 0 : index
    %234 = vector.load %arg7[%c0_181, %c0_182] : memref<256x128xf32, #tpu.memory_space<vmem>>, vector<256x128xf32>
    %cst_183 = arith.constant dense<0.000000e+00> : vector<8x128xf32>
    %235 = tpu.matmul %233, %234, %cst_183 {dimension_numbers = #tpu.dot_dimension_numbers<[1], [0], [0], [1], [0, 0, 1, 1], [], []>} : vector<8x256xf32>, vector<256x128xf32>, vector<8x128xf32> -> vector<8x128xf32>
    %c0_184 = arith.constant 0 : index
    %c0_185 = arith.constant 0 : index
    %236 = vector.load %arg8[%c0_184, %c0_185] : memref<1x128xf32, #tpu.memory_space<vmem>>, vector<1x128xf32>
    %237 = vector.broadcast %236 : vector<1x128xf32> to vector<8x128xf32>
    %238 = arith.addf %235, %237 : vector<8x128xf32>
    %cst_186 = arith.constant 0.000000e+00 : f32
    %239 = vector.broadcast %cst_186 : f32 to vector<8x128xf32>
    %240 = arith.maximumf %238, %239 : vector<8x128xf32>
    %c7_i32_187 = arith.constant 7 : i32
    %c1_i32_188 = arith.constant 1 : i32
    %241 = arith.addi %c7_i32_187, %c1_i32_188 : i32
    %c7_i32_189 = arith.constant 7 : i32
    %242 = arith.minsi %241, %c7_i32_189 : i32
    %c8_i32_190 = arith.constant 8 : i32
    %243 = arith.muli %242, %c8_i32_190 : i32
    %244 = tpu.assume_multiple %243, 8 : i32
    %c0_191 = arith.constant 0 : index
    %245 = arith.index_cast %244 : i32 to index
    %c0_192 = arith.constant 0 : index
    %246 = vector.load %arg1[%c0_191, %245, %c0_192] : memref<1x64x96xf32, #tpu.memory_space<vmem>>, vector<1x8x96xf32>
    %247 = vector.shape_cast %246 : vector<1x8x96xf32> to vector<8x96xf32>
    %c0_193 = arith.constant 0 : index
    %c0_194 = arith.constant 0 : index
    %248 = vector.load %arg2[%c0_193, %c0_194] : memref<96x128xf32, #tpu.memory_space<vmem>>, vector<96x128xf32>
    %cst_195 = arith.constant dense<0.000000e+00> : vector<8x128xf32>
    %249 = tpu.matmul %247, %248, %cst_195 {dimension_numbers = #tpu.dot_dimension_numbers<[1], [0], [0], [1], [0, 0, 1, 1], [], []>} : vector<8x96xf32>, vector<96x128xf32>, vector<8x128xf32> -> vector<8x128xf32>
    %c0_196 = arith.constant 0 : index
    %c0_197 = arith.constant 0 : index
    %250 = vector.load %arg3[%c0_196, %c0_197] : memref<1x128xf32, #tpu.memory_space<vmem>>, vector<1x128xf32>
    %251 = vector.broadcast %250 : vector<1x128xf32> to vector<8x128xf32>
    %252 = arith.addf %249, %251 : vector<8x128xf32>
    %c0_198 = arith.constant 0 : index
    %c0_199 = arith.constant 0 : index
    %253 = vector.load %arg4[%c0_198, %c0_199] : memref<128x128xf32, #tpu.memory_space<vmem>>, vector<128x128xf32>
    %cst_200 = arith.constant dense<0.000000e+00> : vector<8x128xf32>
    %254 = tpu.matmul %224, %253, %cst_200 {dimension_numbers = #tpu.dot_dimension_numbers<[1], [0], [0], [1], [0, 0, 1, 1], [], []>} : vector<8x128xf32>, vector<128x128xf32>, vector<8x128xf32> -> vector<8x128xf32>
    %255 = arith.addf %219, %254 : vector<8x128xf32>
    %cst_201 = arith.constant 0.000000e+00 : f32
    %256 = vector.broadcast %cst_201 : f32 to vector<8x128xf32>
    %257 = arith.maximumf %255, %256 : vector<8x128xf32>
    %258 = tpu.concatenate %257, %232 in 1 : vector<8x128xf32>, vector<8x128xf32> -> vector<8x256xf32>
    %c0_202 = arith.constant 0 : index
    %c0_203 = arith.constant 0 : index
    %259 = vector.load %arg5[%c0_202, %c0_203] : memref<256x128xf32, #tpu.memory_space<vmem>>, vector<256x128xf32>
    %cst_204 = arith.constant dense<0.000000e+00> : vector<8x128xf32>
    %260 = tpu.matmul %258, %259, %cst_204 {dimension_numbers = #tpu.dot_dimension_numbers<[1], [0], [0], [1], [0, 0, 1, 1], [], []>} : vector<8x256xf32>, vector<256x128xf32>, vector<8x128xf32> -> vector<8x128xf32>
    %c0_205 = arith.constant 0 : index
    %c0_206 = arith.constant 0 : index
    %261 = vector.load %arg6[%c0_205, %c0_206] : memref<1x128xf32, #tpu.memory_space<vmem>>, vector<1x128xf32>
    %262 = vector.broadcast %261 : vector<1x128xf32> to vector<8x128xf32>
    %263 = arith.addf %260, %262 : vector<8x128xf32>
    %cst_207 = arith.constant 0.000000e+00 : f32
    %264 = vector.broadcast %cst_207 : f32 to vector<8x128xf32>
    %265 = arith.maximumf %263, %264 : vector<8x128xf32>
    %266 = tpu.concatenate %265, %240 in 1 : vector<8x128xf32>, vector<8x128xf32> -> vector<8x256xf32>
    %c0_208 = arith.constant 0 : index
    %c0_209 = arith.constant 0 : index
    %267 = vector.load %arg7[%c0_208, %c0_209] : memref<256x128xf32, #tpu.memory_space<vmem>>, vector<256x128xf32>
    %cst_210 = arith.constant dense<0.000000e+00> : vector<8x128xf32>
    %268 = tpu.matmul %266, %267, %cst_210 {dimension_numbers = #tpu.dot_dimension_numbers<[1], [0], [0], [1], [0, 0, 1, 1], [], []>} : vector<8x256xf32>, vector<256x128xf32>, vector<8x128xf32> -> vector<8x128xf32>
    %c0_211 = arith.constant 0 : index
    %c0_212 = arith.constant 0 : index
    %269 = vector.load %arg8[%c0_211, %c0_212] : memref<1x128xf32, #tpu.memory_space<vmem>>, vector<1x128xf32>
    %270 = vector.broadcast %269 : vector<1x128xf32> to vector<8x128xf32>
    %271 = arith.addf %268, %270 : vector<8x128xf32>
    %cst_213 = arith.constant 0.000000e+00 : f32
    %272 = vector.broadcast %cst_213 : f32 to vector<8x128xf32>
    %273 = arith.maximumf %271, %272 : vector<8x128xf32>
    %c8_i32_214 = arith.constant 8 : i32
    %c0_215 = arith.constant 0 : index
    %c0_216 = arith.constant 0 : index
    %274 = vector.load %arg9[%c0_215, %c0_216] : memref<128x128xf32, #tpu.memory_space<vmem>>, vector<128x128xf32>
    %cst_217 = arith.constant dense<0.000000e+00> : vector<8x128xf32>
    %275 = tpu.matmul %273, %274, %cst_217 {dimension_numbers = #tpu.dot_dimension_numbers<[1], [0], [0], [1], [0, 0, 1, 1], [], []>} : vector<8x128xf32>, vector<128x128xf32>, vector<8x128xf32> -> vector<8x128xf32>
    %c0_218 = arith.constant 0 : index
    %c0_219 = arith.constant 0 : index
    %276 = vector.load %arg10[%c0_218, %c0_219] : memref<1x128xf32, #tpu.memory_space<vmem>>, vector<1x128xf32>
    %277 = vector.broadcast %276 : vector<1x128xf32> to vector<8x128xf32>
    %278 = arith.addf %275, %277 : vector<8x128xf32>
    %c0_220 = arith.constant 0 : index
    %c0_221 = arith.constant 0 : index
    %279 = vector.load %arg11[%c0_220, %c0_221] : memref<8x128xf32, #tpu.memory_space<vmem>>, vector<8x128xf32>
    tpu.vector_store %arg11[%c0_220, %c0_221], %278 {strides = array<i32>} : memref<8x128xf32, #tpu.memory_space<vmem>>, vector<8x128xf32>,
    return
  }
  func.func @transform_0(%arg0: i32) -> (i32, i32, i32) {
    %c0_i32 = arith.constant 0 : i32
    %c0_i32_0 = arith.constant 0 : i32
    %c0_i32_1 = arith.constant 0 : i32
    return %arg0, %c0_i32, %c0_i32_0 : i32, i32, i32
  }
  func.func @transform_1(%arg0: i32) -> (i32, i32) {
    %c0_i32 = arith.constant 0 : i32
    %c0_i32_0 = arith.constant 0 : i32
    %c0_i32_1 = arith.constant 0 : i32
    return %c0_i32, %c0_i32_0 : i32, i32
  }
  func.func @transform_2(%arg0: i32) -> (i32, i32) {
    %c0_i32 = arith.constant 0 : i32
    %c0_i32_0 = arith.constant 0 : i32
    %c0_i32_1 = arith.constant 0 : i32
    return %c0_i32, %c0_i32_0 : i32, i32
  }
  func.func @transform_3(%arg0: i32) -> (i32, i32) {
    %c0_i32 = arith.constant 0 : i32
    %c0_i32_0 = arith.constant 0 : i32
    %c0_i32_1 = arith.constant 0 : i32
    return %c0_i32, %c0_i32_0 : i32, i32
  }
  func.func @transform_4(%arg0: i32) -> (i32, i32) {
    %c0_i32 = arith.constant 0 : i32
    %c0_i32_0 = arith.constant 0 : i32
    %c0_i32_1 = arith.constant 0 : i32
    return %c0_i32, %c0_i32_0 : i32, i32
  }
  func.func @transform_5(%arg0: i32) -> (i32, i32) {
    %c0_i32 = arith.constant 0 : i32
    %c0_i32_0 = arith.constant 0 : i32
    %c0_i32_1 = arith.constant 0 : i32
    return %c0_i32, %c0_i32_0 : i32, i32
  }
  func.func @transform_6(%arg0: i32) -> (i32, i32) {
    %c0_i32 = arith.constant 0 : i32
    %c0_i32_0 = arith.constant 0 : i32
    %c0_i32_1 = arith.constant 0 : i32
    return %c0_i32, %c0_i32_0 : i32, i32
  }
  func.func @transform_7(%arg0: i32) -> (i32, i32) {
    %c0_i32 = arith.constant 0 : i32
    %c0_i32_0 = arith.constant 0 : i32
    %c0_i32_1 = arith.constant 0 : i32
    return %c0_i32, %c0_i32_0 : i32, i32
  }
  func.func @transform_8(%arg0: i32) -> (i32, i32) {
    %c0_i32 = arith.constant 0 : i32
    %c0_i32_0 = arith.constant 0 : i32
    %c0_i32_1 = arith.constant 0 : i32
    return %c0_i32, %c0_i32_0 : i32, i32
  }
  func.func @transform_9(%arg0: i32) -> (i32, i32) {
    %c0_i32 = arith.constant 0 : i32
    %c0_i32_0 = arith.constant 0 : i32
    %c0_i32_1 = arith.constant 0 : i32
    return %c0_i32, %c0_i32_0 : i32, i32
  }
  func.func @transform_10(%arg0: i32) -> (i32, i32) {
    %c0_i32 = arith.constant 0 : i32
    %c0_i32_0 = arith.constant 0 : i32
    return %arg0, %c0_i32 : i32, i32
  }
}

</mosaic_0001>

<llo_original>
// kernel: rnn_net_forward.1
$region0: #{rnn_net_forward.1}
  #allocation0 [shape = 'u32[]', space=smem, size = 0x4, offset = 0x4, fixed_abs, tag = 'smem constant byte address 0x4 - core index']
  #allocation1 [shape = 'u32[144,128]{1,0:T(1,128)}', space=vmem, size = 0x12000, scoped, tag = 'internal scratch']
  %s0 = inlined_call_operand.vmem [shape: f32[1,64,96], index: 0, kind: input, shape index: {}]
  %s1 = inlined_call_operand.hbm [shape: f32[96,128], index: 1, kind: input, shape index: {}]
  %s2 = inlined_call_operand.hbm [shape: f32[1,128], index: 2, kind: input, shape index: {}]
  %s3 = inlined_call_operand.hbm [shape: f32[128,128], index: 3, kind: input, shape index: {}]
  %s4 = inlined_call_operand.hbm [shape: f32[256,128], index: 4, kind: input, shape index: {}]
  %s5 = inlined_call_operand.hbm [shape: f32[1,128], index: 5, kind: input, shape index: {}]
  %s6 = inlined_call_operand.hbm [shape: f32[256,128], index: 6, kind: input, shape index: {}]
  %s7 = inlined_call_operand.hbm [shape: f32[1,128], index: 7, kind: input, shape index: {}]
  %s8 = inlined_call_operand.vmem [shape: f32[128,128], index: 8, kind: input, shape index: {}]
  %s9 = inlined_call_operand.vmem [shape: f32[1,128], index: 9, kind: input, shape index: {}]
  %s10 = inlined_call_operand.vmem [shape: f32[8,128], index: 10, kind: output, shape index: {}]
  %s11 = sld [smem:[#allocation0]]
  $region78: #{rnn_net_forward.1} parent=0
    _
  %s13 = ssub.s32 1, %s11
  %s14 = scalar_select 0, %s13, %s11
  $region1: #{rnn_net_forward.1} parent=0
    #allocation2 [shape = 'u8[49152]{0}', space=vmem, size = 0xc000, scoped, tag = 'input window, operand 1, single buffered']
    #allocation3 [shape = 's32[1]{0}', space=sflag, size = 0x4, scoped, tag = 'scoped memory for rnn_net_forward.1']
    #allocation4 [shape = 'u8[512]{0}', space=vmem, size = 0x400, scoped, tag = 'input window, operand 2, single buffered']
    #allocation5 [shape = 's32[1]{0}', space=sflag, size = 0x4, scoped, tag = 'scoped memory for rnn_net_forward.1']
    #allocation6 [shape = 'u8[65536]{0}', space=vmem, size = 0x10000, scoped, tag = 'input window, operand 3, single buffered']
    #allocation7 [shape = 'u8[131072]{0}', space=vmem, size = 0x20000, scoped, tag = 'input window, operand 4, single buffered']
    #allocation8 [shape = 's32[1]{0}', space=sflag, size = 0x4, scoped, tag = 'scoped memory for rnn_net_forward.1']
    #allocation9 [shape = 'u8[512]{0}', space=vmem, size = 0x400, scoped, tag = 'input window, operand 5, single buffered']
    #allocation10 [shape = 'u8[131072]{0}', space=vmem, size = 0x20000, scoped, tag = 'input window, operand 6, single buffered']
    #allocation11 [shape = 's32[1]{0}', space=sflag, size = 0x4, scoped, tag = 'scoped memory for rnn_net_forward.1']
    #allocation12 [shape = 'u8[512]{0}', space=vmem, size = 0x400, scoped, tag = 'input window, operand 7, single buffered']
    %15 = vsyncpa [#allocation3], 0
    %16 = vsyncpa [#allocation5], 0
    %17 = vsyncpa [#allocation8], 0
    %18 = vsyncpa [#allocation11], 0
    // Predicated region
    $region2: #{rnn_net_forward.1} parent=1 // pred_check
      _
    $region3: #{rnn_net_forward.1} parent=1 // pred_check_branch
      %20 = sbr.rel (0) target = $region5
    $region4: #{rnn_net_forward.1} parent=1 // pred_region
      _
    $region5: #{rnn_net_forward.1} parent=1 // pred_fallthru
      _
    // Predicated region
    $region6: #{rnn_net_forward.1} parent=1 // pred_check
      _
    $region7: #{rnn_net_forward.1} parent=1 // pred_check_branch
      %22 = sbr.rel (0) target = $region9
    $region8: #{rnn_net_forward.1} parent=1 // pred_region
      %s24 = ssub.s32 1536, 1536
      %25 = vsyncadd [#allocation3], %s24
      %s26 = sshll.u32 [#allocation2], 4
      %s27 = int_to_ptr.vmem [resolvable:$true] %s26
      %32 = dma.hbm_to_vmem [thread:$0]  %s1, 1536, %s27, [#allocation3], 128, 128, 8
    $region9: #{rnn_net_forward.1} parent=1 // pred_fallthru
      _
    // Predicated region
    $region10: #{rnn_net_forward.1} parent=1 // pred_check
      _
    $region11: #{rnn_net_forward.1} parent=1 // pred_check_branch
      %34 = sbr.rel (0) target = $region13
    $region12: #{rnn_net_forward.1} parent=1 // pred_region
      %s36 = ssub.s32 16, 16
      %37 = vsyncadd [#allocation5], %s36
      %s39 = sshll.u32 [#allocation4], 4
      %s40 = int_to_ptr.vmem [resolvable:$true] %s39
      %42 = dma.hbm_to_vmem [thread:$0]  %s2, 16, %s40, [#allocation5]
    $region13: #{rnn_net_forward.1} parent=1 // pred_fallthru
      _
    // Predicated region
    $region14: #{rnn_net_forward.1} parent=1 // pred_check
      _
    $region15: #{rnn_net_forward.1} parent=1 // pred_check_branch
      %44 = sbr.rel (0) target = $region17
    $region16: #{rnn_net_forward.1} parent=1 // pred_region
      %s46 = ssub.s32 2048, 2048
      %47 = vsyncadd [#allocation5], %s46
      %s48 = sshll.u32 [#allocation6], 4
      %s49 = int_to_ptr.vmem [resolvable:$true] %s48
      %54 = dma.hbm_to_vmem [thread:$0]  %s3, 2048, %s49, [#allocation5], 128, 128, 8
    $region17: #{rnn_net_forward.1} parent=1 // pred_fallthru
      _
    // Predicated region
    $region18: #{rnn_net_forward.1} parent=1 // pred_check
      _
    $region19: #{rnn_net_forward.1} parent=1 // pred_check_branch
      %56 = sbr.rel (0) target = $region21
    $region20: #{rnn_net_forward.1} parent=1 // pred_region
      %s58 = ssub.s32 4096, 4096
      %59 = vsyncadd [#allocation8], %s58
      %s60 = sshll.u32 [#allocation7], 4
      %s61 = int_to_ptr.vmem [resolvable:$true] %s60
      %66 = dma.hbm_to_vmem [thread:$0]  %s4, 4096, %s61, [#allocation8], 128, 128, 8
    $region21: #{rnn_net_forward.1} parent=1 // pred_fallthru
      _
    // Predicated region
    $region22: #{rnn_net_forward.1} parent=1 // pred_check
      _
    $region23: #{rnn_net_forward.1} parent=1 // pred_check_branch
      %68 = sbr.rel (0) target = $region25
    $region24: #{rnn_net_forward.1} parent=1 // pred_region
      %s70 = ssub.s32 16, 16
      %71 = vsyncadd [#allocation8], %s70
      %s73 = sshll.u32 [#allocation9], 4
      %s74 = int_to_ptr.vmem [resolvable:$true] %s73
      %76 = dma.hbm_to_vmem [thread:$0]  %s5, 16, %s74, [#allocation8]
    $region25: #{rnn_net_forward.1} parent=1 // pred_fallthru
      _
    // Predicated region
    $region26: #{rnn_net_forward.1} parent=1 // pred_check
      _
    $region27: #{rnn_net_forward.1} parent=1 // pred_check_branch
      %78 = sbr.rel (0) target = $region29
    $region28: #{rnn_net_forward.1} parent=1 // pred_region
      %s80 = ssub.s32 4096, 4096
      %81 = vsyncadd [#allocation11], %s80
      %s82 = sshll.u32 [#allocation10], 4
      %s83 = int_to_ptr.vmem [resolvable:$true] %s82
      %88 = dma.hbm_to_vmem [thread:$0]  %s6, 4096, %s83, [#allocation11], 128, 128, 8
    $region29: #{rnn_net_forward.1} parent=1 // pred_fallthru
      _
    // Predicated region
    $region30: #{rnn_net_forward.1} parent=1 // pred_check
      _
    $region31: #{rnn_net_forward.1} parent=1 // pred_check_branch
      %90 = sbr.rel (0) target = $region33
    $region32: #{rnn_net_forward.1} parent=1 // pred_region
      %s92 = ssub.s32 16, 16
      %93 = vsyncadd [#allocation11], %s92
      %s95 = sshll.u32 [#allocation12], 4
      %s96 = int_to_ptr.vmem [resolvable:$true] %s95
      %98 = dma.hbm_to_vmem [thread:$0]  %s7, 16, %s96, [#allocation11]
    $region33: #{rnn_net_forward.1} parent=1 // pred_fallthru
      _
    // Predicated region
    $region34: #{rnn_net_forward.1} parent=1 // pred_check
      _
    $region35: #{rnn_net_forward.1} parent=1 // pred_check_branch
      %100 = sbr.rel (0) target = $region37
    $region36: #{rnn_net_forward.1} parent=1 // pred_region
      _
    $region37: #{rnn_net_forward.1} parent=1 // pred_fallthru
      _
    // Predicated region
    $region38: #{rnn_net_forward.1} parent=1 // pred_check
      _
    $region39: #{rnn_net_forward.1} parent=1 // pred_check_branch
      %102 = sbr.rel (0) target = $region41
    $region40: #{rnn_net_forward.1} parent=1 // pred_region
      _
    $region41: #{rnn_net_forward.1} parent=1 // pred_fallthru
      _
    // Predicated region
    $region42: #{rnn_net_forward.1} parent=1 // pred_check
      _
    $region43: #{rnn_net_forward.1} parent=1 // pred_check_branch
      %104 = sbr.rel (0) target = $region45
    $region44: #{rnn_net_forward.1} parent=1 // pred_region
      %105 = dma.done [#allocation3], 1536
    $region45: #{rnn_net_forward.1} parent=1 // pred_fallthru
      _
    // Predicated region
    $region46: #{rnn_net_forward.1} parent=1 // pred_check
      _
    $region47: #{rnn_net_forward.1} parent=1 // pred_check_branch
      %107 = sbr.rel (0) target = $region49
    $region48: #{rnn_net_forward.1} parent=1 // pred_region
      %108 = dma.done [#allocation5], 16
    $region49: #{rnn_net_forward.1} parent=1 // pred_fallthru
      _
    // Predicated region
    $region50: #{rnn_net_forward.1} parent=1 // pred_check
      _
    $region51: #{rnn_net_forward.1} parent=1 // pred_check_branch
      %110 = sbr.rel (0) target = $region53
    $region52: #{rnn_net_forward.1} parent=1 // pred_region
      %111 = dma.done [#allocation5], 2048
    $region53: #{rnn_net_forward.1} parent=1 // pred_fallthru
      _
    // Predicated region
    $region54: #{rnn_net_forward.1} parent=1 // pred_check
      _
    $region55: #{rnn_net_forward.1} parent=1 // pred_check_branch
      %113 = sbr.rel (0) target = $region57
    $region56: #{rnn_net_forward.1} parent=1 // pred_region
      %114 = dma.done [#allocation8], 4096
    $region57: #{rnn_net_forward.1} parent=1 // pred_fallthru
      _
    // Predicated region
    $region58: #{rnn_net_forward.1} parent=1 // pred_check
      _
    $region59: #{rnn_net_forward.1} parent=1 // pred_check_branch
      %116 = sbr.rel (0) target = $region61
    $region60: #{rnn_net_forward.1} parent=1 // pred_region
      %117 = dma.done [#allocation8], 16
    $region61: #{rnn_net_forward.1} parent=1 // pred_fallthru
      _
    // Predicated region
    $region62: #{rnn_net_forward.1} parent=1 // pred_check
      _
    $region63: #{rnn_net_forward.1} parent=1 // pred_check_branch
      %119 = sbr.rel (0) target = $region65
    $region64: #{rnn_net_forward.1} parent=1 // pred_region
      %120 = dma.done [#allocation11], 4096
    $region65: #{rnn_net_forward.1} parent=1 // pred_fallthru
      _
    // Predicated region
    $region66: #{rnn_net_forward.1} parent=1 // pred_check
      _
    $region67: #{rnn_net_forward.1} parent=1 // pred_check_branch
      %122 = sbr.rel (0) target = $region69
    $region68: #{rnn_net_forward.1} parent=1 // pred_region
      %123 = dma.done [#allocation11], 16
    $region69: #{rnn_net_forward.1} parent=1 // pred_fallthru
      _
    %v124 = vld [vmem:[%s0] sm:$0xff]
    %v125 = vld [vmem:[#allocation2] sm:$0xff]
    %v126 = vld [vmem:[#allocation2 + $0x8] sm:$0xff]
    %v127 = vld [vmem:[#allocation2 + $0x10] sm:$0xff]
    %v128 = vld [vmem:[#allocation2 + $0x18] sm:$0xff]
    %v129 = vld [vmem:[#allocation2 + $0x20] sm:$0xff]
    %v130 = vld [vmem:[#allocation2 + $0x28] sm:$0xff]
    %v131 = vld [vmem:[#allocation2 + $0x30] sm:$0xff]
    %v132 = vld [vmem:[#allocation2 + $0x38] sm:$0xff]
    %v133 = vld [vmem:[#allocation2 + $0x40] sm:$0xff]
    %v134 = vld [vmem:[#allocation2 + $0x48] sm:$0xff]
    %v135 = vld [vmem:[#allocation2 + $0x50] sm:$0xff]
    %v136 = vld [vmem:[#allocation2 + $0x58] sm:$0xff]
    %v137 = vld [vmem:[#allocation4] sm:$0x1]
    %v139 = vlaneseq
    %v140 = vshrl.u32 %v139, 7
    %v141 = vsub.s32 0, %v140
    %v142 = vrot.slane %v137, %v141
    %vm144 = vcmask 785408
    %v146 = vsel %vm144, %v124, 0
    %148 = vmatprep.subr.mxu0 0.0
    %149 = vmatpush1.msra.mxu0 0.0
    %150 = vmatprep.subr.mxu0 0.0
    %151 = vmatpush1.msra.mxu0 0.0
    %152 = vmatprep.subr.mxu0 0.0
    %153 = vmatpush1.msra.mxu0 0.0
    %154 = vmatprep.subr.mxu0 0.0
    %155 = vmatpush1.msra.mxu0 0.0
    %156 = vmatprep.subr.mxu0 0.0
    %157 = vmatpush1.msra.mxu0 %v136
    %158 = vmatprep.subr.mxu0 0.0
    %159 = vmatpush1.msra.mxu0 %v135
    %160 = vmatprep.subr.mxu0 0.0
    %161 = vmatpush1.msra.mxu0 %v134
    %162 = vmatprep.subr.mxu0 0.0
    %163 = vmatpush1.msra.mxu0 %v133
    %164 = vmatprep.subr.mxu0 0.0
    %165 = vmatpush1.msra.mxu0 %v132
    %166 = vmatprep.subr.mxu0 0.0
    %167 = vmatpush1.msra.mxu0 %v131
    %168 = vmatprep.subr.mxu0 0.0
    %169 = vmatpush1.msra.mxu0 %v130
    %170 = vmatprep.subr.mxu0 0.0
    %171 = vmatpush1.msra.mxu0 %v129
    %172 = vmatprep.subr.mxu0 0.0
    %173 = vmatpush1.msra.mxu0 %v128
    %174 = vmatprep.subr.mxu0 0.0
    %175 = vmatpush1.msra.mxu0 %v127
    %176 = vmatprep.subr.mxu0 0.0
    %177 = vmatpush1.msra.mxu0 %v126
    %178 = vmatprep.subr.mxu0 0.0
    %179 = vmatpush1.msra.mxu0 %v125
    %180 = vmatprep.subr.mxu0 0.0
    %181 = vmatpush2.msra.mxu0 0.0
    %182 = vmatprep.subr.mxu0 0.0
    %183 = vmatpush2.msra.mxu0 0.0
    %184 = vmatprep.subr.mxu0 0.0
    %185 = vmatpush2.msra.mxu0 0.0
    %186 = vmatprep.subr.mxu0 0.0
    %187 = vmatpush2.msra.mxu0 0.0
    %188 = vmatprep.subr.mxu0 0.0
    %189 = vmatpush2.msra.mxu0 0.0
    %190 = vmatprep.subr.mxu0 0.0
    %191 = vmatpush2.msra.mxu0 0.0
    %192 = vmatprep.subr.mxu0 0.0
    %193 = vmatpush2.msra.mxu0 0.0
    %194 = vmatprep.subr.mxu0 0.0
    %195 = vmatpush2.msra.mxu0 0.0
    %196 = vmatprep.subr.mxu0 0.0
    %197 = vmatpush2.msra.mxu0 0.0
    %198 = vmatprep.subr.mxu0 0.0
    %199 = vmatpush2.msra.mxu0 0.0
    %200 = vmatprep.subr.mxu0 0.0
    %201 = vmatpush2.msra.mxu0 0.0
    %202 = vmatprep.subr.mxu0 0.0
    %203 = vmatpush2.msra.mxu0 0.0
    %204 = vmatprep.subr.mxu0 0.0
    %205 = vmatpush2.msra.mxu0 0.0
    %206 = vmatprep.subr.mxu0 0.0
    %207 = vmatpush2.msra.mxu0 0.0
    %208 = vmatprep.subr.mxu0 0.0
    %209 = vmatpush2.msra.mxu0 0.0
    %210 = vmatprep.subr.mxu0 0.0
    %211 = vmatpush2.msra.mxu0 0.0
    %212 = vmatprep.mubr.f32.mxu0 0.0
    %213 = vmatmul.mubr.f32.gmra.mxu0 %v146
    %v214 = vpop.f32.mrf.mxu0
    %v215 = vadd.f32 %v142, %v214
    %v216 = vpop.f32.mrf.mxu0
    %217 = vdwg.mxu0
    %s218 = scalar_lea.vmem %s0, 8
    %v219 = vld [vmem:[%s218] sm:$0xff]
    %v221 = vsel %vm144, %v219, 0
    %223 = vmatprep.subr.mxu0 0.0
    %224 = vmatpush1.msra.mxu0 0.0
    %225 = vmatprep.subr.mxu0 0.0
    %226 = vmatpush1.msra.mxu0 0.0
    %227 = vmatprep.subr.mxu0 0.0
    %228 = vmatpush1.msra.mxu0 0.0
    %229 = vmatprep.subr.mxu0 0.0
    %230 = vmatpush1.msra.mxu0 0.0
    %231 = vmatprep.subr.mxu0 0.0
    %232 = vmatpush1.msra.mxu0 %v136
    %233 = vmatprep.subr.mxu0 0.0
    %234 = vmatpush1.msra.mxu0 %v135
    %235 = vmatprep.subr.mxu0 0.0
    %236 = vmatpush1.msra.mxu0 %v134
    %237 = vmatprep.subr.mxu0 0.0
    %238 = vmatpush1.msra.mxu0 %v133
    %239 = vmatprep.subr.mxu0 0.0
    %240 = vmatpush1.msra.mxu0 %v132
    %241 = vmatprep.subr.mxu0 0.0
    %242 = vmatpush1.msra.mxu0 %v131
    %243 = vmatprep.subr.mxu0 0.0
    %244 = vmatpush1.msra.mxu0 %v130
    %245 = vmatprep.subr.mxu0 0.0
    %246 = vmatpush1.msra.mxu0 %v129
    %247 = vmatprep.subr.mxu0 0.0
    %248 = vmatpush1.msra.mxu0 %v128
    %249 = vmatprep.subr.mxu0 0.0
    %250 = vmatpush1.msra.mxu0 %v127
    %251 = vmatprep.subr.mxu0 0.0
    %252 = vmatpush1.msra.mxu0 %v126
    %253 = vmatprep.subr.mxu0 0.0
    %254 = vmatpush1.msra.mxu0 %v125
    %255 = vmatprep.subr.mxu0 0.0
    %256 = vmatpush2.msra.mxu0 0.0
    %257 = vmatprep.subr.mxu0 0.0
    %258 = vmatpush2.msra.mxu0 0.0
    %259 = vmatprep.subr.mxu0 0.0
    %260 = vmatpush2.msra.mxu0 0.0
    %261 = vmatprep.subr.mxu0 0.0
    %262 = vmatpush2.msra.mxu0 0.0
    %263 = vmatprep.subr.mxu0 0.0
    %264 = vmatpush2.msra.mxu0 0.0
    %265 = vmatprep.subr.mxu0 0.0
    %266 = vmatpush2.msra.mxu0 0.0
    %267 = vmatprep.subr.mxu0 0.0
    %268 = vmatpush2.msra.mxu0 0.0
    %269 = vmatprep.subr.mxu0 0.0
    %270 = vmatpush2.msra.mxu0 0.0
    %271 = vmatprep.subr.mxu0 0.0
    %272 = vmatpush2.msra.mxu0 0.0
    %273 = vmatprep.subr.mxu0 0.0
    %274 = vmatpush2.msra.mxu0 0.0
    %275 = vmatprep.subr.mxu0 0.0
    %276 = vmatpush2.msra.mxu0 0.0
    %277 = vmatprep.subr.mxu0 0.0
    %278 = vmatpush2.msra.mxu0 0.0
    %279 = vmatprep.subr.mxu0 0.0
    %280 = vmatpush2.msra.mxu0 0.0
    %281 = vmatprep.subr.mxu0 0.0
    %282 = vmatpush2.msra.mxu0 0.0
    %283 = vmatprep.subr.mxu0 0.0
    %284 = vmatpush2.msra.mxu0 0.0
    %285 = vmatprep.subr.mxu0 0.0
    %286 = vmatpush2.msra.mxu0 0.0
    %287 = vmatprep.mubr.f32.mxu0 0.0
    %288 = vmatmul.mubr.f32.gmra.mxu0 %v221
    %v289 = vpop.f32.mrf.mxu0
    %v290 = vadd.f32 %v142, %v289
    %v291 = vpop.f32.mrf.mxu0
    %292 = vdwg.mxu0
    %v293 = vld [vmem:[#allocation6] sm:$0xff]
    %v294 = vld [vmem:[#allocation6 + $0x8] sm:$0xff]
    %v295 = vld [vmem:[#allocation6 + $0x10] sm:$0xff]
    %v296 = vld [vmem:[#allocation6 + $0x18] sm:$0xff]
    %v297 = vld [vmem:[#allocation6 + $0x20] sm:$0xff]
    %v298 = vld [vmem:[#allocation6 + $0x28] sm:$0xff]
    %v299 = vld [vmem:[#allocation6 + $0x30] sm:$0xff]
    %v300 = vld [vmem:[#allocation6 + $0x38] sm:$0xff]
    %v301 = vld [vmem:[#allocation6 + $0x40] sm:$0xff]
    %v302 = vld [vmem:[#allocation6 + $0x48] sm:$0xff]
    %v303 = vld [vmem:[#allocation6 + $0x50] sm:$0xff]
    %v304 = vld [vmem:[#allocation6 + $0x58] sm:$0xff]
    %v305 = vld [vmem:[#allocation6 + $0x60] sm:$0xff]
    %v306 = vld [vmem:[#allocation6 + $0x68] sm:$0xff]
    %v307 = vld [vmem:[#allocation6 + $0x70] sm:$0xff]
    %v308 = vld [vmem:[#allocation6 + $0x78] sm:$0xff]
    %309 = vmatprep.subr.mxu0 0.0
    %310 = vmatpush1.msra.mxu0 %v308
    %311 = vmatprep.subr.mxu0 0.0
    %312 = vmatpush1.msra.mxu0 %v307
    %313 = vmatprep.subr.mxu0 0.0
    %314 = vmatpush1.msra.mxu0 %v306
    %315 = vmatprep.subr.mxu0 0.0
    %316 = vmatpush1.msra.mxu0 %v305
    %317 = vmatprep.subr.mxu0 0.0
    %318 = vmatpush1.msra.mxu0 %v304
    %319 = vmatprep.subr.mxu0 0.0
    %320 = vmatpush1.msra.mxu0 %v303
    %321 = vmatprep.subr.mxu0 0.0
    %322 = vmatpush1.msra.mxu0 %v302
    %323 = vmatprep.subr.mxu0 0.0
    %324 = vmatpush1.msra.mxu0 %v301
    %325 = vmatprep.subr.mxu0 0.0
    %326 = vmatpush1.msra.mxu0 %v300
    %327 = vmatprep.subr.mxu0 0.0
    %328 = vmatpush1.msra.mxu0 %v299
    %329 = vmatprep.subr.mxu0 0.0
    %330 = vmatpush1.msra.mxu0 %v298
    %331 = vmatprep.subr.mxu0 0.0
    %332 = vmatpush1.msra.mxu0 %v297
    %333 = vmatprep.subr.mxu0 0.0
    %334 = vmatpush1.msra.mxu0 %v296
    %335 = vmatprep.subr.mxu0 0.0
    %336 = vmatpush1.msra.mxu0 %v295
    %337 = vmatprep.subr.mxu0 0.0
    %338 = vmatpush1.msra.mxu0 %v294
    %339 = vmatprep.subr.mxu0 0.0
    %340 = vmatpush1.msra.mxu0 %v293
    %341 = vmatprep.subr.mxu0 0.0
    %342 = vmatpush2.msra.mxu0 0.0
    %343 = vmatprep.subr.mxu0 0.0
    %344 = vmatpush2.msra.mxu0 0.0
    %345 = vmatprep.subr.mxu0 0.0
    %346 = vmatpush2.msra.mxu0 0.0
    %347 = vmatprep.subr.mxu0 0.0
    %348 = vmatpush2.msra.mxu0 0.0
    %349 = vmatprep.subr.mxu0 0.0
    %350 = vmatpush2.msra.mxu0 0.0
    %351 = vmatprep.subr.mxu0 0.0
    %352 = vmatpush2.msra.mxu0 0.0
    %353 = vmatprep.subr.mxu0 0.0
    %354 = vmatpush2.msra.mxu0 0.0
    %355 = vmatprep.subr.mxu0 0.0
    %356 = vmatpush2.msra.mxu0 0.0
    %357 = vmatprep.subr.mxu0 0.0
    %358 = vmatpush2.msra.mxu0 0.0
    %359 = vmatprep.subr.mxu0 0.0
    %360 = vmatpush2.msra.mxu0 0.0
    %361 = vmatprep.subr.mxu0 0.0
    %362 = vmatpush2.msra.mxu0 0.0
    %363 = vmatprep.subr.mxu0 0.0
    %364 = vmatpush2.msra.mxu0 0.0
    %365 = vmatprep.subr.mxu0 0.0
    %366 = vmatpush2.msra.mxu0 0.0
    %367 = vmatprep.subr.mxu0 0.0
    %368 = vmatpush2.msra.mxu0 0.0
    %369 = vmatprep.subr.mxu0 0.0
    %370 = vmatpush2.msra.mxu0 0.0
    %371 = vmatprep.subr.mxu0 0.0
    %372 = vmatpush2.msra.mxu0 0.0
    %373 = vmatprep.mubr.f32.mxu0 0.0
    %374 = vmatmul.mubr.f32.gmra.mxu0 0.0
    %v375 = vpop.f32.mrf.mxu0
    %v376 = vadd.f32 0.0, %v375
    %v377 = vpop.f32.mrf.mxu0
    %378 = vdwg.mxu0
    %v379 = vadd.f32 %v215, %v376
    %v380 = vmax.f32 %v379, 0.0
    %v381 = vld [vmem:[#allocation7] sm:$0xff]
    %v382 = vld [vmem:[#allocation7 + $0x8] sm:$0xff]
    %v383 = vld [vmem:[#allocation7 + $0x10] sm:$0xff]
    %v384 = vld [vmem:[#allocation7 + $0x18] sm:$0xff]
    %v385 = vld [vmem:[#allocation7 + $0x20] sm:$0xff]
    %v386 = vld [vmem:[#allocation7 + $0x28] sm:$0xff]
    %v387 = vld [vmem:[#allocation7 + $0x30] sm:$0xff]
    %v388 = vld [vmem:[#allocation7 + $0x38] sm:$0xff]
    %v389 = vld [vmem:[#allocation7 + $0x40] sm:$0xff]
    %v390 = vld [vmem:[#allocation7 + $0x48] sm:$0xff]
    %v391 = vld [vmem:[#allocation7 + $0x50] sm:$0xff]
    %v392 = vld [vmem:[#allocation7 + $0x58] sm:$0xff]
    %v393 = vld [vmem:[#allocation7 + $0x60] sm:$0xff]
    %v394 = vld [vmem:[#allocation7 + $0x68] sm:$0xff]
    %v395 = vld [vmem:[#allocation7 + $0x70] sm:$0xff]
    %v396 = vld [vmem:[#allocation7 + $0x78] sm:$0xff]
    %v397 = vld [vmem:[#allocation7 + $0x80] sm:$0xff]
    %v398 = vld [vmem:[#allocation7 + $0x88] sm:$0xff]
    %v399 = vld [vmem:[#allocation7 + $0x90] sm:$0xff]
    %v400 = vld [vmem:[#allocation7 + $0x98] sm:$0xff]
    %v401 = vld [vmem:[#allocation7 + $0xa0] sm:$0xff]
    %v402 = vld [vmem:[#allocation7 + $0xa8] sm:$0xff]
    %v403 = vld [vmem:[#allocation7 + $0xb0] sm:$0xff]
    %v404 = vld [vmem:[#allocation7 + $0xb8] sm:$0xff]
    %v405 = vld [vmem:[#allocation7 + $0xc0] sm:$0xff]
    %v406 = vld [vmem:[#allocation7 + $0xc8] sm:$0xff]
    %v407 = vld [vmem:[#allocation7 + $0xd0] sm:$0xff]
    %v408 = vld [vmem:[#allocation7 + $0xd8] sm:$0xff]
    %v409 = vld [vmem:[#allocation7 + $0xe0] sm:$0xff]
    %v410 = vld [vmem:[#allocation7 + $0xe8] sm:$0xff]
    %v411 = vld [vmem:[#allocation7 + $0xf0] sm:$0xff]
    %v412 = vld [vmem:[#allocation7 + $0xf8] sm:$0xff]
    %v413 = vld [vmem:[#allocation9] sm:$0x1]
    %v415 = vlaneseq
    %v416 = vshrl.u32 %v415, 7
    %v417 = vsub.s32 0, %v416
    %v418 = vrot.slane %v413, %v417
    %420 = vmatprep.subr.mxu0 0.0
    %421 = vmatpush1.msra.mxu0 %v396
    %422 = vmatprep.subr.mxu0 0.0
    %423 = vmatpush1.msra.mxu0 %v395
    %424 = vmatprep.subr.mxu0 0.0
    %425 = vmatpush1.msra.mxu0 %v394
    %426 = vmatprep.subr.mxu0 0.0
    %427 = vmatpush1.msra.mxu0 %v393
    %428 = vmatprep.subr.mxu0 0.0
    %429 = vmatpush1.msra.mxu0 %v392
    %430 = vmatprep.subr.mxu0 0.0
    %431 = vmatpush1.msra.mxu0 %v391
    %432 = vmatprep.subr.mxu0 0.0
    %433 = vmatpush1.msra.mxu0 %v390
    %434 = vmatprep.subr.mxu0 0.0
    %435 = vmatpush1.msra.mxu0 %v389
    %436 = vmatprep.subr.mxu0 0.0
    %437 = vmatpush1.msra.mxu0 %v388
    %438 = vmatprep.subr.mxu0 0.0
    %439 = vmatpush1.msra.mxu0 %v387
    %440 = vmatprep.subr.mxu0 0.0
    %441 = vmatpush1.msra.mxu0 %v386
    %442 = vmatprep.subr.mxu0 0.0
    %443 = vmatpush1.msra.mxu0 %v385
    %444 = vmatprep.subr.mxu0 0.0
    %445 = vmatpush1.msra.mxu0 %v384
    %446 = vmatprep.subr.mxu0 0.0
    %447 = vmatpush1.msra.mxu0 %v383
    %448 = vmatprep.subr.mxu0 0.0
    %449 = vmatpush1.msra.mxu0 %v382
    %450 = vmatprep.subr.mxu0 0.0
    %451 = vmatpush1.msra.mxu0 %v381
    %452 = vmatprep.subr.mxu0 0.0
    %453 = vmatpush2.msra.mxu0 %v412
    %454 = vmatprep.subr.mxu0 0.0
    %455 = vmatpush2.msra.mxu0 %v411
    %456 = vmatprep.subr.mxu0 0.0
    %457 = vmatpush2.msra.mxu0 %v410
    %458 = vmatprep.subr.mxu0 0.0
    %459 = vmatpush2.msra.mxu0 %v409
    %460 = vmatprep.subr.mxu0 0.0
    %461 = vmatpush2.msra.mxu0 %v408
    %462 = vmatprep.subr.mxu0 0.0
    %463 = vmatpush2.msra.mxu0 %v407
    %464 = vmatprep.subr.mxu0 0.0
    %465 = vmatpush2.msra.mxu0 %v406
    %466 = vmatprep.subr.mxu0 0.0
    %467 = vmatpush2.msra.mxu0 %v405
    %468 = vmatprep.subr.mxu0 0.0
    %469 = vmatpush2.msra.mxu0 %v404
    %470 = vmatprep.subr.mxu0 0.0
    %471 = vmatpush2.msra.mxu0 %v403
    %472 = vmatprep.subr.mxu0 0.0
    %473 = vmatpush2.msra.mxu0 %v402
    %474 = vmatprep.subr.mxu0 0.0
    %475 = vmatpush2.msra.mxu0 %v401
    %476 = vmatprep.subr.mxu0 0.0
    %477 = vmatpush2.msra.mxu0 %v400
    %478 = vmatprep.subr.mxu0 0.0
    %479 = vmatpush2.msra.mxu0 %v399
    %480 = vmatprep.subr.mxu0 0.0
    %481 = vmatpush2.msra.mxu0 %v398
    %482 = vmatprep.subr.mxu0 0.0
    %483 = vmatpush2.msra.mxu0 %v397
    %484 = vmatprep.mubr.f32.mxu0 0.0
    %485 = vmatmul.mubr.f32.gmra.mxu0 %v380
    %v486 = vpop.f32.mrf.mxu0
    %v487 = vadd.f32 %v418, %v486
    %v488 = vpop.f32.mrf.mxu0
    %489 = vdwg.mxu0
    %v490 = vmax.f32 %v487, 0.0
    %v491 = vld [vmem:[#allocation10] sm:$0xff]
    %v492 = vld [vmem:[#allocation10 + $0x8] sm:$0xff]
    %v493 = vld [vmem:[#allocation10 + $0x10] sm:$0xff]
    %v494 = vld [vmem:[#allocation10 + $0x18] sm:$0xff]
    %v495 = vld [vmem:[#allocation10 + $0x20] sm:$0xff]
    %v496 = vld [vmem:[#allocation10 + $0x28] sm:$0xff]
    %v497 = vld [vmem:[#allocation10 + $0x30] sm:$0xff]
    %v498 = vld [vmem:[#allocation10 + $0x38] sm:$0xff]
    %v499 = vld [vmem:[#allocation10 + $0x40] sm:$0xff]
    %v500 = vld [vmem:[#allocation10 + $0x48] sm:$0xff]
    %v501 = vld [vmem:[#allocation10 + $0x50] sm:$0xff]
    %v502 = vld [vmem:[#allocation10 + $0x58] sm:$0xff]
    %v503 = vld [vmem:[#allocation10 + $0x60] sm:$0xff]
    %v504 = vld [vmem:[#allocation10 + $0x68] sm:$0xff]
    %v505 = vld [vmem:[#allocation10 + $0x70] sm:$0xff]
    %v506 = vld [vmem:[#allocation10 + $0x78] sm:$0xff]
    %v507 = vld [vmem:[#allocation10 + $0x80] sm:$0xff]
    %v508 = vld [vmem:[#allocation10 + $0x88] sm:$0xff]
    %v509 = vld [vmem:[#allocation10 + $0x90] sm:$0xff]
    %v510 = vld [vmem:[#allocation10 + $0x98] sm:$0xff]
    %v511 = vld [vmem:[#allocation10 + $0xa0] sm:$0xff]
    %v512 = vld [vmem:[#allocation10 + $0xa8] sm:$0xff]
    %v513 = vld [vmem:[#allocation10 + $0xb0] sm:$0xff]
    %v514 = vld [vmem:[#allocation10 + $0xb8] sm:$0xff]
    %v515 = vld [vmem:[#allocation10 + $0xc0] sm:$0xff]
    %v516 = vld [vmem:[#allocation10 + $0xc8] sm:$0xff]
    %v517 = vld [vmem:[#allocation10 + $0xd0] sm:$0xff]
    %v518 = vld [vmem:[#allocation10 + $0xd8] sm:$0xff]
    %v519 = vld [vmem:[#allocation10 + $0xe0] sm:$0xff]
    %v520 = vld [vmem:[#allocation10 + $0xe8] sm:$0xff]
    %v521 = vld [vmem:[#allocation10 + $0xf0] sm:$0xff]
    %v522 = vld [vmem:[#allocation10 + $0xf8] sm:$0xff]
    %v523 = vld [vmem:[#allocation12] sm:$0x1]
    %v525 = vlaneseq
    %v526 = vshrl.u32 %v525, 7
    %v527 = vsub.s32 0, %v526
    %v528 = vrot.slane %v523, %v527
    %530 = vmatprep.subr.mxu0 0.0
    %531 = vmatpush1.msra.mxu0 %v506
    %532 = vmatprep.subr.mxu0 0.0
    %533 = vmatpush1.msra.mxu0 %v505
    %534 = vmatprep.subr.mxu0 0.0
    %535 = vmatpush1.msra.mxu0 %v504
    %536 = vmatprep.subr.mxu0 0.0
    %537 = vmatpush1.msra.mxu0 %v503
    %538 = vmatprep.subr.mxu0 0.0
    %539 = vmatpush1.msra.mxu0 %v502
    %540 = vmatprep.subr.mxu0 0.0
    %541 = vmatpush1.msra.mxu0 %v501
    %542 = vmatprep.subr.mxu0 0.0
    %543 = vmatpush1.msra.mxu0 %v500
    %544 = vmatprep.subr.mxu0 0.0
    %545 = vmatpush1.msra.mxu0 %v499
    %546 = vmatprep.subr.mxu0 0.0
    %547 = vmatpush1.msra.mxu0 %v498
    %548 = vmatprep.subr.mxu0 0.0
    %549 = vmatpush1.msra.mxu0 %v497
    %550 = vmatprep.subr.mxu0 0.0
    %551 = vmatpush1.msra.mxu0 %v496
    %552 = vmatprep.subr.mxu0 0.0
    %553 = vmatpush1.msra.mxu0 %v495
    %554 = vmatprep.subr.mxu0 0.0
    %555 = vmatpush1.msra.mxu0 %v494
    %556 = vmatprep.subr.mxu0 0.0
    %557 = vmatpush1.msra.mxu0 %v493
    %558 = vmatprep.subr.mxu0 0.0
    %559 = vmatpush1.msra.mxu0 %v492
    %560 = vmatprep.subr.mxu0 0.0
    %561 = vmatpush1.msra.mxu0 %v491
    %562 = vmatprep.subr.mxu0 0.0
    %563 = vmatpush2.msra.mxu0 %v522
    %564 = vmatprep.subr.mxu0 0.0
    %565 = vmatpush2.msra.mxu0 %v521
    %566 = vmatprep.subr.mxu0 0.0
    %567 = vmatpush2.msra.mxu0 %v520
    %568 = vmatprep.subr.mxu0 0.0
    %569 = vmatpush2.msra.mxu0 %v519
    %570 = vmatprep.subr.mxu0 0.0
    %571 = vmatpush2.msra.mxu0 %v518
    %572 = vmatprep.subr.mxu0 0.0
    %573 = vmatpush2.msra.mxu0 %v517
    %574 = vmatprep.subr.mxu0 0.0
    %575 = vmatpush2.msra.mxu0 %v516
    %576 = vmatprep.subr.mxu0 0.0
    %577 = vmatpush2.msra.mxu0 %v515
    %578 = vmatprep.subr.mxu0 0.0
    %579 = vmatpush2.msra.mxu0 %v514
    %580 = vmatprep.subr.mxu0 0.0
    %581 = vmatpush2.msra.mxu0 %v513
    %582 = vmatprep.subr.mxu0 0.0
    %583 = vmatpush2.msra.mxu0 %v512
    %584 = vmatprep.subr.mxu0 0.0
    %585 = vmatpush2.msra.mxu0 %v511
    %586 = vmatprep.subr.mxu0 0.0
    %587 = vmatpush2.msra.mxu0 %v510
    %588 = vmatprep.subr.mxu0 0.0
    %589 = vmatpush2.msra.mxu0 %v509
    %590 = vmatprep.subr.mxu0 0.0
    %591 = vmatpush2.msra.mxu0 %v508
    %592 = vmatprep.subr.mxu0 0.0
    %593 = vmatpush2.msra.mxu0 %v507
    %594 = vmatprep.mubr.f32.mxu0 0.0
    %595 = vmatmul.mubr.f32.gmra.mxu0 %v490
    %v596 = vpop.f32.mrf.mxu0
    %v597 = vadd.f32 %v528, %v596
    %v598 = vpop.f32.mrf.mxu0
    %599 = vdwg.mxu0
    %v600 = vmax.f32 %v597, 0.0
    %s601 = scalar_lea.vmem %s0, 16
    %v602 = vld [vmem:[%s601] sm:$0xff]
    %v604 = vsel %vm144, %v602, 0
    %606 = vmatprep.subr.mxu0 0.0
    %607 = vmatpush1.msra.mxu0 0.0
    %608 = vmatprep.subr.mxu0 0.0
    %609 = vmatpush1.msra.mxu0 0.0
    %610 = vmatprep.subr.mxu0 0.0
    %611 = vmatpush1.msra.mxu0 0.0
    %612 = vmatprep.subr.mxu0 0.0
    %613 = vmatpush1.msra.mxu0 0.0
    %614 = vmatprep.subr.mxu0 0.0
    %615 = vmatpush1.msra.mxu0 %v136
    %616 = vmatprep.subr.mxu0 0.0
    %617 = vmatpush1.msra.mxu0 %v135
    %618 = vmatprep.subr.mxu0 0.0
    %619 = vmatpush1.msra.mxu0 %v134
    %620 = vmatprep.subr.mxu0 0.0
    %621 = vmatpush1.msra.mxu0 %v133
    %622 = vmatprep.subr.mxu0 0.0
    %623 = vmatpush1.msra.mxu0 %v132
    %624 = vmatprep.subr.mxu0 0.0
    %625 = vmatpush1.msra.mxu0 %v131
    %626 = vmatprep.subr.mxu0 0.0
    %627 = vmatpush1.msra.mxu0 %v130
    %628 = vmatprep.subr.mxu0 0.0
    %629 = vmatpush1.msra.mxu0 %v129
    %630 = vmatprep.subr.mxu0 0.0
    %631 = vmatpush1.msra.mxu0 %v128
    %632 = vmatprep.subr.mxu0 0.0
    %633 = vmatpush1.msra.mxu0 %v127
    %634 = vmatprep.subr.mxu0 0.0
    %635 = vmatpush1.msra.mxu0 %v126
    %636 = vmatprep.subr.mxu0 0.0
    %637 = vmatpush1.msra.mxu0 %v125
    %638 = vmatprep.subr.mxu0 0.0
    %639 = vmatpush2.msra.mxu0 0.0
    %640 = vmatprep.subr.mxu0 0.0
    %641 = vmatpush2.msra.mxu0 0.0
    %642 = vmatprep.subr.mxu0 0.0
    %643 = vmatpush2.msra.mxu0 0.0
    %644 = vmatprep.subr.mxu0 0.0
    %645 = vmatpush2.msra.mxu0 0.0
    %646 = vmatprep.subr.mxu0 0.0
    %647 = vmatpush2.msra.mxu0 0.0
    %648 = vmatprep.subr.mxu0 0.0
    %649 = vmatpush2.msra.mxu0 0.0
    %650 = vmatprep.subr.mxu0 0.0
    %651 = vmatpush2.msra.mxu0 0.0
    %652 = vmatprep.subr.mxu0 0.0
    %653 = vmatpush2.msra.mxu0 0.0
    %654 = vmatprep.subr.mxu0 0.0
    %655 = vmatpush2.msra.mxu0 0.0
    %656 = vmatprep.subr.mxu0 0.0
    %657 = vmatpush2.msra.mxu0 0.0
    %658 = vmatprep.subr.mxu0 0.0
    %659 = vmatpush2.msra.mxu0 0.0
    %660 = vmatprep.subr.mxu0 0.0
    %661 = vmatpush2.msra.mxu0 0.0
    %662 = vmatprep.subr.mxu0 0.0
    %663 = vmatpush2.msra.mxu0 0.0
    %664 = vmatprep.subr.mxu0 0.0
    %665 = vmatpush2.msra.mxu0 0.0
    %666 = vmatprep.subr.mxu0 0.0
    %667 = vmatpush2.msra.mxu0 0.0
    %668 = vmatprep.subr.mxu0 0.0
    %669 = vmatpush2.msra.mxu0 0.0
    %670 = vmatprep.mubr.f32.mxu0 0.0
    %671 = vmatmul.mubr.f32.gmra.mxu0 %v604
    %v672 = vpop.f32.mrf.mxu0
    %v673 = vadd.f32 %v142, %v672
    %v674 = vpop.f32.mrf.mxu0
    %675 = vdwg.mxu0
    %676 = vmatprep.subr.mxu0 0.0
    %677 = vmatpush1.msra.mxu0 %v308
    %678 = vmatprep.subr.mxu0 0.0
    %679 = vmatpush1.msra.mxu0 %v307
    %680 = vmatprep.subr.mxu0 0.0
    %681 = vmatpush1.msra.mxu0 %v306
    %682 = vmatprep.subr.mxu0 0.0
    %683 = vmatpush1.msra.mxu0 %v305
    %684 = vmatprep.subr.mxu0 0.0
    %685 = vmatpush1.msra.mxu0 %v304
    %686 = vmatprep.subr.mxu0 0.0
    %687 = vmatpush1.msra.mxu0 %v303
    %688 = vmatprep.subr.mxu0 0.0
    %689 = vmatpush1.msra.mxu0 %v302
    %690 = vmatprep.subr.mxu0 0.0
    %691 = vmatpush1.msra.mxu0 %v301
    %692 = vmatprep.subr.mxu0 0.0
    %693 = vmatpush1.msra.mxu0 %v300
    %694 = vmatprep.subr.mxu0 0.0
    %695 = vmatpush1.msra.mxu0 %v299
    %696 = vmatprep.subr.mxu0 0.0
    %697 = vmatpush1.msra.mxu0 %v298
    %698 = vmatprep.subr.mxu0 0.0
    %699 = vmatpush1.msra.mxu0 %v297
    %700 = vmatprep.subr.mxu0 0.0
    %701 = vmatpush1.msra.mxu0 %v296
    %702 = vmatprep.subr.mxu0 0.0
    %703 = vmatpush1.msra.mxu0 %v295
    %704 = vmatprep.subr.mxu0 0.0
    %705 = vmatpush1.msra.mxu0 %v294
    %706 = vmatprep.subr.mxu0 0.0
    %707 = vmatpush1.msra.mxu0 %v293
    %708 = vmatprep.subr.mxu0 0.0
    %709 = vmatpush2.msra.mxu0 0.0
    %710 = vmatprep.subr.mxu0 0.0
    %711 = vmatpush2.msra.mxu0 0.0
    %712 = vmatprep.subr.mxu0 0.0
    %713 = vmatpush2.msra.mxu0 0.0
    %714 = vmatprep.subr.mxu0 0.0
    %715 = vmatpush2.msra.mxu0 0.0
    %716 = vmatprep.subr.mxu0 0.0
    %717 = vmatpush2.msra.mxu0 0.0
    %718 = vmatprep.subr.mxu0 0.0
    %719 = vmatpush2.msra.mxu0 0.0
    %720 = vmatprep.subr.mxu0 0.0
    %721 = vmatpush2.msra.mxu0 0.0
    %722 = vmatprep.subr.mxu0 0.0
    %723 = vmatpush2.msra.mxu0 0.0
    %724 = vmatprep.subr.mxu0 0.0
    %725 = vmatpush2.msra.mxu0 0.0
    %726 = vmatprep.subr.mxu0 0.0
    %727 = vmatpush2.msra.mxu0 0.0
    %728 = vmatprep.subr.mxu0 0.0
    %729 = vmatpush2.msra.mxu0 0.0
    %730 = vmatprep.subr.mxu0 0.0
    %731 = vmatpush2.msra.mxu0 0.0
    %732 = vmatprep.subr.mxu0 0.0
    %733 = vmatpush2.msra.mxu0 0.0
    %734 = vmatprep.subr.mxu0 0.0
    %735 = vmatpush2.msra.mxu0 0.0
    %736 = vmatprep.subr.mxu0 0.0
    %737 = vmatpush2.msra.mxu0 0.0
    %738 = vmatprep.subr.mxu0 0.0
    %739 = vmatpush2.msra.mxu0 0.0
    %740 = vmatprep.mubr.f32.mxu0 0.0
    %741 = vmatmul.mubr.f32.gmra.mxu0 %v380
    %v742 = vpop.f32.mrf.mxu0
    %v743 = vadd.f32 0.0, %v742
    %v744 = vpop.f32.mrf.mxu0
    %745 = vdwg.mxu0
    %v746 = vadd.f32 %v290, %v743
    %v747 = vmax.f32 %v746, 0.0
    %748 = vmatprep.subr.mxu0 0.0
    %749 = vmatpush1.msra.mxu0 %v396
    %750 = vmatprep.subr.mxu0 0.0
    %751 = vmatpush1.msra.mxu0 %v395
    %752 = vmatprep.subr.mxu0 0.0
    %753 = vmatpush1.msra.mxu0 %v394
    %754 = vmatprep.subr.mxu0 0.0
    %755 = vmatpush1.msra.mxu0 %v393
    %756 = vmatprep.subr.mxu0 0.0
    %757 = vmatpush1.msra.mxu0 %v392
    %758 = vmatprep.subr.mxu0 0.0
    %759 = vmatpush1.msra.mxu0 %v391
    %760 = vmatprep.subr.mxu0 0.0
    %761 = vmatpush1.msra.mxu0 %v390
    %762 = vmatprep.subr.mxu0 0.0
    %763 = vmatpush1.msra.mxu0 %v389
    %764 = vmatprep.subr.mxu0 0.0
    %765 = vmatpush1.msra.mxu0 %v388
    %766 = vmatprep.subr.mxu0 0.0
    %767 = vmatpush1.msra.mxu0 %v387
    %768 = vmatprep.subr.mxu0 0.0
    %769 = vmatpush1.msra.mxu0 %v386
    %770 = vmatprep.subr.mxu0 0.0
    %771 = vmatpush1.msra.mxu0 %v385
    %772 = vmatprep.subr.mxu0 0.0
    %773 = vmatpush1.msra.mxu0 %v384
    %774 = vmatprep.subr.mxu0 0.0
    %775 = vmatpush1.msra.mxu0 %v383
    %776 = vmatprep.subr.mxu0 0.0
    %777 = vmatpush1.msra.mxu0 %v382
    %778 = vmatprep.subr.mxu0 0.0
    %779 = vmatpush1.msra.mxu0 %v381
    %780 = vmatprep.subr.mxu0 0.0
    %781 = vmatpush2.msra.mxu0 %v412
    %782 = vmatprep.subr.mxu0 0.0
    %783 = vmatpush2.msra.mxu0 %v411
    %784 = vmatprep.subr.mxu0 0.0
    %785 = vmatpush2.msra.mxu0 %v410
    %786 = vmatprep.subr.mxu0 0.0
    %787 = vmatpush2.msra.mxu0 %v409
    %788 = vmatprep.subr.mxu0 0.0
    %789 = vmatpush2.msra.mxu0 %v408
    %790 = vmatprep.subr.mxu0 0.0
    %791 = vmatpush2.msra.mxu0 %v407
    %792 = vmatprep.subr.mxu0 0.0
    %793 = vmatpush2.msra.mxu0 %v406
    %794 = vmatprep.subr.mxu0 0.0
    %795 = vmatpush2.msra.mxu0 %v405
    %796 = vmatprep.subr.mxu0 0.0
    %797 = vmatpush2.msra.mxu0 %v404
    %798 = vmatprep.subr.mxu0 0.0
    %799 = vmatpush2.msra.mxu0 %v403
    %800 = vmatprep.subr.mxu0 0.0
    %801 = vmatpush2.msra.mxu0 %v402
    %802 = vmatprep.subr.mxu0 0.0
    %803 = vmatpush2.msra.mxu0 %v401
    %804 = vmatprep.subr.mxu0 0.0
    %805 = vmatpush2.msra.mxu0 %v400
    %806 = vmatprep.subr.mxu0 0.0
    %807 = vmatpush2.msra.mxu0 %v399
    %808 = vmatprep.subr.mxu0 0.0
    %809 = vmatpush2.msra.mxu0 %v398
    %810 = vmatprep.subr.mxu0 0.0
    %811 = vmatpush2.msra.mxu0 %v397
    %812 = vmatprep.mubr.f32.mxu0 %v490
    %813 = vmatmul.mubr.f32.gmra.mxu0 %v747
    %v814 = vpop.f32.mrf.mxu0
    %v815 = vadd.f32 %v418, %v814
    %v816 = vpop.f32.mrf.mxu0
    %817 = vdwg.mxu0
    %v818 = vmax.f32 %v815, 0.0
    %819 = vmatprep.subr.mxu0 0.0
    %820 = vmatpush1.msra.mxu0 %v506
    %821 = vmatprep.subr.mxu0 0.0
    %822 = vmatpush1.msra.mxu0 %v505
    %823 = vmatprep.subr.mxu0 0.0
    %824 = vmatpush1.msra.mxu0 %v504
    %825 = vmatprep.subr.mxu0 0.0
    %826 = vmatpush1.msra.mxu0 %v503
    %827 = vmatprep.subr.mxu0 0.0
    %828 = vmatpush1.msra.mxu0 %v502
    %829 = vmatprep.subr.mxu0 0.0
    %830 = vmatpush1.msra.mxu0 %v501
    %831 = vmatprep.subr.mxu0 0.0
    %832 = vmatpush1.msra.mxu0 %v500
    %833 = vmatprep.subr.mxu0 0.0
    %834 = vmatpush1.msra.mxu0 %v499
    %835 = vmatprep.subr.mxu0 0.0
    %836 = vmatpush1.msra.mxu0 %v498
    %837 = vmatprep.subr.mxu0 0.0
    %838 = vmatpush1.msra.mxu0 %v497
    %839 = vmatprep.subr.mxu0 0.0
    %840 = vmatpush1.msra.mxu0 %v496
    %841 = vmatprep.subr.mxu0 0.0
    %842 = vmatpush1.msra.mxu0 %v495
    %843 = vmatprep.subr.mxu0 0.0
    %844 = vmatpush1.msra.mxu0 %v494
    %845 = vmatprep.subr.mxu0 0.0
    %846 = vmatpush1.msra.mxu0 %v493
    %847 = vmatprep.subr.mxu0 0.0
    %848 = vmatpush1.msra.mxu0 %v492
    %849 = vmatprep.subr.mxu0 0.0
    %850 = vmatpush1.msra.mxu0 %v491
    %851 = vmatprep.subr.mxu0 0.0
    %852 = vmatpush2.msra.mxu0 %v522
    %853 = vmatprep.subr.mxu0 0.0
    %854 = vmatpush2.msra.mxu0 %v521
    %855 = vmatprep.subr.mxu0 0.0
    %856 = vmatpush2.msra.mxu0 %v520
    %857 = vmatprep.subr.mxu0 0.0
    %858 = vmatpush2.msra.mxu0 %v519
    %859 = vmatprep.subr.mxu0 0.0
    %860 = vmatpush2.msra.mxu0 %v518
    %861 = vmatprep.subr.mxu0 0.0
    %862 = vmatpush2.msra.mxu0 %v517
    %863 = vmatprep.subr.mxu0 0.0
    %864 = vmatpush2.msra.mxu0 %v516
    %865 = vmatprep.subr.mxu0 0.0
    %866 = vmatpush2.msra.mxu0 %v515
    %867 = vmatprep.subr.mxu0 0.0
    %868 = vmatpush2.msra.mxu0 %v514
    %869 = vmatprep.subr.mxu0 0.0
    %870 = vmatpush2.msra.mxu0 %v513
    %871 = vmatprep.subr.mxu0 0.0
    %872 = vmatpush2.msra.mxu0 %v512
    %873 = vmatprep.subr.mxu0 0.0
    %874 = vmatpush2.msra.mxu0 %v511
    %875 = vmatprep.subr.mxu0 0.0
    %876 = vmatpush2.msra.mxu0 %v510
    %877 = vmatprep.subr.mxu0 0.0
    %878 = vmatpush2.msra.mxu0 %v509
    %879 = vmatprep.subr.mxu0 0.0
    %880 = vmatpush2.msra.mxu0 %v508
    %881 = vmatprep.subr.mxu0 0.0
    %882 = vmatpush2.msra.mxu0 %v507
    %883 = vmatprep.mubr.f32.mxu0 %v600
    %884 = vmatmul.mubr.f32.gmra.mxu0 %v818
    %v885 = vpop.f32.mrf.mxu0
    %v886 = vadd.f32 %v528, %v885
    %v887 = vpop.f32.mrf.mxu0
    %888 = vdwg.mxu0
    %v889 = vmax.f32 %v886, 0.0
    %s890 = scalar_lea.vmem %s0, 24
    %v891 = vld [vmem:[%s890] sm:$0xff]
    %v893 = vsel %vm144, %v891, 0
    %895 = vmatprep.subr.mxu0 0.0
    %896 = vmatpush1.msra.mxu0 0.0
    %897 = vmatprep.subr.mxu0 0.0
    %898 = vmatpush1.msra.mxu0 0.0
    %899 = vmatprep.subr.mxu0 0.0
    %900 = vmatpush1.msra.mxu0 0.0
    %901 = vmatprep.subr.mxu0 0.0
    %902 = vmatpush1.msra.mxu0 0.0
    %903 = vmatprep.subr.mxu0 0.0
    %904 = vmatpush1.msra.mxu0 %v136
    %905 = vmatprep.subr.mxu0 0.0
    %906 = vmatpush1.msra.mxu0 %v135
    %907 = vmatprep.subr.mxu0 0.0
    %908 = vmatpush1.msra.mxu0 %v134
    %909 = vmatprep.subr.mxu0 0.0
    %910 = vmatpush1.msra.mxu0 %v133
    %911 = vmatprep.subr.mxu0 0.0
    %912 = vmatpush1.msra.mxu0 %v132
    %913 = vmatprep.subr.mxu0 0.0
    %914 = vmatpush1.msra.mxu0 %v131
    %915 = vmatprep.subr.mxu0 0.0
    %916 = vmatpush1.msra.mxu0 %v130
    %917 = vmatprep.subr.mxu0 0.0
    %918 = vmatpush1.msra.mxu0 %v129
    %919 = vmatprep.subr.mxu0 0.0
    %920 = vmatpush1.msra.mxu0 %v128
    %921 = vmatprep.subr.mxu0 0.0
    %922 = vmatpush1.msra.mxu0 %v127
    %923 = vmatprep.subr.mxu0 0.0
    %924 = vmatpush1.msra.mxu0 %v126
    %925 = vmatprep.subr.mxu0 0.0
    %926 = vmatpush1.msra.mxu0 %v125
    %927 = vmatprep.subr.mxu0 0.0
    %928 = vmatpush2.msra.mxu0 0.0
    %929 = vmatprep.subr.mxu0 0.0
    %930 = vmatpush2.msra.mxu0 0.0
    %931 = vmatprep.subr.mxu0 0.0
    %932 = vmatpush2.msra.mxu0 0.0
    %933 = vmatprep.subr.mxu0 0.0
    %934 = vmatpush2.msra.mxu0 0.0
    %935 = vmatprep.subr.mxu0 0.0
    %936 = vmatpush2.msra.mxu0 0.0
    %937 = vmatprep.subr.mxu0 0.0
    %938 = vmatpush2.msra.mxu0 0.0
    %939 = vmatprep.subr.mxu0 0.0
    %940 = vmatpush2.msra.mxu0 0.0
    %941 = vmatprep.subr.mxu0 0.0
    %942 = vmatpush2.msra.mxu0 0.0
    %943 = vmatprep.subr.mxu0 0.0
    %944 = vmatpush2.msra.mxu0 0.0
    %945 = vmatprep.subr.mxu0 0.0
    %946 = vmatpush2.msra.mxu0 0.0
    %947 = vmatprep.subr.mxu0 0.0
    %948 = vmatpush2.msra.mxu0 0.0
    %949 = vmatprep.subr.mxu0 0.0
    %950 = vmatpush2.msra.mxu0 0.0
    %951 = vmatprep.subr.mxu0 0.0
    %952 = vmatpush2.msra.mxu0 0.0
    %953 = vmatprep.subr.mxu0 0.0
    %954 = vmatpush2.msra.mxu0 0.0
    %955 = vmatprep.subr.mxu0 0.0
    %956 = vmatpush2.msra.mxu0 0.0
    %957 = vmatprep.subr.mxu0 0.0
    %958 = vmatpush2.msra.mxu0 0.0
    %959 = vmatprep.mubr.f32.mxu0 0.0
    %960 = vmatmul.mubr.f32.gmra.mxu0 %v893
    %v961 = vpop.f32.mrf.mxu0
    %v962 = vadd.f32 %v142, %v961
    %v963 = vpop.f32.mrf.mxu0
    %964 = vdwg.mxu0
    %965 = vmatprep.subr.mxu0 0.0
    %966 = vmatpush1.msra.mxu0 %v308
    %967 = vmatprep.subr.mxu0 0.0
    %968 = vmatpush1.msra.mxu0 %v307
    %969 = vmatprep.subr.mxu0 0.0
    %970 = vmatpush1.msra.mxu0 %v306
    %971 = vmatprep.subr.mxu0 0.0
    %972 = vmatpush1.msra.mxu0 %v305
    %973 = vmatprep.subr.mxu0 0.0
    %974 = vmatpush1.msra.mxu0 %v304
    %975 = vmatprep.subr.mxu0 0.0
    %976 = vmatpush1.msra.mxu0 %v303
    %977 = vmatprep.subr.mxu0 0.0
    %978 = vmatpush1.msra.mxu0 %v302
    %979 = vmatprep.subr.mxu0 0.0
    %980 = vmatpush1.msra.mxu0 %v301
    %981 = vmatprep.subr.mxu0 0.0
    %982 = vmatpush1.msra.mxu0 %v300
    %983 = vmatprep.subr.mxu0 0.0
    %984 = vmatpush1.msra.mxu0 %v299
    %985 = vmatprep.subr.mxu0 0.0
    %986 = vmatpush1.msra.mxu0 %v298
    %987 = vmatprep.subr.mxu0 0.0
    %988 = vmatpush1.msra.mxu0 %v297
    %989 = vmatprep.subr.mxu0 0.0
    %990 = vmatpush1.msra.mxu0 %v296
    %991 = vmatprep.subr.mxu0 0.0
    %992 = vmatpush1.msra.mxu0 %v295
    %993 = vmatprep.subr.mxu0 0.0
    %994 = vmatpush1.msra.mxu0 %v294
    %995 = vmatprep.subr.mxu0 0.0
    %996 = vmatpush1.msra.mxu0 %v293
    %997 = vmatprep.subr.mxu0 0.0
    %998 = vmatpush2.msra.mxu0 0.0
    %999 = vmatprep.subr.mxu0 0.0
    %1000 = vmatpush2.msra.mxu0 0.0
    %1001 = vmatprep.subr.mxu0 0.0
    %1002 = vmatpush2.msra.mxu0 0.0
    %1003 = vmatprep.subr.mxu0 0.0
    %1004 = vmatpush2.msra.mxu0 0.0
    %1005 = vmatprep.subr.mxu0 0.0
    %1006 = vmatpush2.msra.mxu0 0.0
    %1007 = vmatprep.subr.mxu0 0.0
    %1008 = vmatpush2.msra.mxu0 0.0
    %1009 = vmatprep.subr.mxu0 0.0
    %1010 = vmatpush2.msra.mxu0 0.0
    %1011 = vmatprep.subr.mxu0 0.0
    %1012 = vmatpush2.msra.mxu0 0.0
    %1013 = vmatprep.subr.mxu0 0.0
    %1014 = vmatpush2.msra.mxu0 0.0
    %1015 = vmatprep.subr.mxu0 0.0
    %1016 = vmatpush2.msra.mxu0 0.0
    %1017 = vmatprep.subr.mxu0 0.0
    %1018 = vmatpush2.msra.mxu0 0.0
    %1019 = vmatprep.subr.mxu0 0.0
    %1020 = vmatpush2.msra.mxu0 0.0
    %1021 = vmatprep.subr.mxu0 0.0
    %1022 = vmatpush2.msra.mxu0 0.0
    %1023 = vmatprep.subr.mxu0 0.0
    %1024 = vmatpush2.msra.mxu0 0.0
    %1025 = vmatprep.subr.mxu0 0.0
    %1026 = vmatpush2.msra.mxu0 0.0
    %1027 = vmatprep.subr.mxu0 0.0
    %1028 = vmatpush2.msra.mxu0 0.0
    %1029 = vmatprep.mubr.f32.mxu0 0.0
    %1030 = vmatmul.mubr.f32.gmra.mxu0 %v747
    %v1031 = vpop.f32.mrf.mxu0
    %v1032 = vadd.f32 0.0, %v1031
    %v1033 = vpop.f32.mrf.mxu0
    %1034 = vdwg.mxu0
    %v1035 = vadd.f32 %v673, %v1032
    %v1036 = vmax.f32 %v1035, 0.0
    %1037 = vmatprep.subr.mxu0 0.0
    %1038 = vmatpush1.msra.mxu0 %v396
    %1039 = vmatprep.subr.mxu0 0.0
    %1040 = vmatpush1.msra.mxu0 %v395
    %1041 = vmatprep.subr.mxu0 0.0
    %1042 = vmatpush1.msra.mxu0 %v394
    %1043 = vmatprep.subr.mxu0 0.0
    %1044 = vmatpush1.msra.mxu0 %v393
    %1045 = vmatprep.subr.mxu0 0.0
    %1046 = vmatpush1.msra.mxu0 %v392
    %1047 = vmatprep.subr.mxu0 0.0
    %1048 = vmatpush1.msra.mxu0 %v391
    %1049 = vmatprep.subr.mxu0 0.0
    %1050 = vmatpush1.msra.mxu0 %v390
    %1051 = vmatprep.subr.mxu0 0.0
    %1052 = vmatpush1.msra.mxu0 %v389
    %1053 = vmatprep.subr.mxu0 0.0
    %1054 = vmatpush1.msra.mxu0 %v388
    %1055 = vmatprep.subr.mxu0 0.0
    %1056 = vmatpush1.msra.mxu0 %v387
    %1057 = vmatprep.subr.mxu0 0.0
    %1058 = vmatpush1.msra.mxu0 %v386
    %1059 = vmatprep.subr.mxu0 0.0
    %1060 = vmatpush1.msra.mxu0 %v385
    %1061 = vmatprep.subr.mxu0 0.0
    %1062 = vmatpush1.msra.mxu0 %v384
    %1063 = vmatprep.subr.mxu0 0.0
    %1064 = vmatpush1.msra.mxu0 %v383
    %1065 = vmatprep.subr.mxu0 0.0
    %1066 = vmatpush1.msra.mxu0 %v382
    %1067 = vmatprep.subr.mxu0 0.0
    %1068 = vmatpush1.msra.mxu0 %v381
    %1069 = vmatprep.subr.mxu0 0.0
    %1070 = vmatpush2.msra.mxu0 %v412
    %1071 = vmatprep.subr.mxu0 0.0
    %1072 = vmatpush2.msra.mxu0 %v411
    %1073 = vmatprep.subr.mxu0 0.0
    %1074 = vmatpush2.msra.mxu0 %v410
    %1075 = vmatprep.subr.mxu0 0.0
    %1076 = vmatpush2.msra.mxu0 %v409
    %1077 = vmatprep.subr.mxu0 0.0
    %1078 = vmatpush2.msra.mxu0 %v408
    %1079 = vmatprep.subr.mxu0 0.0
    %1080 = vmatpush2.msra.mxu0 %v407
    %1081 = vmatprep.subr.mxu0 0.0
    %1082 = vmatpush2.msra.mxu0 %v406
    %1083 = vmatprep.subr.mxu0 0.0
    %1084 = vmatpush2.msra.mxu0 %v405
    %1085 = vmatprep.subr.mxu0 0.0
    %1086 = vmatpush2.msra.mxu0 %v404
    %1087 = vmatprep.subr.mxu0 0.0
    %1088 = vmatpush2.msra.mxu0 %v403
    %1089 = vmatprep.subr.mxu0 0.0
    %1090 = vmatpush2.msra.mxu0 %v402
    %1091 = vmatprep.subr.mxu0 0.0
    %1092 = vmatpush2.msra.mxu0 %v401
    %1093 = vmatprep.subr.mxu0 0.0
    %1094 = vmatpush2.msra.mxu0 %v400
    %1095 = vmatprep.subr.mxu0 0.0
    %1096 = vmatpush2.msra.mxu0 %v399
    %1097 = vmatprep.subr.mxu0 0.0
    %1098 = vmatpush2.msra.mxu0 %v398
    %1099 = vmatprep.subr.mxu0 0.0
    %1100 = vmatpush2.msra.mxu0 %v397
    %1101 = vmatprep.mubr.f32.mxu0 %v818
    %1102 = vmatmul.mubr.f32.gmra.mxu0 %v1036
    %v1103 = vpop.f32.mrf.mxu0
    %v1104 = vadd.f32 %v418, %v1103
    %v1105 = vpop.f32.mrf.mxu0
    %1106 = vdwg.mxu0
    %v1107 = vmax.f32 %v1104, 0.0
    %1108 = vmatprep.subr.mxu0 0.0
    %1109 = vmatpush1.msra.mxu0 %v506
    %1110 = vmatprep.subr.mxu0 0.0
    %1111 = vmatpush1.msra.mxu0 %v505
    %1112 = vmatprep.subr.mxu0 0.0
    %1113 = vmatpush1.msra.mxu0 %v504
    %1114 = vmatprep.subr.mxu0 0.0
    %1115 = vmatpush1.msra.mxu0 %v503
    %1116 = vmatprep.subr.mxu0 0.0
    %1117 = vmatpush1.msra.mxu0 %v502
    %1118 = vmatprep.subr.mxu0 0.0
    %1119 = vmatpush1.msra.mxu0 %v501
    %1120 = vmatprep.subr.mxu0 0.0
    %1121 = vmatpush1.msra.mxu0 %v500
    %1122 = vmatprep.subr.mxu0 0.0
    %1123 = vmatpush1.msra.mxu0 %v499
    %1124 = vmatprep.subr.mxu0 0.0
    %1125 = vmatpush1.msra.mxu0 %v498
    %1126 = vmatprep.subr.mxu0 0.0
    %1127 = vmatpush1.msra.mxu0 %v497
    %1128 = vmatprep.subr.mxu0 0.0
    %1129 = vmatpush1.msra.mxu0 %v496
    %1130 = vmatprep.subr.mxu0 0.0
    %1131 = vmatpush1.msra.mxu0 %v495
    %1132 = vmatprep.subr.mxu0 0.0
    %1133 = vmatpush1.msra.mxu0 %v494
    %1134 = vmatprep.subr.mxu0 0.0
    %1135 = vmatpush1.msra.mxu0 %v493
    %1136 = vmatprep.subr.mxu0 0.0
    %1137 = vmatpush1.msra.mxu0 %v492
    %1138 = vmatprep.subr.mxu0 0.0
    %1139 = vmatpush1.msra.mxu0 %v491
    %1140 = vmatprep.subr.mxu0 0.0
    %1141 = vmatpush2.msra.mxu0 %v522
    %1142 = vmatprep.subr.mxu0 0.0
    %1143 = vmatpush2.msra.mxu0 %v521
    %1144 = vmatprep.subr.mxu0 0.0
    %1145 = vmatpush2.msra.mxu0 %v520
    %1146 = vmatprep.subr.mxu0 0.0
    %1147 = vmatpush2.msra.mxu0 %v519
    %1148 = vmatprep.subr.mxu0 0.0
    %1149 = vmatpush2.msra.mxu0 %v518
    %1150 = vmatprep.subr.mxu0 0.0
    %1151 = vmatpush2.msra.mxu0 %v517
    %1152 = vmatprep.subr.mxu0 0.0
    %1153 = vmatpush2.msra.mxu0 %v516
    %1154 = vmatprep.subr.mxu0 0.0
    %1155 = vmatpush2.msra.mxu0 %v515
    %1156 = vmatprep.subr.mxu0 0.0
    %1157 = vmatpush2.msra.mxu0 %v514
    %1158 = vmatprep.subr.mxu0 0.0
    %1159 = vmatpush2.msra.mxu0 %v513
    %1160 = vmatprep.subr.mxu0 0.0
    %1161 = vmatpush2.msra.mxu0 %v512
    %1162 = vmatprep.subr.mxu0 0.0
    %1163 = vmatpush2.msra.mxu0 %v511
    %1164 = vmatprep.subr.mxu0 0.0
    %1165 = vmatpush2.msra.mxu0 %v510
    %1166 = vmatprep.subr.mxu0 0.0
    %1167 = vmatpush2.msra.mxu0 %v509
    %1168 = vmatprep.subr.mxu0 0.0
    %1169 = vmatpush2.msra.mxu0 %v508
    %1170 = vmatprep.subr.mxu0 0.0
    %1171 = vmatpush2.msra.mxu0 %v507
    %1172 = vmatprep.mubr.f32.mxu0 %v889
    %1173 = vmatmul.mubr.f32.gmra.mxu0 %v1107
    %v1174 = vpop.f32.mrf.mxu0
    %v1175 = vadd.f32 %v528, %v1174
    %v1176 = vpop.f32.mrf.mxu0
    %1177 = vdwg.mxu0
    %v1178 = vmax.f32 %v1175, 0.0
    %s1179 = scalar_lea.vmem %s0, 32
    %v1180 = vld [vmem:[%s1179] sm:$0xff]
    %v1182 = vsel %vm144, %v1180, 0
    %1184 = vmatprep.subr.mxu0 0.0
    %1185 = vmatpush1.msra.mxu0 0.0
    %1186 = vmatprep.subr.mxu0 0.0
    %1187 = vmatpush1.msra.mxu0 0.0
    %1188 = vmatprep.subr.mxu0 0.0
    %1189 = vmatpush1.msra.mxu0 0.0
    %1190 = vmatprep.subr.mxu0 0.0
    %1191 = vmatpush1.msra.mxu0 0.0
    %1192 = vmatprep.subr.mxu0 0.0
    %1193 = vmatpush1.msra.mxu0 %v136
    %1194 = vmatprep.subr.mxu0 0.0
    %1195 = vmatpush1.msra.mxu0 %v135
    %1196 = vmatprep.subr.mxu0 0.0
    %1197 = vmatpush1.msra.mxu0 %v134
    %1198 = vmatprep.subr.mxu0 0.0
    %1199 = vmatpush1.msra.mxu0 %v133
    %1200 = vmatprep.subr.mxu0 0.0
    %1201 = vmatpush1.msra.mxu0 %v132
    %1202 = vmatprep.subr.mxu0 0.0
    %1203 = vmatpush1.msra.mxu0 %v131
    %1204 = vmatprep.subr.mxu0 0.0
    %1205 = vmatpush1.msra.mxu0 %v130
    %1206 = vmatprep.subr.mxu0 0.0
    %1207 = vmatpush1.msra.mxu0 %v129
    %1208 = vmatprep.subr.mxu0 0.0
    %1209 = vmatpush1.msra.mxu0 %v128
    %1210 = vmatprep.subr.mxu0 0.0
    %1211 = vmatpush1.msra.mxu0 %v127
    %1212 = vmatprep.subr.mxu0 0.0
    %1213 = vmatpush1.msra.mxu0 %v126
    %1214 = vmatprep.subr.mxu0 0.0
    %1215 = vmatpush1.msra.mxu0 %v125
    %1216 = vmatprep.subr.mxu0 0.0
    %1217 = vmatpush2.msra.mxu0 0.0
    %1218 = vmatprep.subr.mxu0 0.0
    %1219 = vmatpush2.msra.mxu0 0.0
    %1220 = vmatprep.subr.mxu0 0.0
    %1221 = vmatpush2.msra.mxu0 0.0
    %1222 = vmatprep.subr.mxu0 0.0
    %1223 = vmatpush2.msra.mxu0 0.0
    %1224 = vmatprep.subr.mxu0 0.0
    %1225 = vmatpush2.msra.mxu0 0.0
    %1226 = vmatprep.subr.mxu0 0.0
    %1227 = vmatpush2.msra.mxu0 0.0
    %1228 = vmatprep.subr.mxu0 0.0
    %1229 = vmatpush2.msra.mxu0 0.0
    %1230 = vmatprep.subr.mxu0 0.0
    %1231 = vmatpush2.msra.mxu0 0.0
    %1232 = vmatprep.subr.mxu0 0.0
    %1233 = vmatpush2.msra.mxu0 0.0
    %1234 = vmatprep.subr.mxu0 0.0
    %1235 = vmatpush2.msra.mxu0 0.0
    %1236 = vmatprep.subr.mxu0 0.0
    %1237 = vmatpush2.msra.mxu0 0.0
    %1238 = vmatprep.subr.mxu0 0.0
    %1239 = vmatpush2.msra.mxu0 0.0
    %1240 = vmatprep.subr.mxu0 0.0
    %1241 = vmatpush2.msra.mxu0 0.0
    %1242 = vmatprep.subr.mxu0 0.0
    %1243 = vmatpush2.msra.mxu0 0.0
    %1244 = vmatprep.subr.mxu0 0.0
    %1245 = vmatpush2.msra.mxu0 0.0
    %1246 = vmatprep.subr.mxu0 0.0
    %1247 = vmatpush2.msra.mxu0 0.0
    %1248 = vmatprep.mubr.f32.mxu0 0.0
    %1249 = vmatmul.mubr.f32.gmra.mxu0 %v1182
    %v1250 = vpop.f32.mrf.mxu0
    %v1251 = vadd.f32 %v142, %v1250
    %v1252 = vpop.f32.mrf.mxu0
    %1253 = vdwg.mxu0
    %1254 = vmatprep.subr.mxu0 0.0
    %1255 = vmatpush1.msra.mxu0 %v308
    %1256 = vmatprep.subr.mxu0 0.0
    %1257 = vmatpush1.msra.mxu0 %v307
    %1258 = vmatprep.subr.mxu0 0.0
    %1259 = vmatpush1.msra.mxu0 %v306
    %1260 = vmatprep.subr.mxu0 0.0
    %1261 = vmatpush1.msra.mxu0 %v305
    %1262 = vmatprep.subr.mxu0 0.0
    %1263 = vmatpush1.msra.mxu0 %v304
    %1264 = vmatprep.subr.mxu0 0.0
    %1265 = vmatpush1.msra.mxu0 %v303
    %1266 = vmatprep.subr.mxu0 0.0
    %1267 = vmatpush1.msra.mxu0 %v302
    %1268 = vmatprep.subr.mxu0 0.0
    %1269 = vmatpush1.msra.mxu0 %v301
    %1270 = vmatprep.subr.mxu0 0.0
    %1271 = vmatpush1.msra.mxu0 %v300
    %1272 = vmatprep.subr.mxu0 0.0
    %1273 = vmatpush1.msra.mxu0 %v299
    %1274 = vmatprep.subr.mxu0 0.0
    %1275 = vmatpush1.msra.mxu0 %v298
    %1276 = vmatprep.subr.mxu0 0.0
    %1277 = vmatpush1.msra.mxu0 %v297
    %1278 = vmatprep.subr.mxu0 0.0
    %1279 = vmatpush1.msra.mxu0 %v296
    %1280 = vmatprep.subr.mxu0 0.0
    %1281 = vmatpush1.msra.mxu0 %v295
    %1282 = vmatprep.subr.mxu0 0.0
    %1283 = vmatpush1.msra.mxu0 %v294
    %1284 = vmatprep.subr.mxu0 0.0
    %1285 = vmatpush1.msra.mxu0 %v293
    %1286 = vmatprep.subr.mxu0 0.0
    %1287 = vmatpush2.msra.mxu0 0.0
    %1288 = vmatprep.subr.mxu0 0.0
    %1289 = vmatpush2.msra.mxu0 0.0
    %1290 = vmatprep.subr.mxu0 0.0
    %1291 = vmatpush2.msra.mxu0 0.0
    %1292 = vmatprep.subr.mxu0 0.0
    %1293 = vmatpush2.msra.mxu0 0.0
    %1294 = vmatprep.subr.mxu0 0.0
    %1295 = vmatpush2.msra.mxu0 0.0
    %1296 = vmatprep.subr.mxu0 0.0
    %1297 = vmatpush2.msra.mxu0 0.0
    %1298 = vmatprep.subr.mxu0 0.0
    %1299 = vmatpush2.msra.mxu0 0.0
    %1300 = vmatprep.subr.mxu0 0.0
    %1301 = vmatpush2.msra.mxu0 0.0
    %1302 = vmatprep.subr.mxu0 0.0
    %1303 = vmatpush2.msra.mxu0 0.0
    %1304 = vmatprep.subr.mxu0 0.0
    %1305 = vmatpush2.msra.mxu0 0.0
    %1306 = vmatprep.subr.mxu0 0.0
    %1307 = vmatpush2.msra.mxu0 0.0
    %1308 = vmatprep.subr.mxu0 0.0
    %1309 = vmatpush2.msra.mxu0 0.0
    %1310 = vmatprep.subr.mxu0 0.0
    %1311 = vmatpush2.msra.mxu0 0.0
    %1312 = vmatprep.subr.mxu0 0.0
    %1313 = vmatpush2.msra.mxu0 0.0
    %1314 = vmatprep.subr.mxu0 0.0
    %1315 = vmatpush2.msra.mxu0 0.0
    %1316 = vmatprep.subr.mxu0 0.0
    %1317 = vmatpush2.msra.mxu0 0.0
    %1318 = vmatprep.mubr.f32.mxu0 0.0
    %1319 = vmatmul.mubr.f32.gmra.mxu0 %v1036
    %v1320 = vpop.f32.mrf.mxu0
    %v1321 = vadd.f32 0.0, %v1320
    %v1322 = vpop.f32.mrf.mxu0
    %1323 = vdwg.mxu0
    %v1324 = vadd.f32 %v962, %v1321
    %v1325 = vmax.f32 %v1324, 0.0
    %1326 = vmatprep.subr.mxu0 0.0
    %1327 = vmatpush1.msra.mxu0 %v396
    %1328 = vmatprep.subr.mxu0 0.0
    %1329 = vmatpush1.msra.mxu0 %v395
    %1330 = vmatprep.subr.mxu0 0.0
    %1331 = vmatpush1.msra.mxu0 %v394
    %1332 = vmatprep.subr.mxu0 0.0
    %1333 = vmatpush1.msra.mxu0 %v393
    %1334 = vmatprep.subr.mxu0 0.0
    %1335 = vmatpush1.msra.mxu0 %v392
    %1336 = vmatprep.subr.mxu0 0.0
    %1337 = vmatpush1.msra.mxu0 %v391
    %1338 = vmatprep.subr.mxu0 0.0
    %1339 = vmatpush1.msra.mxu0 %v390
    %1340 = vmatprep.subr.mxu0 0.0
    %1341 = vmatpush1.msra.mxu0 %v389
    %1342 = vmatprep.subr.mxu0 0.0
    %1343 = vmatpush1.msra.mxu0 %v388
    %1344 = vmatprep.subr.mxu0 0.0
    %1345 = vmatpush1.msra.mxu0 %v387
    %1346 = vmatprep.subr.mxu0 0.0
    %1347 = vmatpush1.msra.mxu0 %v386
    %1348 = vmatprep.subr.mxu0 0.0
    %1349 = vmatpush1.msra.mxu0 %v385
    %1350 = vmatprep.subr.mxu0 0.0
    %1351 = vmatpush1.msra.mxu0 %v384
    %1352 = vmatprep.subr.mxu0 0.0
    %1353 = vmatpush1.msra.mxu0 %v383
    %1354 = vmatprep.subr.mxu0 0.0
    %1355 = vmatpush1.msra.mxu0 %v382
    %1356 = vmatprep.subr.mxu0 0.0
    %1357 = vmatpush1.msra.mxu0 %v381
    %1358 = vmatprep.subr.mxu0 0.0
    %1359 = vmatpush2.msra.mxu0 %v412
    %1360 = vmatprep.subr.mxu0 0.0
    %1361 = vmatpush2.msra.mxu0 %v411
    %1362 = vmatprep.subr.mxu0 0.0
    %1363 = vmatpush2.msra.mxu0 %v410
    %1364 = vmatprep.subr.mxu0 0.0
    %1365 = vmatpush2.msra.mxu0 %v409
    %1366 = vmatprep.subr.mxu0 0.0
    %1367 = vmatpush2.msra.mxu0 %v408
    %1368 = vmatprep.subr.mxu0 0.0
    %1369 = vmatpush2.msra.mxu0 %v407
    %1370 = vmatprep.subr.mxu0 0.0
    %1371 = vmatpush2.msra.mxu0 %v406
    %1372 = vmatprep.subr.mxu0 0.0
    %1373 = vmatpush2.msra.mxu0 %v405
    %1374 = vmatprep.subr.mxu0 0.0
    %1375 = vmatpush2.msra.mxu0 %v404
    %1376 = vmatprep.subr.mxu0 0.0
    %1377 = vmatpush2.msra.mxu0 %v403
    %1378 = vmatprep.subr.mxu0 0.0
    %1379 = vmatpush2.msra.mxu0 %v402
    %1380 = vmatprep.subr.mxu0 0.0
    %1381 = vmatpush2.msra.mxu0 %v401
    %1382 = vmatprep.subr.mxu0 0.0
    %1383 = vmatpush2.msra.mxu0 %v400
    %1384 = vmatprep.subr.mxu0 0.0
    %1385 = vmatpush2.msra.mxu0 %v399
    %1386 = vmatprep.subr.mxu0 0.0
    %1387 = vmatpush2.msra.mxu0 %v398
    %1388 = vmatprep.subr.mxu0 0.0
    %1389 = vmatpush2.msra.mxu0 %v397
    %1390 = vmatprep.mubr.f32.mxu0 %v1107
    %1391 = vmatmul.mubr.f32.gmra.mxu0 %v1325
    %v1392 = vpop.f32.mrf.mxu0
    %v1393 = vadd.f32 %v418, %v1392
    %v1394 = vpop.f32.mrf.mxu0
    %1395 = vdwg.mxu0
    %v1396 = vmax.f32 %v1393, 0.0
    %1397 = vmatprep.subr.mxu0 0.0
    %1398 = vmatpush1.msra.mxu0 %v506
    %1399 = vmatprep.subr.mxu0 0.0
    %1400 = vmatpush1.msra.mxu0 %v505
    %1401 = vmatprep.subr.mxu0 0.0
    %1402 = vmatpush1.msra.mxu0 %v504
    %1403 = vmatprep.subr.mxu0 0.0
    %1404 = vmatpush1.msra.mxu0 %v503
    %1405 = vmatprep.subr.mxu0 0.0
    %1406 = vmatpush1.msra.mxu0 %v502
    %1407 = vmatprep.subr.mxu0 0.0
    %1408 = vmatpush1.msra.mxu0 %v501
    %1409 = vmatprep.subr.mxu0 0.0
    %1410 = vmatpush1.msra.mxu0 %v500
    %1411 = vmatprep.subr.mxu0 0.0
    %1412 = vmatpush1.msra.mxu0 %v499
    %1413 = vmatprep.subr.mxu0 0.0
    %1414 = vmatpush1.msra.mxu0 %v498
    %1415 = vmatprep.subr.mxu0 0.0
    %1416 = vmatpush1.msra.mxu0 %v497
    %1417 = vmatprep.subr.mxu0 0.0
    %1418 = vmatpush1.msra.mxu0 %v496
    %1419 = vmatprep.subr.mxu0 0.0
    %1420 = vmatpush1.msra.mxu0 %v495
    %1421 = vmatprep.subr.mxu0 0.0
    %1422 = vmatpush1.msra.mxu0 %v494
    %1423 = vmatprep.subr.mxu0 0.0
    %1424 = vmatpush1.msra.mxu0 %v493
    %1425 = vmatprep.subr.mxu0 0.0
    %1426 = vmatpush1.msra.mxu0 %v492
    %1427 = vmatprep.subr.mxu0 0.0
    %1428 = vmatpush1.msra.mxu0 %v491
    %1429 = vmatprep.subr.mxu0 0.0
    %1430 = vmatpush2.msra.mxu0 %v522
    %1431 = vmatprep.subr.mxu0 0.0
    %1432 = vmatpush2.msra.mxu0 %v521
    %1433 = vmatprep.subr.mxu0 0.0
    %1434 = vmatpush2.msra.mxu0 %v520
    %1435 = vmatprep.subr.mxu0 0.0
    %1436 = vmatpush2.msra.mxu0 %v519
    %1437 = vmatprep.subr.mxu0 0.0
    %1438 = vmatpush2.msra.mxu0 %v518
    %1439 = vmatprep.subr.mxu0 0.0
    %1440 = vmatpush2.msra.mxu0 %v517
    %1441 = vmatprep.subr.mxu0 0.0
    %1442 = vmatpush2.msra.mxu0 %v516
    %1443 = vmatprep.subr.mxu0 0.0
    %1444 = vmatpush2.msra.mxu0 %v515
    %1445 = vmatprep.subr.mxu0 0.0
    %1446 = vmatpush2.msra.mxu0 %v514
    %1447 = vmatprep.subr.mxu0 0.0
    %1448 = vmatpush2.msra.mxu0 %v513
    %1449 = vmatprep.subr.mxu0 0.0
    %1450 = vmatpush2.msra.mxu0 %v512
    %1451 = vmatprep.subr.mxu0 0.0
    %1452 = vmatpush2.msra.mxu0 %v511
    %1453 = vmatprep.subr.mxu0 0.0
    %1454 = vmatpush2.msra.mxu0 %v510
    %1455 = vmatprep.subr.mxu0 0.0
    %1456 = vmatpush2.msra.mxu0 %v509
    %1457 = vmatprep.subr.mxu0 0.0
    %1458 = vmatpush2.msra.mxu0 %v508
    %1459 = vmatprep.subr.mxu0 0.0
    %1460 = vmatpush2.msra.mxu0 %v507
    %1461 = vmatprep.mubr.f32.mxu0 %v1178
    %1462 = vmatmul.mubr.f32.gmra.mxu0 %v1396
    %v1463 = vpop.f32.mrf.mxu0
    %v1464 = vadd.f32 %v528, %v1463
    %v1465 = vpop.f32.mrf.mxu0
    %1466 = vdwg.mxu0
    %v1467 = vmax.f32 %v1464, 0.0
    %s1468 = scalar_lea.vmem %s0, 40
    %v1469 = vld [vmem:[%s1468] sm:$0xff]
    %v1471 = vsel %vm144, %v1469, 0
    %1473 = vmatprep.subr.mxu0 0.0
    %1474 = vmatpush1.msra.mxu0 0.0
    %1475 = vmatprep.subr.mxu0 0.0
    %1476 = vmatpush1.msra.mxu0 0.0
    %1477 = vmatprep.subr.mxu0 0.0
    %1478 = vmatpush1.msra.mxu0 0.0
    %1479 = vmatprep.subr.mxu0 0.0
    %1480 = vmatpush1.msra.mxu0 0.0
    %1481 = vmatprep.subr.mxu0 0.0
    %1482 = vmatpush1.msra.mxu0 %v136
    %1483 = vmatprep.subr.mxu0 0.0
    %1484 = vmatpush1.msra.mxu0 %v135
    %1485 = vmatprep.subr.mxu0 0.0
    %1486 = vmatpush1.msra.mxu0 %v134
    %1487 = vmatprep.subr.mxu0 0.0
    %1488 = vmatpush1.msra.mxu0 %v133
    %1489 = vmatprep.subr.mxu0 0.0
    %1490 = vmatpush1.msra.mxu0 %v132
    %1491 = vmatprep.subr.mxu0 0.0
    %1492 = vmatpush1.msra.mxu0 %v131
    %1493 = vmatprep.subr.mxu0 0.0
    %1494 = vmatpush1.msra.mxu0 %v130
    %1495 = vmatprep.subr.mxu0 0.0
    %1496 = vmatpush1.msra.mxu0 %v129
    %1497 = vmatprep.subr.mxu0 0.0
    %1498 = vmatpush1.msra.mxu0 %v128
    %1499 = vmatprep.subr.mxu0 0.0
    %1500 = vmatpush1.msra.mxu0 %v127
    %1501 = vmatprep.subr.mxu0 0.0
    %1502 = vmatpush1.msra.mxu0 %v126
    %1503 = vmatprep.subr.mxu0 0.0
    %1504 = vmatpush1.msra.mxu0 %v125
    %1505 = vmatprep.subr.mxu0 0.0
    %1506 = vmatpush2.msra.mxu0 0.0
    %1507 = vmatprep.subr.mxu0 0.0
    %1508 = vmatpush2.msra.mxu0 0.0
    %1509 = vmatprep.subr.mxu0 0.0
    %1510 = vmatpush2.msra.mxu0 0.0
    %1511 = vmatprep.subr.mxu0 0.0
    %1512 = vmatpush2.msra.mxu0 0.0
    %1513 = vmatprep.subr.mxu0 0.0
    %1514 = vmatpush2.msra.mxu0 0.0
    %1515 = vmatprep.subr.mxu0 0.0
    %1516 = vmatpush2.msra.mxu0 0.0
    %1517 = vmatprep.subr.mxu0 0.0
    %1518 = vmatpush2.msra.mxu0 0.0
    %1519 = vmatprep.subr.mxu0 0.0
    %1520 = vmatpush2.msra.mxu0 0.0
    %1521 = vmatprep.subr.mxu0 0.0
    %1522 = vmatpush2.msra.mxu0 0.0
    %1523 = vmatprep.subr.mxu0 0.0
    %1524 = vmatpush2.msra.mxu0 0.0
    %1525 = vmatprep.subr.mxu0 0.0
    %1526 = vmatpush2.msra.mxu0 0.0
    %1527 = vmatprep.subr.mxu0 0.0
    %1528 = vmatpush2.msra.mxu0 0.0
    %1529 = vmatprep.subr.mxu0 0.0
    %1530 = vmatpush2.msra.mxu0 0.0
    %1531 = vmatprep.subr.mxu0 0.0
    %1532 = vmatpush2.msra.mxu0 0.0
    %1533 = vmatprep.subr.mxu0 0.0
    %1534 = vmatpush2.msra.mxu0 0.0
    %1535 = vmatprep.subr.mxu0 0.0
    %1536 = vmatpush2.msra.mxu0 0.0
    %1537 = vmatprep.mubr.f32.mxu0 0.0
    %1538 = vmatmul.mubr.f32.gmra.mxu0 %v1471
    %v1539 = vpop.f32.mrf.mxu0
    %v1540 = vadd.f32 %v142, %v1539
    %v1541 = vpop.f32.mrf.mxu0
    %1542 = vdwg.mxu0
    %1543 = vmatprep.subr.mxu0 0.0
    %1544 = vmatpush1.msra.mxu0 %v308
    %1545 = vmatprep.subr.mxu0 0.0
    %1546 = vmatpush1.msra.mxu0 %v307
    %1547 = vmatprep.subr.mxu0 0.0
    %1548 = vmatpush1.msra.mxu0 %v306
    %1549 = vmatprep.subr.mxu0 0.0
    %1550 = vmatpush1.msra.mxu0 %v305
    %1551 = vmatprep.subr.mxu0 0.0
    %1552 = vmatpush1.msra.mxu0 %v304
    %1553 = vmatprep.subr.mxu0 0.0
    %1554 = vmatpush1.msra.mxu0 %v303
    %1555 = vmatprep.subr.mxu0 0.0
    %1556 = vmatpush1.msra.mxu0 %v302
    %1557 = vmatprep.subr.mxu0 0.0
    %1558 = vmatpush1.msra.mxu0 %v301
    %1559 = vmatprep.subr.mxu0 0.0
    %1560 = vmatpush1.msra.mxu0 %v300
    %1561 = vmatprep.subr.mxu0 0.0
    %1562 = vmatpush1.msra.mxu0 %v299
    %1563 = vmatprep.subr.mxu0 0.0
    %1564 = vmatpush1.msra.mxu0 %v298
    %1565 = vmatprep.subr.mxu0 0.0
    %1566 = vmatpush1.msra.mxu0 %v297
    %1567 = vmatprep.subr.mxu0 0.0
    %1568 = vmatpush1.msra.mxu0 %v296
    %1569 = vmatprep.subr.mxu0 0.0
    %1570 = vmatpush1.msra.mxu0 %v295
    %1571 = vmatprep.subr.mxu0 0.0
    %1572 = vmatpush1.msra.mxu0 %v294
    %1573 = vmatprep.subr.mxu0 0.0
    %1574 = vmatpush1.msra.mxu0 %v293
    %1575 = vmatprep.subr.mxu0 0.0
    %1576 = vmatpush2.msra.mxu0 0.0
    %1577 = vmatprep.subr.mxu0 0.0
    %1578 = vmatpush2.msra.mxu0 0.0
    %1579 = vmatprep.subr.mxu0 0.0
    %1580 = vmatpush2.msra.mxu0 0.0
    %1581 = vmatprep.subr.mxu0 0.0
    %1582 = vmatpush2.msra.mxu0 0.0
    %1583 = vmatprep.subr.mxu0 0.0
    %1584 = vmatpush2.msra.mxu0 0.0
    %1585 = vmatprep.subr.mxu0 0.0
    %1586 = vmatpush2.msra.mxu0 0.0
    %1587 = vmatprep.subr.mxu0 0.0
    %1588 = vmatpush2.msra.mxu0 0.0
    %1589 = vmatprep.subr.mxu0 0.0
    %1590 = vmatpush2.msra.mxu0 0.0
    %1591 = vmatprep.subr.mxu0 0.0
    %1592 = vmatpush2.msra.mxu0 0.0
    %1593 = vmatprep.subr.mxu0 0.0
    %1594 = vmatpush2.msra.mxu0 0.0
    %1595 = vmatprep.subr.mxu0 0.0
    %1596 = vmatpush2.msra.mxu0 0.0
    %1597 = vmatprep.subr.mxu0 0.0
    %1598 = vmatpush2.msra.mxu0 0.0
    %1599 = vmatprep.subr.mxu0 0.0
    %1600 = vmatpush2.msra.mxu0 0.0
    %1601 = vmatprep.subr.mxu0 0.0
    %1602 = vmatpush2.msra.mxu0 0.0
    %1603 = vmatprep.subr.mxu0 0.0
    %1604 = vmatpush2.msra.mxu0 0.0
    %1605 = vmatprep.subr.mxu0 0.0
    %1606 = vmatpush2.msra.mxu0 0.0
    %1607 = vmatprep.mubr.f32.mxu0 0.0
    %1608 = vmatmul.mubr.f32.gmra.mxu0 %v1325
    %v1609 = vpop.f32.mrf.mxu0
    %v1610 = vadd.f32 0.0, %v1609
    %v1611 = vpop.f32.mrf.mxu0
    %1612 = vdwg.mxu0
    %v1613 = vadd.f32 %v1251, %v1610
    %v1614 = vmax.f32 %v1613, 0.0
    %1615 = vmatprep.subr.mxu0 0.0
    %1616 = vmatpush1.msra.mxu0 %v396
    %1617 = vmatprep.subr.mxu0 0.0
    %1618 = vmatpush1.msra.mxu0 %v395
    %1619 = vmatprep.subr.mxu0 0.0
    %1620 = vmatpush1.msra.mxu0 %v394
    %1621 = vmatprep.subr.mxu0 0.0
    %1622 = vmatpush1.msra.mxu0 %v393
    %1623 = vmatprep.subr.mxu0 0.0
    %1624 = vmatpush1.msra.mxu0 %v392
    %1625 = vmatprep.subr.mxu0 0.0
    %1626 = vmatpush1.msra.mxu0 %v391
    %1627 = vmatprep.subr.mxu0 0.0
    %1628 = vmatpush1.msra.mxu0 %v390
    %1629 = vmatprep.subr.mxu0 0.0
    %1630 = vmatpush1.msra.mxu0 %v389
    %1631 = vmatprep.subr.mxu0 0.0
    %1632 = vmatpush1.msra.mxu0 %v388
    %1633 = vmatprep.subr.mxu0 0.0
    %1634 = vmatpush1.msra.mxu0 %v387
    %1635 = vmatprep.subr.mxu0 0.0
    %1636 = vmatpush1.msra.mxu0 %v386
    %1637 = vmatprep.subr.mxu0 0.0
    %1638 = vmatpush1.msra.mxu0 %v385
    %1639 = vmatprep.subr.mxu0 0.0
    %1640 = vmatpush1.msra.mxu0 %v384
    %1641 = vmatprep.subr.mxu0 0.0
    %1642 = vmatpush1.msra.mxu0 %v383
    %1643 = vmatprep.subr.mxu0 0.0
    %1644 = vmatpush1.msra.mxu0 %v382
    %1645 = vmatprep.subr.mxu0 0.0
    %1646 = vmatpush1.msra.mxu0 %v381
    %1647 = vmatprep.subr.mxu0 0.0
    %1648 = vmatpush2.msra.mxu0 %v412
    %1649 = vmatprep.subr.mxu0 0.0
    %1650 = vmatpush2.msra.mxu0 %v411
    %1651 = vmatprep.subr.mxu0 0.0
    %1652 = vmatpush2.msra.mxu0 %v410
    %1653 = vmatprep.subr.mxu0 0.0
    %1654 = vmatpush2.msra.mxu0 %v409
    %1655 = vmatprep.subr.mxu0 0.0
    %1656 = vmatpush2.msra.mxu0 %v408
    %1657 = vmatprep.subr.mxu0 0.0
    %1658 = vmatpush2.msra.mxu0 %v407
    %1659 = vmatprep.subr.mxu0 0.0
    %1660 = vmatpush2.msra.mxu0 %v406
    %1661 = vmatprep.subr.mxu0 0.0
    %1662 = vmatpush2.msra.mxu0 %v405
    %1663 = vmatprep.subr.mxu0 0.0
    %1664 = vmatpush2.msra.mxu0 %v404
    %1665 = vmatprep.subr.mxu0 0.0
    %1666 = vmatpush2.msra.mxu0 %v403
    %1667 = vmatprep.subr.mxu0 0.0
    %1668 = vmatpush2.msra.mxu0 %v402
    %1669 = vmatprep.subr.mxu0 0.0
    %1670 = vmatpush2.msra.mxu0 %v401
    %1671 = vmatprep.subr.mxu0 0.0
    %1672 = vmatpush2.msra.mxu0 %v400
    %1673 = vmatprep.subr.mxu0 0.0
    %1674 = vmatpush2.msra.mxu0 %v399
    %1675 = vmatprep.subr.mxu0 0.0
    %1676 = vmatpush2.msra.mxu0 %v398
    %1677 = vmatprep.subr.mxu0 0.0
    %1678 = vmatpush2.msra.mxu0 %v397
    %1679 = vmatprep.mubr.f32.mxu0 %v1396
    %1680 = vmatmul.mubr.f32.gmra.mxu0 %v1614
    %v1681 = vpop.f32.mrf.mxu0
    %v1682 = vadd.f32 %v418, %v1681
    %v1683 = vpop.f32.mrf.mxu0
    %1684 = vdwg.mxu0
    %v1685 = vmax.f32 %v1682, 0.0
    %1686 = vmatprep.subr.mxu0 0.0
    %1687 = vmatpush1.msra.mxu0 %v506
    %1688 = vmatprep.subr.mxu0 0.0
    %1689 = vmatpush1.msra.mxu0 %v505
    %1690 = vmatprep.subr.mxu0 0.0
    %1691 = vmatpush1.msra.mxu0 %v504
    %1692 = vmatprep.subr.mxu0 0.0
    %1693 = vmatpush1.msra.mxu0 %v503
    %1694 = vmatprep.subr.mxu0 0.0
    %1695 = vmatpush1.msra.mxu0 %v502
    %1696 = vmatprep.subr.mxu0 0.0
    %1697 = vmatpush1.msra.mxu0 %v501
    %1698 = vmatprep.subr.mxu0 0.0
    %1699 = vmatpush1.msra.mxu0 %v500
    %1700 = vmatprep.subr.mxu0 0.0
    %1701 = vmatpush1.msra.mxu0 %v499
    %1702 = vmatprep.subr.mxu0 0.0
    %1703 = vmatpush1.msra.mxu0 %v498
    %1704 = vmatprep.subr.mxu0 0.0
    %1705 = vmatpush1.msra.mxu0 %v497
    %1706 = vmatprep.subr.mxu0 0.0
    %1707 = vmatpush1.msra.mxu0 %v496
    %1708 = vmatprep.subr.mxu0 0.0
    %1709 = vmatpush1.msra.mxu0 %v495
    %1710 = vmatprep.subr.mxu0 0.0
    %1711 = vmatpush1.msra.mxu0 %v494
    %1712 = vmatprep.subr.mxu0 0.0
    %1713 = vmatpush1.msra.mxu0 %v493
    %1714 = vmatprep.subr.mxu0 0.0
    %1715 = vmatpush1.msra.mxu0 %v492
    %1716 = vmatprep.subr.mxu0 0.0
    %1717 = vmatpush1.msra.mxu0 %v491
    %1718 = vmatprep.subr.mxu0 0.0
    %1719 = vmatpush2.msra.mxu0 %v522
    %1720 = vmatprep.subr.mxu0 0.0
    %1721 = vmatpush2.msra.mxu0 %v521
    %1722 = vmatprep.subr.mxu0 0.0
    %1723 = vmatpush2.msra.mxu0 %v520
    %1724 = vmatprep.subr.mxu0 0.0
    %1725 = vmatpush2.msra.mxu0 %v519
    %1726 = vmatprep.subr.mxu0 0.0
    %1727 = vmatpush2.msra.mxu0 %v518
    %1728 = vmatprep.subr.mxu0 0.0
    %1729 = vmatpush2.msra.mxu0 %v517
    %1730 = vmatprep.subr.mxu0 0.0
    %1731 = vmatpush2.msra.mxu0 %v516
    %1732 = vmatprep.subr.mxu0 0.0
    %1733 = vmatpush2.msra.mxu0 %v515
    %1734 = vmatprep.subr.mxu0 0.0
    %1735 = vmatpush2.msra.mxu0 %v514
    %1736 = vmatprep.subr.mxu0 0.0
    %1737 = vmatpush2.msra.mxu0 %v513
    %1738 = vmatprep.subr.mxu0 0.0
    %1739 = vmatpush2.msra.mxu0 %v512
    %1740 = vmatprep.subr.mxu0 0.0
    %1741 = vmatpush2.msra.mxu0 %v511
    %1742 = vmatprep.subr.mxu0 0.0
    %1743 = vmatpush2.msra.mxu0 %v510
    %1744 = vmatprep.subr.mxu0 0.0
    %1745 = vmatpush2.msra.mxu0 %v509
    %1746 = vmatprep.subr.mxu0 0.0
    %1747 = vmatpush2.msra.mxu0 %v508
    %1748 = vmatprep.subr.mxu0 0.0
    %1749 = vmatpush2.msra.mxu0 %v507
    %1750 = vmatprep.mubr.f32.mxu0 %v1467
    %1751 = vmatmul.mubr.f32.gmra.mxu0 %v1685
    %v1752 = vpop.f32.mrf.mxu0
    %v1753 = vadd.f32 %v528, %v1752
    %v1754 = vpop.f32.mrf.mxu0
    %1755 = vdwg.mxu0
    %v1756 = vmax.f32 %v1753, 0.0
    %s1757 = scalar_lea.vmem %s0, 48
    %v1758 = vld [vmem:[%s1757] sm:$0xff]
    %v1760 = vsel %vm144, %v1758, 0
    %1762 = vmatprep.subr.mxu0 0.0
    %1763 = vmatpush1.msra.mxu0 0.0
    %1764 = vmatprep.subr.mxu0 0.0
    %1765 = vmatpush1.msra.mxu0 0.0
    %1766 = vmatprep.subr.mxu0 0.0
    %1767 = vmatpush1.msra.mxu0 0.0
    %1768 = vmatprep.subr.mxu0 0.0
    %1769 = vmatpush1.msra.mxu0 0.0
    %1770 = vmatprep.subr.mxu0 0.0
    %1771 = vmatpush1.msra.mxu0 %v136
    %1772 = vmatprep.subr.mxu0 0.0
    %1773 = vmatpush1.msra.mxu0 %v135
    %1774 = vmatprep.subr.mxu0 0.0
    %1775 = vmatpush1.msra.mxu0 %v134
    %1776 = vmatprep.subr.mxu0 0.0
    %1777 = vmatpush1.msra.mxu0 %v133
    %1778 = vmatprep.subr.mxu0 0.0
    %1779 = vmatpush1.msra.mxu0 %v132
    %1780 = vmatprep.subr.mxu0 0.0
    %1781 = vmatpush1.msra.mxu0 %v131
    %1782 = vmatprep.subr.mxu0 0.0
    %1783 = vmatpush1.msra.mxu0 %v130
    %1784 = vmatprep.subr.mxu0 0.0
    %1785 = vmatpush1.msra.mxu0 %v129
    %1786 = vmatprep.subr.mxu0 0.0
    %1787 = vmatpush1.msra.mxu0 %v128
    %1788 = vmatprep.subr.mxu0 0.0
    %1789 = vmatpush1.msra.mxu0 %v127
    %1790 = vmatprep.subr.mxu0 0.0
    %1791 = vmatpush1.msra.mxu0 %v126
    %1792 = vmatprep.subr.mxu0 0.0
    %1793 = vmatpush1.msra.mxu0 %v125
    %1794 = vmatprep.subr.mxu0 0.0
    %1795 = vmatpush2.msra.mxu0 0.0
    %1796 = vmatprep.subr.mxu0 0.0
    %1797 = vmatpush2.msra.mxu0 0.0
    %1798 = vmatprep.subr.mxu0 0.0
    %1799 = vmatpush2.msra.mxu0 0.0
    %1800 = vmatprep.subr.mxu0 0.0
    %1801 = vmatpush2.msra.mxu0 0.0
    %1802 = vmatprep.subr.mxu0 0.0
    %1803 = vmatpush2.msra.mxu0 0.0
    %1804 = vmatprep.subr.mxu0 0.0
    %1805 = vmatpush2.msra.mxu0 0.0
    %1806 = vmatprep.subr.mxu0 0.0
    %1807 = vmatpush2.msra.mxu0 0.0
    %1808 = vmatprep.subr.mxu0 0.0
    %1809 = vmatpush2.msra.mxu0 0.0
    %1810 = vmatprep.subr.mxu0 0.0
    %1811 = vmatpush2.msra.mxu0 0.0
    %1812 = vmatprep.subr.mxu0 0.0
    %1813 = vmatpush2.msra.mxu0 0.0
    %1814 = vmatprep.subr.mxu0 0.0
    %1815 = vmatpush2.msra.mxu0 0.0
    %1816 = vmatprep.subr.mxu0 0.0
    %1817 = vmatpush2.msra.mxu0 0.0
    %1818 = vmatprep.subr.mxu0 0.0
    %1819 = vmatpush2.msra.mxu0 0.0
    %1820 = vmatprep.subr.mxu0 0.0
    %1821 = vmatpush2.msra.mxu0 0.0
    %1822 = vmatprep.subr.mxu0 0.0
    %1823 = vmatpush2.msra.mxu0 0.0
    %1824 = vmatprep.subr.mxu0 0.0
    %1825 = vmatpush2.msra.mxu0 0.0
    %1826 = vmatprep.mubr.f32.mxu0 0.0
    %1827 = vmatmul.mubr.f32.gmra.mxu0 %v1760
    %v1828 = vpop.f32.mrf.mxu0
    %v1829 = vadd.f32 %v142, %v1828
    %v1830 = vpop.f32.mrf.mxu0
    %1831 = vdwg.mxu0
    %1832 = vmatprep.subr.mxu0 0.0
    %1833 = vmatpush1.msra.mxu0 %v308
    %1834 = vmatprep.subr.mxu0 0.0
    %1835 = vmatpush1.msra.mxu0 %v307
    %1836 = vmatprep.subr.mxu0 0.0
    %1837 = vmatpush1.msra.mxu0 %v306
    %1838 = vmatprep.subr.mxu0 0.0
    %1839 = vmatpush1.msra.mxu0 %v305
    %1840 = vmatprep.subr.mxu0 0.0
    %1841 = vmatpush1.msra.mxu0 %v304
    %1842 = vmatprep.subr.mxu0 0.0
    %1843 = vmatpush1.msra.mxu0 %v303
    %1844 = vmatprep.subr.mxu0 0.0
    %1845 = vmatpush1.msra.mxu0 %v302
    %1846 = vmatprep.subr.mxu0 0.0
    %1847 = vmatpush1.msra.mxu0 %v301
    %1848 = vmatprep.subr.mxu0 0.0
    %1849 = vmatpush1.msra.mxu0 %v300
    %1850 = vmatprep.subr.mxu0 0.0
    %1851 = vmatpush1.msra.mxu0 %v299
    %1852 = vmatprep.subr.mxu0 0.0
    %1853 = vmatpush1.msra.mxu0 %v298
    %1854 = vmatprep.subr.mxu0 0.0
    %1855 = vmatpush1.msra.mxu0 %v297
    %1856 = vmatprep.subr.mxu0 0.0
    %1857 = vmatpush1.msra.mxu0 %v296
    %1858 = vmatprep.subr.mxu0 0.0
    %1859 = vmatpush1.msra.mxu0 %v295
    %1860 = vmatprep.subr.mxu0 0.0
    %1861 = vmatpush1.msra.mxu0 %v294
    %1862 = vmatprep.subr.mxu0 0.0
    %1863 = vmatpush1.msra.mxu0 %v293
    %1864 = vmatprep.subr.mxu0 0.0
    %1865 = vmatpush2.msra.mxu0 0.0
    %1866 = vmatprep.subr.mxu0 0.0
    %1867 = vmatpush2.msra.mxu0 0.0
    %1868 = vmatprep.subr.mxu0 0.0
    %1869 = vmatpush2.msra.mxu0 0.0
    %1870 = vmatprep.subr.mxu0 0.0
    %1871 = vmatpush2.msra.mxu0 0.0
    %1872 = vmatprep.subr.mxu0 0.0
    %1873 = vmatpush2.msra.mxu0 0.0
    %1874 = vmatprep.subr.mxu0 0.0
    %1875 = vmatpush2.msra.mxu0 0.0
    %1876 = vmatprep.subr.mxu0 0.0
    %1877 = vmatpush2.msra.mxu0 0.0
    %1878 = vmatprep.subr.mxu0 0.0
    %1879 = vmatpush2.msra.mxu0 0.0
    %1880 = vmatprep.subr.mxu0 0.0
    %1881 = vmatpush2.msra.mxu0 0.0
    %1882 = vmatprep.subr.mxu0 0.0
    %1883 = vmatpush2.msra.mxu0 0.0
    %1884 = vmatprep.subr.mxu0 0.0
    %1885 = vmatpush2.msra.mxu0 0.0
    %1886 = vmatprep.subr.mxu0 0.0
    %1887 = vmatpush2.msra.mxu0 0.0
    %1888 = vmatprep.subr.mxu0 0.0
    %1889 = vmatpush2.msra.mxu0 0.0
    %1890 = vmatprep.subr.mxu0 0.0
    %1891 = vmatpush2.msra.mxu0 0.0
    %1892 = vmatprep.subr.mxu0 0.0
    %1893 = vmatpush2.msra.mxu0 0.0
    %1894 = vmatprep.subr.mxu0 0.0
    %1895 = vmatpush2.msra.mxu0 0.0
    %1896 = vmatprep.mubr.f32.mxu0 0.0
    %1897 = vmatmul.mubr.f32.gmra.mxu0 %v1614
    %v1898 = vpop.f32.mrf.mxu0
    %v1899 = vadd.f32 0.0, %v1898
    %v1900 = vpop.f32.mrf.mxu0
    %1901 = vdwg.mxu0
    %v1902 = vadd.f32 %v1540, %v1899
    %v1903 = vmax.f32 %v1902, 0.0
    %1904 = vmatprep.subr.mxu0 0.0
    %1905 = vmatpush1.msra.mxu0 %v396
    %1906 = vmatprep.subr.mxu0 0.0
    %1907 = vmatpush1.msra.mxu0 %v395
    %1908 = vmatprep.subr.mxu0 0.0
    %1909 = vmatpush1.msra.mxu0 %v394
    %1910 = vmatprep.subr.mxu0 0.0
    %1911 = vmatpush1.msra.mxu0 %v393
    %1912 = vmatprep.subr.mxu0 0.0
    %1913 = vmatpush1.msra.mxu0 %v392
    %1914 = vmatprep.subr.mxu0 0.0
    %1915 = vmatpush1.msra.mxu0 %v391
    %1916 = vmatprep.subr.mxu0 0.0
    %1917 = vmatpush1.msra.mxu0 %v390
    %1918 = vmatprep.subr.mxu0 0.0
    %1919 = vmatpush1.msra.mxu0 %v389
    %1920 = vmatprep.subr.mxu0 0.0
    %1921 = vmatpush1.msra.mxu0 %v388
    %1922 = vmatprep.subr.mxu0 0.0
    %1923 = vmatpush1.msra.mxu0 %v387
    %1924 = vmatprep.subr.mxu0 0.0
    %1925 = vmatpush1.msra.mxu0 %v386
    %1926 = vmatprep.subr.mxu0 0.0
    %1927 = vmatpush1.msra.mxu0 %v385
    %1928 = vmatprep.subr.mxu0 0.0
    %1929 = vmatpush1.msra.mxu0 %v384
    %1930 = vmatprep.subr.mxu0 0.0
    %1931 = vmatpush1.msra.mxu0 %v383
    %1932 = vmatprep.subr.mxu0 0.0
    %1933 = vmatpush1.msra.mxu0 %v382
    %1934 = vmatprep.subr.mxu0 0.0
    %1935 = vmatpush1.msra.mxu0 %v381
    %1936 = vmatprep.subr.mxu0 0.0
    %1937 = vmatpush2.msra.mxu0 %v412
    %1938 = vmatprep.subr.mxu0 0.0
    %1939 = vmatpush2.msra.mxu0 %v411
    %1940 = vmatprep.subr.mxu0 0.0
    %1941 = vmatpush2.msra.mxu0 %v410
    %1942 = vmatprep.subr.mxu0 0.0
    %1943 = vmatpush2.msra.mxu0 %v409
    %1944 = vmatprep.subr.mxu0 0.0
    %1945 = vmatpush2.msra.mxu0 %v408
    %1946 = vmatprep.subr.mxu0 0.0
    %1947 = vmatpush2.msra.mxu0 %v407
    %1948 = vmatprep.subr.mxu0 0.0
    %1949 = vmatpush2.msra.mxu0 %v406
    %1950 = vmatprep.subr.mxu0 0.0
    %1951 = vmatpush2.msra.mxu0 %v405
    %1952 = vmatprep.subr.mxu0 0.0
    %1953 = vmatpush2.msra.mxu0 %v404
    %1954 = vmatprep.subr.mxu0 0.0
    %1955 = vmatpush2.msra.mxu0 %v403
    %1956 = vmatprep.subr.mxu0 0.0
    %1957 = vmatpush2.msra.mxu0 %v402
    %1958 = vmatprep.subr.mxu0 0.0
    %1959 = vmatpush2.msra.mxu0 %v401
    %1960 = vmatprep.subr.mxu0 0.0
    %1961 = vmatpush2.msra.mxu0 %v400
    %1962 = vmatprep.subr.mxu0 0.0
    %1963 = vmatpush2.msra.mxu0 %v399
    %1964 = vmatprep.subr.mxu0 0.0
    %1965 = vmatpush2.msra.mxu0 %v398
    %1966 = vmatprep.subr.mxu0 0.0
    %1967 = vmatpush2.msra.mxu0 %v397
    %1968 = vmatprep.mubr.f32.mxu0 %v1685
    %1969 = vmatmul.mubr.f32.gmra.mxu0 %v1903
    %v1970 = vpop.f32.mrf.mxu0
    %v1971 = vadd.f32 %v418, %v1970
    %v1972 = vpop.f32.mrf.mxu0
    %1973 = vdwg.mxu0
    %v1974 = vmax.f32 %v1971, 0.0
    %1975 = vmatprep.subr.mxu0 0.0
    %1976 = vmatpush1.msra.mxu0 %v506
    %1977 = vmatprep.subr.mxu0 0.0
    %1978 = vmatpush1.msra.mxu0 %v505
    %1979 = vmatprep.subr.mxu0 0.0
    %1980 = vmatpush1.msra.mxu0 %v504
    %1981 = vmatprep.subr.mxu0 0.0
    %1982 = vmatpush1.msra.mxu0 %v503
    %1983 = vmatprep.subr.mxu0 0.0
    %1984 = vmatpush1.msra.mxu0 %v502
    %1985 = vmatprep.subr.mxu0 0.0
    %1986 = vmatpush1.msra.mxu0 %v501
    %1987 = vmatprep.subr.mxu0 0.0
    %1988 = vmatpush1.msra.mxu0 %v500
    %1989 = vmatprep.subr.mxu0 0.0
    %1990 = vmatpush1.msra.mxu0 %v499
    %1991 = vmatprep.subr.mxu0 0.0
    %1992 = vmatpush1.msra.mxu0 %v498
    %1993 = vmatprep.subr.mxu0 0.0
    %1994 = vmatpush1.msra.mxu0 %v497
    %1995 = vmatprep.subr.mxu0 0.0
    %1996 = vmatpush1.msra.mxu0 %v496
    %1997 = vmatprep.subr.mxu0 0.0
    %1998 = vmatpush1.msra.mxu0 %v495
    %1999 = vmatprep.subr.mxu0 0.0
    %2000 = vmatpush1.msra.mxu0 %v494
    %2001 = vmatprep.subr.mxu0 0.0
    %2002 = vmatpush1.msra.mxu0 %v493
    %2003 = vmatprep.subr.mxu0 0.0
    %2004 = vmatpush1.msra.mxu0 %v492
    %2005 = vmatprep.subr.mxu0 0.0
    %2006 = vmatpush1.msra.mxu0 %v491
    %2007 = vmatprep.subr.mxu0 0.0
    %2008 = vmatpush2.msra.mxu0 %v522
    %2009 = vmatprep.subr.mxu0 0.0
    %2010 = vmatpush2.msra.mxu0 %v521
    %2011 = vmatprep.subr.mxu0 0.0
    %2012 = vmatpush2.msra.mxu0 %v520
    %2013 = vmatprep.subr.mxu0 0.0
    %2014 = vmatpush2.msra.mxu0 %v519
    %2015 = vmatprep.subr.mxu0 0.0
    %2016 = vmatpush2.msra.mxu0 %v518
    %2017 = vmatprep.subr.mxu0 0.0
    %2018 = vmatpush2.msra.mxu0 %v517
    %2019 = vmatprep.subr.mxu0 0.0
    %2020 = vmatpush2.msra.mxu0 %v516
    %2021 = vmatprep.subr.mxu0 0.0
    %2022 = vmatpush2.msra.mxu0 %v515
    %2023 = vmatprep.subr.mxu0 0.0
    %2024 = vmatpush2.msra.mxu0 %v514
    %2025 = vmatprep.subr.mxu0 0.0
    %2026 = vmatpush2.msra.mxu0 %v513
    %2027 = vmatprep.subr.mxu0 0.0
    %2028 = vmatpush2.msra.mxu0 %v512
    %2029 = vmatprep.subr.mxu0 0.0
    %2030 = vmatpush2.msra.mxu0 %v511
    %2031 = vmatprep.subr.mxu0 0.0
    %2032 = vmatpush2.msra.mxu0 %v510
    %2033 = vmatprep.subr.mxu0 0.0
    %2034 = vmatpush2.msra.mxu0 %v509
    %2035 = vmatprep.subr.mxu0 0.0
    %2036 = vmatpush2.msra.mxu0 %v508
    %2037 = vmatprep.subr.mxu0 0.0
    %2038 = vmatpush2.msra.mxu0 %v507
    %2039 = vmatprep.mubr.f32.mxu0 %v1756
    %2040 = vmatmul.mubr.f32.gmra.mxu0 %v1974
    %v2041 = vpop.f32.mrf.mxu0
    %v2042 = vadd.f32 %v528, %v2041
    %v2043 = vpop.f32.mrf.mxu0
    %2044 = vdwg.mxu0
    %v2045 = vmax.f32 %v2042, 0.0
    %s2046 = scalar_lea.vmem %s0, 56
    %v2047 = vld [vmem:[%s2046] sm:$0xff]
    %v2049 = vsel %vm144, %v2047, 0
    %2051 = vmatprep.subr.mxu0 0.0
    %2052 = vmatpush1.msra.mxu0 0.0
    %2053 = vmatprep.subr.mxu0 0.0
    %2054 = vmatpush1.msra.mxu0 0.0
    %2055 = vmatprep.subr.mxu0 0.0
    %2056 = vmatpush1.msra.mxu0 0.0
    %2057 = vmatprep.subr.mxu0 0.0
    %2058 = vmatpush1.msra.mxu0 0.0
    %2059 = vmatprep.subr.mxu0 0.0
    %2060 = vmatpush1.msra.mxu0 %v136
    %2061 = vmatprep.subr.mxu0 0.0
    %2062 = vmatpush1.msra.mxu0 %v135
    %2063 = vmatprep.subr.mxu0 0.0
    %2064 = vmatpush1.msra.mxu0 %v134
    %2065 = vmatprep.subr.mxu0 0.0
    %2066 = vmatpush1.msra.mxu0 %v133
    %2067 = vmatprep.subr.mxu0 0.0
    %2068 = vmatpush1.msra.mxu0 %v132
    %2069 = vmatprep.subr.mxu0 0.0
    %2070 = vmatpush1.msra.mxu0 %v131
    %2071 = vmatprep.subr.mxu0 0.0
    %2072 = vmatpush1.msra.mxu0 %v130
    %2073 = vmatprep.subr.mxu0 0.0
    %2074 = vmatpush1.msra.mxu0 %v129
    %2075 = vmatprep.subr.mxu0 0.0
    %2076 = vmatpush1.msra.mxu0 %v128
    %2077 = vmatprep.subr.mxu0 0.0
    %2078 = vmatpush1.msra.mxu0 %v127
    %2079 = vmatprep.subr.mxu0 0.0
    %2080 = vmatpush1.msra.mxu0 %v126
    %2081 = vmatprep.subr.mxu0 0.0
    %2082 = vmatpush1.msra.mxu0 %v125
    %2083 = vmatprep.subr.mxu0 0.0
    %2084 = vmatpush2.msra.mxu0 0.0
    %2085 = vmatprep.subr.mxu0 0.0
    %2086 = vmatpush2.msra.mxu0 0.0
    %2087 = vmatprep.subr.mxu0 0.0
    %2088 = vmatpush2.msra.mxu0 0.0
    %2089 = vmatprep.subr.mxu0 0.0
    %2090 = vmatpush2.msra.mxu0 0.0
    %2091 = vmatprep.subr.mxu0 0.0
    %2092 = vmatpush2.msra.mxu0 0.0
    %2093 = vmatprep.subr.mxu0 0.0
    %2094 = vmatpush2.msra.mxu0 0.0
    %2095 = vmatprep.subr.mxu0 0.0
    %2096 = vmatpush2.msra.mxu0 0.0
    %2097 = vmatprep.subr.mxu0 0.0
    %2098 = vmatpush2.msra.mxu0 0.0
    %2099 = vmatprep.subr.mxu0 0.0
    %2100 = vmatpush2.msra.mxu0 0.0
    %2101 = vmatprep.subr.mxu0 0.0
    %2102 = vmatpush2.msra.mxu0 0.0
    %2103 = vmatprep.subr.mxu0 0.0
    %2104 = vmatpush2.msra.mxu0 0.0
    %2105 = vmatprep.subr.mxu0 0.0
    %2106 = vmatpush2.msra.mxu0 0.0
    %2107 = vmatprep.subr.mxu0 0.0
    %2108 = vmatpush2.msra.mxu0 0.0
    %2109 = vmatprep.subr.mxu0 0.0
    %2110 = vmatpush2.msra.mxu0 0.0
    %2111 = vmatprep.subr.mxu0 0.0
    %2112 = vmatpush2.msra.mxu0 0.0
    %2113 = vmatprep.subr.mxu0 0.0
    %2114 = vmatpush2.msra.mxu0 0.0
    %2115 = vmatprep.mubr.f32.mxu0 0.0
    %2116 = vmatmul.mubr.f32.gmra.mxu0 %v2049
    %v2117 = vpop.f32.mrf.mxu0
    %v2118 = vadd.f32 %v142, %v2117
    %v2119 = vpop.f32.mrf.mxu0
    %2120 = vdwg.mxu0
    %2121 = vmatprep.subr.mxu0 0.0
    %2122 = vmatpush1.msra.mxu0 %v308
    %2123 = vmatprep.subr.mxu0 0.0
    %2124 = vmatpush1.msra.mxu0 %v307
    %2125 = vmatprep.subr.mxu0 0.0
    %2126 = vmatpush1.msra.mxu0 %v306
    %2127 = vmatprep.subr.mxu0 0.0
    %2128 = vmatpush1.msra.mxu0 %v305
    %2129 = vmatprep.subr.mxu0 0.0
    %2130 = vmatpush1.msra.mxu0 %v304
    %2131 = vmatprep.subr.mxu0 0.0
    %2132 = vmatpush1.msra.mxu0 %v303
    %2133 = vmatprep.subr.mxu0 0.0
    %2134 = vmatpush1.msra.mxu0 %v302
    %2135 = vmatprep.subr.mxu0 0.0
    %2136 = vmatpush1.msra.mxu0 %v301
    %2137 = vmatprep.subr.mxu0 0.0
    %2138 = vmatpush1.msra.mxu0 %v300
    %2139 = vmatprep.subr.mxu0 0.0
    %2140 = vmatpush1.msra.mxu0 %v299
    %2141 = vmatprep.subr.mxu0 0.0
    %2142 = vmatpush1.msra.mxu0 %v298
    %2143 = vmatprep.subr.mxu0 0.0
    %2144 = vmatpush1.msra.mxu0 %v297
    %2145 = vmatprep.subr.mxu0 0.0
    %2146 = vmatpush1.msra.mxu0 %v296
    %2147 = vmatprep.subr.mxu0 0.0
    %2148 = vmatpush1.msra.mxu0 %v295
    %2149 = vmatprep.subr.mxu0 0.0
    %2150 = vmatpush1.msra.mxu0 %v294
    %2151 = vmatprep.subr.mxu0 0.0
    %2152 = vmatpush1.msra.mxu0 %v293
    %2153 = vmatprep.subr.mxu0 0.0
    %2154 = vmatpush2.msra.mxu0 0.0
    %2155 = vmatprep.subr.mxu0 0.0
    %2156 = vmatpush2.msra.mxu0 0.0
    %2157 = vmatprep.subr.mxu0 0.0
    %2158 = vmatpush2.msra.mxu0 0.0
    %2159 = vmatprep.subr.mxu0 0.0
    %2160 = vmatpush2.msra.mxu0 0.0
    %2161 = vmatprep.subr.mxu0 0.0
    %2162 = vmatpush2.msra.mxu0 0.0
    %2163 = vmatprep.subr.mxu0 0.0
    %2164 = vmatpush2.msra.mxu0 0.0
    %2165 = vmatprep.subr.mxu0 0.0
    %2166 = vmatpush2.msra.mxu0 0.0
    %2167 = vmatprep.subr.mxu0 0.0
    %2168 = vmatpush2.msra.mxu0 0.0
    %2169 = vmatprep.subr.mxu0 0.0
    %2170 = vmatpush2.msra.mxu0 0.0
    %2171 = vmatprep.subr.mxu0 0.0
    %2172 = vmatpush2.msra.mxu0 0.0
    %2173 = vmatprep.subr.mxu0 0.0
    %2174 = vmatpush2.msra.mxu0 0.0
    %2175 = vmatprep.subr.mxu0 0.0
    %2176 = vmatpush2.msra.mxu0 0.0
    %2177 = vmatprep.subr.mxu0 0.0
    %2178 = vmatpush2.msra.mxu0 0.0
    %2179 = vmatprep.subr.mxu0 0.0
    %2180 = vmatpush2.msra.mxu0 0.0
    %2181 = vmatprep.subr.mxu0 0.0
    %2182 = vmatpush2.msra.mxu0 0.0
    %2183 = vmatprep.subr.mxu0 0.0
    %2184 = vmatpush2.msra.mxu0 0.0
    %2185 = vmatprep.mubr.f32.mxu0 0.0
    %2186 = vmatmul.mubr.f32.gmra.mxu0 %v1903
    %v2187 = vpop.f32.mrf.mxu0
    %v2188 = vadd.f32 0.0, %v2187
    %v2189 = vpop.f32.mrf.mxu0
    %2190 = vdwg.mxu0
    %v2191 = vadd.f32 %v1829, %v2188
    %v2192 = vmax.f32 %v2191, 0.0
    %2193 = vmatprep.subr.mxu0 0.0
    %2194 = vmatpush1.msra.mxu0 %v396
    %2195 = vmatprep.subr.mxu0 0.0
    %2196 = vmatpush1.msra.mxu0 %v395
    %2197 = vmatprep.subr.mxu0 0.0
    %2198 = vmatpush1.msra.mxu0 %v394
    %2199 = vmatprep.subr.mxu0 0.0
    %2200 = vmatpush1.msra.mxu0 %v393
    %2201 = vmatprep.subr.mxu0 0.0
    %2202 = vmatpush1.msra.mxu0 %v392
    %2203 = vmatprep.subr.mxu0 0.0
    %2204 = vmatpush1.msra.mxu0 %v391
    %2205 = vmatprep.subr.mxu0 0.0
    %2206 = vmatpush1.msra.mxu0 %v390
    %2207 = vmatprep.subr.mxu0 0.0
    %2208 = vmatpush1.msra.mxu0 %v389
    %2209 = vmatprep.subr.mxu0 0.0
    %2210 = vmatpush1.msra.mxu0 %v388
    %2211 = vmatprep.subr.mxu0 0.0
    %2212 = vmatpush1.msra.mxu0 %v387
    %2213 = vmatprep.subr.mxu0 0.0
    %2214 = vmatpush1.msra.mxu0 %v386
    %2215 = vmatprep.subr.mxu0 0.0
    %2216 = vmatpush1.msra.mxu0 %v385
    %2217 = vmatprep.subr.mxu0 0.0
    %2218 = vmatpush1.msra.mxu0 %v384
    %2219 = vmatprep.subr.mxu0 0.0
    %2220 = vmatpush1.msra.mxu0 %v383
    %2221 = vmatprep.subr.mxu0 0.0
    %2222 = vmatpush1.msra.mxu0 %v382
    %2223 = vmatprep.subr.mxu0 0.0
    %2224 = vmatpush1.msra.mxu0 %v381
    %2225 = vmatprep.subr.mxu0 0.0
    %2226 = vmatpush2.msra.mxu0 %v412
    %2227 = vmatprep.subr.mxu0 0.0
    %2228 = vmatpush2.msra.mxu0 %v411
    %2229 = vmatprep.subr.mxu0 0.0
    %2230 = vmatpush2.msra.mxu0 %v410
    %2231 = vmatprep.subr.mxu0 0.0
    %2232 = vmatpush2.msra.mxu0 %v409
    %2233 = vmatprep.subr.mxu0 0.0
    %2234 = vmatpush2.msra.mxu0 %v408
    %2235 = vmatprep.subr.mxu0 0.0
    %2236 = vmatpush2.msra.mxu0 %v407
    %2237 = vmatprep.subr.mxu0 0.0
    %2238 = vmatpush2.msra.mxu0 %v406
    %2239 = vmatprep.subr.mxu0 0.0
    %2240 = vmatpush2.msra.mxu0 %v405
    %2241 = vmatprep.subr.mxu0 0.0
    %2242 = vmatpush2.msra.mxu0 %v404
    %2243 = vmatprep.subr.mxu0 0.0
    %2244 = vmatpush2.msra.mxu0 %v403
    %2245 = vmatprep.subr.mxu0 0.0
    %2246 = vmatpush2.msra.mxu0 %v402
    %2247 = vmatprep.subr.mxu0 0.0
    %2248 = vmatpush2.msra.mxu0 %v401
    %2249 = vmatprep.subr.mxu0 0.0
    %2250 = vmatpush2.msra.mxu0 %v400
    %2251 = vmatprep.subr.mxu0 0.0
    %2252 = vmatpush2.msra.mxu0 %v399
    %2253 = vmatprep.subr.mxu0 0.0
    %2254 = vmatpush2.msra.mxu0 %v398
    %2255 = vmatprep.subr.mxu0 0.0
    %2256 = vmatpush2.msra.mxu0 %v397
    %2257 = vmatprep.mubr.f32.mxu0 %v1974
    %2258 = vmatmul.mubr.f32.gmra.mxu0 %v2192
    %v2259 = vpop.f32.mrf.mxu0
    %v2260 = vadd.f32 %v418, %v2259
    %v2261 = vpop.f32.mrf.mxu0
    %2262 = vdwg.mxu0
    %v2263 = vmax.f32 %v2260, 0.0
    %2264 = vmatprep.subr.mxu0 0.0
    %2265 = vmatpush1.msra.mxu0 %v506
    %2266 = vmatprep.subr.mxu0 0.0
    %2267 = vmatpush1.msra.mxu0 %v505
    %2268 = vmatprep.subr.mxu0 0.0
    %2269 = vmatpush1.msra.mxu0 %v504
    %2270 = vmatprep.subr.mxu0 0.0
    %2271 = vmatpush1.msra.mxu0 %v503
    %2272 = vmatprep.subr.mxu0 0.0
    %2273 = vmatpush1.msra.mxu0 %v502
    %2274 = vmatprep.subr.mxu0 0.0
    %2275 = vmatpush1.msra.mxu0 %v501
    %2276 = vmatprep.subr.mxu0 0.0
    %2277 = vmatpush1.msra.mxu0 %v500
    %2278 = vmatprep.subr.mxu0 0.0
    %2279 = vmatpush1.msra.mxu0 %v499
    %2280 = vmatprep.subr.mxu0 0.0
    %2281 = vmatpush1.msra.mxu0 %v498
    %2282 = vmatprep.subr.mxu0 0.0
    %2283 = vmatpush1.msra.mxu0 %v497
    %2284 = vmatprep.subr.mxu0 0.0
    %2285 = vmatpush1.msra.mxu0 %v496
    %2286 = vmatprep.subr.mxu0 0.0
    %2287 = vmatpush1.msra.mxu0 %v495
    %2288 = vmatprep.subr.mxu0 0.0
    %2289 = vmatpush1.msra.mxu0 %v494
    %2290 = vmatprep.subr.mxu0 0.0
    %2291 = vmatpush1.msra.mxu0 %v493
    %2292 = vmatprep.subr.mxu0 0.0
    %2293 = vmatpush1.msra.mxu0 %v492
    %2294 = vmatprep.subr.mxu0 0.0
    %2295 = vmatpush1.msra.mxu0 %v491
    %2296 = vmatprep.subr.mxu0 0.0
    %2297 = vmatpush2.msra.mxu0 %v522
    %2298 = vmatprep.subr.mxu0 0.0
    %2299 = vmatpush2.msra.mxu0 %v521
    %2300 = vmatprep.subr.mxu0 0.0
    %2301 = vmatpush2.msra.mxu0 %v520
    %2302 = vmatprep.subr.mxu0 0.0
    %2303 = vmatpush2.msra.mxu0 %v519
    %2304 = vmatprep.subr.mxu0 0.0
    %2305 = vmatpush2.msra.mxu0 %v518
    %2306 = vmatprep.subr.mxu0 0.0
    %2307 = vmatpush2.msra.mxu0 %v517
    %2308 = vmatprep.subr.mxu0 0.0
    %2309 = vmatpush2.msra.mxu0 %v516
    %2310 = vmatprep.subr.mxu0 0.0
    %2311 = vmatpush2.msra.mxu0 %v515
    %2312 = vmatprep.subr.mxu0 0.0
    %2313 = vmatpush2.msra.mxu0 %v514
    %2314 = vmatprep.subr.mxu0 0.0
    %2315 = vmatpush2.msra.mxu0 %v513
    %2316 = vmatprep.subr.mxu0 0.0
    %2317 = vmatpush2.msra.mxu0 %v512
    %2318 = vmatprep.subr.mxu0 0.0
    %2319 = vmatpush2.msra.mxu0 %v511
    %2320 = vmatprep.subr.mxu0 0.0
    %2321 = vmatpush2.msra.mxu0 %v510
    %2322 = vmatprep.subr.mxu0 0.0
    %2323 = vmatpush2.msra.mxu0 %v509
    %2324 = vmatprep.subr.mxu0 0.0
    %2325 = vmatpush2.msra.mxu0 %v508
    %2326 = vmatprep.subr.mxu0 0.0
    %2327 = vmatpush2.msra.mxu0 %v507
    %2328 = vmatprep.mubr.f32.mxu0 %v2045
    %2329 = vmatmul.mubr.f32.gmra.mxu0 %v2263
    %v2330 = vpop.f32.mrf.mxu0
    %v2331 = vadd.f32 %v528, %v2330
    %v2332 = vpop.f32.mrf.mxu0
    %2333 = vdwg.mxu0
    %v2334 = vmax.f32 %v2331, 0.0
    %2335 = vmatprep.subr.mxu0 0.0
    %2336 = vmatpush1.msra.mxu0 %v308
    %2337 = vmatprep.subr.mxu0 0.0
    %2338 = vmatpush1.msra.mxu0 %v307
    %2339 = vmatprep.subr.mxu0 0.0
    %2340 = vmatpush1.msra.mxu0 %v306
    %2341 = vmatprep.subr.mxu0 0.0
    %2342 = vmatpush1.msra.mxu0 %v305
    %2343 = vmatprep.subr.mxu0 0.0
    %2344 = vmatpush1.msra.mxu0 %v304
    %2345 = vmatprep.subr.mxu0 0.0
    %2346 = vmatpush1.msra.mxu0 %v303
    %2347 = vmatprep.subr.mxu0 0.0
    %2348 = vmatpush1.msra.mxu0 %v302
    %2349 = vmatprep.subr.mxu0 0.0
    %2350 = vmatpush1.msra.mxu0 %v301
    %2351 = vmatprep.subr.mxu0 0.0
    %2352 = vmatpush1.msra.mxu0 %v300
    %2353 = vmatprep.subr.mxu0 0.0
    %2354 = vmatpush1.msra.mxu0 %v299
    %2355 = vmatprep.subr.mxu0 0.0
    %2356 = vmatpush1.msra.mxu0 %v298
    %2357 = vmatprep.subr.mxu0 0.0
    %2358 = vmatpush1.msra.mxu0 %v297
    %2359 = vmatprep.subr.mxu0 0.0
    %2360 = vmatpush1.msra.mxu0 %v296
    %2361 = vmatprep.subr.mxu0 0.0
    %2362 = vmatpush1.msra.mxu0 %v295
    %2363 = vmatprep.subr.mxu0 0.0
    %2364 = vmatpush1.msra.mxu0 %v294
    %2365 = vmatprep.subr.mxu0 0.0
    %2366 = vmatpush1.msra.mxu0 %v293
    %2367 = vmatprep.subr.mxu0 0.0
    %2368 = vmatpush2.msra.mxu0 0.0
    %2369 = vmatprep.subr.mxu0 0.0
    %2370 = vmatpush2.msra.mxu0 0.0
    %2371 = vmatprep.subr.mxu0 0.0
    %2372 = vmatpush2.msra.mxu0 0.0
    %2373 = vmatprep.subr.mxu0 0.0
    %2374 = vmatpush2.msra.mxu0 0.0
    %2375 = vmatprep.subr.mxu0 0.0
    %2376 = vmatpush2.msra.mxu0 0.0
    %2377 = vmatprep.subr.mxu0 0.0
    %2378 = vmatpush2.msra.mxu0 0.0
    %2379 = vmatprep.subr.mxu0 0.0
    %2380 = vmatpush2.msra.mxu0 0.0
    %2381 = vmatprep.subr.mxu0 0.0
    %2382 = vmatpush2.msra.mxu0 0.0
    %2383 = vmatprep.subr.mxu0 0.0
    %2384 = vmatpush2.msra.mxu0 0.0
    %2385 = vmatprep.subr.mxu0 0.0
    %2386 = vmatpush2.msra.mxu0 0.0
    %2387 = vmatprep.subr.mxu0 0.0
    %2388 = vmatpush2.msra.mxu0 0.0
    %2389 = vmatprep.subr.mxu0 0.0
    %2390 = vmatpush2.msra.mxu0 0.0
    %2391 = vmatprep.subr.mxu0 0.0
    %2392 = vmatpush2.msra.mxu0 0.0
    %2393 = vmatprep.subr.mxu0 0.0
    %2394 = vmatpush2.msra.mxu0 0.0
    %2395 = vmatprep.subr.mxu0 0.0
    %2396 = vmatpush2.msra.mxu0 0.0
    %2397 = vmatprep.subr.mxu0 0.0
    %2398 = vmatpush2.msra.mxu0 0.0
    %2399 = vmatprep.mubr.f32.mxu0 0.0
    %2400 = vmatmul.mubr.f32.gmra.mxu0 %v2192
    %v2401 = vpop.f32.mrf.mxu0
    %v2402 = vadd.f32 0.0, %v2401
    %v2403 = vpop.f32.mrf.mxu0
    %2404 = vdwg.mxu0
    %v2405 = vadd.f32 %v2118, %v2402
    %v2406 = vmax.f32 %v2405, 0.0
    %2407 = vmatprep.subr.mxu0 0.0
    %2408 = vmatpush1.msra.mxu0 %v396
    %2409 = vmatprep.subr.mxu0 0.0
    %2410 = vmatpush1.msra.mxu0 %v395
    %2411 = vmatprep.subr.mxu0 0.0
    %2412 = vmatpush1.msra.mxu0 %v394
    %2413 = vmatprep.subr.mxu0 0.0
    %2414 = vmatpush1.msra.mxu0 %v393
    %2415 = vmatprep.subr.mxu0 0.0
    %2416 = vmatpush1.msra.mxu0 %v392
    %2417 = vmatprep.subr.mxu0 0.0
    %2418 = vmatpush1.msra.mxu0 %v391
    %2419 = vmatprep.subr.mxu0 0.0
    %2420 = vmatpush1.msra.mxu0 %v390
    %2421 = vmatprep.subr.mxu0 0.0
    %2422 = vmatpush1.msra.mxu0 %v389
    %2423 = vmatprep.subr.mxu0 0.0
    %2424 = vmatpush1.msra.mxu0 %v388
    %2425 = vmatprep.subr.mxu0 0.0
    %2426 = vmatpush1.msra.mxu0 %v387
    %2427 = vmatprep.subr.mxu0 0.0
    %2428 = vmatpush1.msra.mxu0 %v386
    %2429 = vmatprep.subr.mxu0 0.0
    %2430 = vmatpush1.msra.mxu0 %v385
    %2431 = vmatprep.subr.mxu0 0.0
    %2432 = vmatpush1.msra.mxu0 %v384
    %2433 = vmatprep.subr.mxu0 0.0
    %2434 = vmatpush1.msra.mxu0 %v383
    %2435 = vmatprep.subr.mxu0 0.0
    %2436 = vmatpush1.msra.mxu0 %v382
    %2437 = vmatprep.subr.mxu0 0.0
    %2438 = vmatpush1.msra.mxu0 %v381
    %2439 = vmatprep.subr.mxu0 0.0
    %2440 = vmatpush2.msra.mxu0 %v412
    %2441 = vmatprep.subr.mxu0 0.0
    %2442 = vmatpush2.msra.mxu0 %v411
    %2443 = vmatprep.subr.mxu0 0.0
    %2444 = vmatpush2.msra.mxu0 %v410
    %2445 = vmatprep.subr.mxu0 0.0
    %2446 = vmatpush2.msra.mxu0 %v409
    %2447 = vmatprep.subr.mxu0 0.0
    %2448 = vmatpush2.msra.mxu0 %v408
    %2449 = vmatprep.subr.mxu0 0.0
    %2450 = vmatpush2.msra.mxu0 %v407
    %2451 = vmatprep.subr.mxu0 0.0
    %2452 = vmatpush2.msra.mxu0 %v406
    %2453 = vmatprep.subr.mxu0 0.0
    %2454 = vmatpush2.msra.mxu0 %v405
    %2455 = vmatprep.subr.mxu0 0.0
    %2456 = vmatpush2.msra.mxu0 %v404
    %2457 = vmatprep.subr.mxu0 0.0
    %2458 = vmatpush2.msra.mxu0 %v403
    %2459 = vmatprep.subr.mxu0 0.0
    %2460 = vmatpush2.msra.mxu0 %v402
    %2461 = vmatprep.subr.mxu0 0.0
    %2462 = vmatpush2.msra.mxu0 %v401
    %2463 = vmatprep.subr.mxu0 0.0
    %2464 = vmatpush2.msra.mxu0 %v400
    %2465 = vmatprep.subr.mxu0 0.0
    %2466 = vmatpush2.msra.mxu0 %v399
    %2467 = vmatprep.subr.mxu0 0.0
    %2468 = vmatpush2.msra.mxu0 %v398
    %2469 = vmatprep.subr.mxu0 0.0
    %2470 = vmatpush2.msra.mxu0 %v397
    %2471 = vmatprep.mubr.f32.mxu0 %v2263
    %2472 = vmatmul.mubr.f32.gmra.mxu0 %v2406
    %v2473 = vpop.f32.mrf.mxu0
    %v2474 = vadd.f32 %v418, %v2473
    %v2475 = vpop.f32.mrf.mxu0
    %2476 = vdwg.mxu0
    %v2477 = vmax.f32 %v2474, 0.0
    %2478 = vmatprep.subr.mxu0 0.0
    %2479 = vmatpush1.msra.mxu0 %v506
    %2480 = vmatprep.subr.mxu0 0.0
    %2481 = vmatpush1.msra.mxu0 %v505
    %2482 = vmatprep.subr.mxu0 0.0
    %2483 = vmatpush1.msra.mxu0 %v504
    %2484 = vmatprep.subr.mxu0 0.0
    %2485 = vmatpush1.msra.mxu0 %v503
    %2486 = vmatprep.subr.mxu0 0.0
    %2487 = vmatpush1.msra.mxu0 %v502
    %2488 = vmatprep.subr.mxu0 0.0
    %2489 = vmatpush1.msra.mxu0 %v501
    %2490 = vmatprep.subr.mxu0 0.0
    %2491 = vmatpush1.msra.mxu0 %v500
    %2492 = vmatprep.subr.mxu0 0.0
    %2493 = vmatpush1.msra.mxu0 %v499
    %2494 = vmatprep.subr.mxu0 0.0
    %2495 = vmatpush1.msra.mxu0 %v498
    %2496 = vmatprep.subr.mxu0 0.0
    %2497 = vmatpush1.msra.mxu0 %v497
    %2498 = vmatprep.subr.mxu0 0.0
    %2499 = vmatpush1.msra.mxu0 %v496
    %2500 = vmatprep.subr.mxu0 0.0
    %2501 = vmatpush1.msra.mxu0 %v495
    %2502 = vmatprep.subr.mxu0 0.0
    %2503 = vmatpush1.msra.mxu0 %v494
    %2504 = vmatprep.subr.mxu0 0.0
    %2505 = vmatpush1.msra.mxu0 %v493
    %2506 = vmatprep.subr.mxu0 0.0
    %2507 = vmatpush1.msra.mxu0 %v492
    %2508 = vmatprep.subr.mxu0 0.0
    %2509 = vmatpush1.msra.mxu0 %v491
    %2510 = vmatprep.subr.mxu0 0.0
    %2511 = vmatpush2.msra.mxu0 %v522
    %2512 = vmatprep.subr.mxu0 0.0
    %2513 = vmatpush2.msra.mxu0 %v521
    %2514 = vmatprep.subr.mxu0 0.0
    %2515 = vmatpush2.msra.mxu0 %v520
    %2516 = vmatprep.subr.mxu0 0.0
    %2517 = vmatpush2.msra.mxu0 %v519
    %2518 = vmatprep.subr.mxu0 0.0
    %2519 = vmatpush2.msra.mxu0 %v518
    %2520 = vmatprep.subr.mxu0 0.0
    %2521 = vmatpush2.msra.mxu0 %v517
    %2522 = vmatprep.subr.mxu0 0.0
    %2523 = vmatpush2.msra.mxu0 %v516
    %2524 = vmatprep.subr.mxu0 0.0
    %2525 = vmatpush2.msra.mxu0 %v515
    %2526 = vmatprep.subr.mxu0 0.0
    %2527 = vmatpush2.msra.mxu0 %v514
    %2528 = vmatprep.subr.mxu0 0.0
    %2529 = vmatpush2.msra.mxu0 %v513
    %2530 = vmatprep.subr.mxu0 0.0
    %2531 = vmatpush2.msra.mxu0 %v512
    %2532 = vmatprep.subr.mxu0 0.0
    %2533 = vmatpush2.msra.mxu0 %v511
    %2534 = vmatprep.subr.mxu0 0.0
    %2535 = vmatpush2.msra.mxu0 %v510
    %2536 = vmatprep.subr.mxu0 0.0
    %2537 = vmatpush2.msra.mxu0 %v509
    %2538 = vmatprep.subr.mxu0 0.0
    %2539 = vmatpush2.msra.mxu0 %v508
    %2540 = vmatprep.subr.mxu0 0.0
    %2541 = vmatpush2.msra.mxu0 %v507
    %2542 = vmatprep.mubr.f32.mxu0 %v2334
    %2543 = vmatmul.mubr.f32.gmra.mxu0 %v2477
    %v2544 = vpop.f32.mrf.mxu0
    %v2545 = vadd.f32 %v528, %v2544
    %v2546 = vpop.f32.mrf.mxu0
    %2547 = vdwg.mxu0
    %v2548 = vmax.f32 %v2545, 0.0
    %v2549 = vld [vmem:[%s8] sm:$0xff]
    %v2550 = vld [vmem:[%s8 + $0x8] sm:$0xff]
    %v2551 = vld [vmem:[%s8 + $0x10] sm:$0xff]
    %v2552 = vld [vmem:[%s8 + $0x18] sm:$0xff]
    %v2553 = vld [vmem:[%s8 + $0x20] sm:$0xff]
    %v2554 = vld [vmem:[%s8 + $0x28] sm:$0xff]
    %v2555 = vld [vmem:[%s8 + $0x30] sm:$0xff]
    %v2556 = vld [vmem:[%s8 + $0x38] sm:$0xff]
    %v2557 = vld [vmem:[%s8 + $0x40] sm:$0xff]
    %v2558 = vld [vmem:[%s8 + $0x48] sm:$0xff]
    %v2559 = vld [vmem:[%s8 + $0x50] sm:$0xff]
    %v2560 = vld [vmem:[%s8 + $0x58] sm:$0xff]
    %v2561 = vld [vmem:[%s8 + $0x60] sm:$0xff]
    %v2562 = vld [vmem:[%s8 + $0x68] sm:$0xff]
    %v2563 = vld [vmem:[%s8 + $0x70] sm:$0xff]
    %v2564 = vld [vmem:[%s8 + $0x78] sm:$0xff]
    %v2565 = vld [vmem:[%s9] sm:$0x1]
    %v2567 = vlaneseq
    %v2568 = vshrl.u32 %v2567, 7
    %v2569 = vsub.s32 0, %v2568
    %v2570 = vrot.slane %v2565, %v2569
    %2572 = vmatprep.subr.mxu0 0.0
    %2573 = vmatpush1.msra.mxu0 %v2564
    %2574 = vmatprep.subr.mxu0 0.0
    %2575 = vmatpush1.msra.mxu0 %v2563
    %2576 = vmatprep.subr.mxu0 0.0
    %2577 = vmatpush1.msra.mxu0 %v2562
    %2578 = vmatprep.subr.mxu0 0.0
    %2579 = vmatpush1.msra.mxu0 %v2561
    %2580 = vmatprep.subr.mxu0 0.0
    %2581 = vmatpush1.msra.mxu0 %v2560
    %2582 = vmatprep.subr.mxu0 0.0
    %2583 = vmatpush1.msra.mxu0 %v2559
    %2584 = vmatprep.subr.mxu0 0.0
    %2585 = vmatpush1.msra.mxu0 %v2558
    %2586 = vmatprep.subr.mxu0 0.0
    %2587 = vmatpush1.msra.mxu0 %v2557
    %2588 = vmatprep.subr.mxu0 0.0
    %2589 = vmatpush1.msra.mxu0 %v2556
    %2590 = vmatprep.subr.mxu0 0.0
    %2591 = vmatpush1.msra.mxu0 %v2555
    %2592 = vmatprep.subr.mxu0 0.0
    %2593 = vmatpush1.msra.mxu0 %v2554
    %2594 = vmatprep.subr.mxu0 0.0
    %2595 = vmatpush1.msra.mxu0 %v2553
    %2596 = vmatprep.subr.mxu0 0.0
    %2597 = vmatpush1.msra.mxu0 %v2552
    %2598 = vmatprep.subr.mxu0 0.0
    %2599 = vmatpush1.msra.mxu0 %v2551
    %2600 = vmatprep.subr.mxu0 0.0
    %2601 = vmatpush1.msra.mxu0 %v2550
    %2602 = vmatprep.subr.mxu0 0.0
    %2603 = vmatpush1.msra.mxu0 %v2549
    %2604 = vmatprep.subr.mxu0 0.0
    %2605 = vmatpush2.msra.mxu0 0.0
    %2606 = vmatprep.subr.mxu0 0.0
    %2607 = vmatpush2.msra.mxu0 0.0
    %2608 = vmatprep.subr.mxu0 0.0
    %2609 = vmatpush2.msra.mxu0 0.0
    %2610 = vmatprep.subr.mxu0 0.0
    %2611 = vmatpush2.msra.mxu0 0.0
    %2612 = vmatprep.subr.mxu0 0.0
    %2613 = vmatpush2.msra.mxu0 0.0
    %2614 = vmatprep.subr.mxu0 0.0
    %2615 = vmatpush2.msra.mxu0 0.0
    %2616 = vmatprep.subr.mxu0 0.0
    %2617 = vmatpush2.msra.mxu0 0.0
    %2618 = vmatprep.subr.mxu0 0.0
    %2619 = vmatpush2.msra.mxu0 0.0
    %2620 = vmatprep.subr.mxu0 0.0
    %2621 = vmatpush2.msra.mxu0 0.0
    %2622 = vmatprep.subr.mxu0 0.0
    %2623 = vmatpush2.msra.mxu0 0.0
    %2624 = vmatprep.subr.mxu0 0.0
    %2625 = vmatpush2.msra.mxu0 0.0
    %2626 = vmatprep.subr.mxu0 0.0
    %2627 = vmatpush2.msra.mxu0 0.0
    %2628 = vmatprep.subr.mxu0 0.0
    %2629 = vmatpush2.msra.mxu0 0.0
    %2630 = vmatprep.subr.mxu0 0.0
    %2631 = vmatpush2.msra.mxu0 0.0
    %2632 = vmatprep.subr.mxu0 0.0
    %2633 = vmatpush2.msra.mxu0 0.0
    %2634 = vmatprep.subr.mxu0 0.0
    %2635 = vmatpush2.msra.mxu0 0.0
    %2636 = vmatprep.mubr.f32.mxu0 0.0
    %2637 = vmatmul.mubr.f32.gmra.mxu0 %v2548
    %v2638 = vpop.f32.mrf.mxu0
    %v2639 = vadd.f32 %v2570, %v2638
    %v2640 = vpop.f32.mrf.mxu0
    %2641 = vdwg.mxu0
    %2642 = vst [vmem:[%s10] sm:$0xff] %v2639
    // Predicated region
    $region70: #{rnn_net_forward.1} parent=1 // pred_check
      _
    $region71: #{rnn_net_forward.1} parent=1 // pred_check_branch
      %2644 = sbr.rel (0) target = $region73
    $region72: #{rnn_net_forward.1} parent=1 // pred_region
      _
    $region73: #{rnn_net_forward.1} parent=1 // pred_fallthru
      _
    // Predicated region
    $region74: #{rnn_net_forward.1} parent=1 // pred_check
      _
    $region75: #{rnn_net_forward.1} parent=1 // pred_check_branch
      %2646 = sbr.rel (0) target = $region77
    $region76: #{rnn_net_forward.1} parent=1 // pred_region
      _
    $region77: #{rnn_net_forward.1} parent=1 // pred_fallthru
      _
    %2647 = vsyncpa [#allocation3], 1
    %2648 = vsyncpa [#allocation5], 1
    %2649 = vsyncpa [#allocation8], 1
    %2650 = vsyncpa [#allocation11], 1

</llo_original>
